<compile_context>
chip_gen: v6e
topology: v6e:2x2x1
jax: 0.10.0
libtpu: 0.0.40
codegen_flags: <defaults>
</compile_context>

<pallas_src>
import functools
import math

import jax
import jax.numpy as jnp
from jax.experimental import pallas as pl
from jax.experimental.pallas import tpu as pltpu

EPS = 1e-5


def _vmem_limit_bytes(default=48 * 1024 * 1024):
    """~75% of physical VMEM: ~96 MiB on v5e/v6e, ~48 MiB on v7x."""
    try:
        info = pltpu.get_tpu_info()
        cap = getattr(info, "vmem_capacity_bytes", None)
        if cap:
            return int(0.75 * cap)
    except Exception:
        pass
    return default


def _layernorm(t, g, b):
    mu = jnp.mean(t, axis=-1, keepdims=True)
    var = jnp.mean(jnp.square(t - mu), axis=-1, keepdims=True)
    return (t - mu) * jax.lax.rsqrt(var + EPS) * g + b


# -----------------------------------------------------------------------------
# Fused ViT kernel: patch-embed -> depth x encoder -> pool+LN+classifier
# -----------------------------------------------------------------------------
def _vit_kernel(xp_ref, pe_ref, pw_ref,
                ln1g_ref, ln1b_ref, wqkv_ref, wo_ref,
                ln2g_ref, ln2b_ref, w1_ref, w2_ref,
                hg_ref, hb_ref, hw_ref,
                out_ref, act_ref, *, heads, scale, logit_bias, inv_n):
    d_idx = pl.program_id(1)
    n_layers = pl.num_programs(1)
    N, D = act_ref.shape
    dh = D // heads
    bf = jnp.bfloat16

    # --- patch embedding + sincos positional embedding (first depth step only)
    @pl.when(d_idx == 0)
    def _():
        emb = jnp.dot(xp_ref[0], pw_ref[...], preferred_element_type=jnp.float32)
        act_ref[...] = emb + pe_ref[...]

    x = act_ref[...]                                           # (N, D) f32

    # --- attention branch: LN -> per-head QKV -> softmax -> AV -> out-proj ---
    xn = _layernorm(x, ln1g_ref[0], ln1b_ref[0]).astype(bf)    # LN once, x read once
    xn_b = jnp.broadcast_to(xn, (heads, N, D))                 # cheap leading-dim bcast
    # head split lives in the host-side weight layout -> leading-batch einsum
    qkv = jnp.einsum("hnd,hdc->hnc", xn_b, wqkv_ref[0],
                     preferred_element_type=jnp.float32)       # (h, N, 3*dh) f32
    q = (qkv[:, :, 0 * dh:1 * dh] * scale).astype(bf)          # scale folded into q
    k = qkv[:, :, 1 * dh:2 * dh].astype(bf)
    v = qkv[:, :, 2 * dh:3 * dh].astype(bf)

    dots = jnp.einsum("hqd,hkd->hqk", q, k,
                      preferred_element_type=jnp.float32)      # (h, N, N) f32
    dots = dots - jnp.max(dots, axis=-1, keepdims=True)
    p = jnp.exp(dots)
    inv_den = pl.reciprocal(jnp.sum(p, axis=-1, keepdims=True), approx=True)
    attn = (p * inv_den).astype(bf)                            # f32 mul (v5e-safe)
    oh = jnp.einsum("hqk,hkd->hqd", attn, v,
                    preferred_element_type=jnp.float32)        # (h, N, dh) f32
    # output projection with the head merge folded in: sum_h (oh_h @ Wo_h)
    att_out = jnp.sum(
        jnp.einsum("hqd,hde->hqe", oh.astype(bf), wo_ref[0],
                   preferred_element_type=jnp.float32), axis=0)  # (N, D) f32
    x1 = x + att_out

    # --- feed-forward branch: LN -> Linear -> Identity -> Linear -------------
    xn2 = _layernorm(x1, ln2g_ref[0], ln2b_ref[0]).astype(bf)
    h1 = jnp.dot(xn2, w1_ref[0], preferred_element_type=jnp.float32)
    h2 = jnp.dot(h1.astype(bf), w2_ref[0], preferred_element_type=jnp.float32)
    x2 = x1 + h2
    act_ref[...] = x2                                          # carry to next layer

    # --- mean-pool + LayerNorm + classifier (last depth step only) -----------
    @pl.when(d_idx == n_layers - 1)
    def _():
        pooled = jnp.sum(x2, axis=0, keepdims=True) * inv_n    # (1, D)
        pn = _layernorm(pooled, hg_ref[...], hb_ref[...])
        # padded classifier columns also receive logit_bias; wrapper slices them.
        logits = jnp.dot(pn.astype(bf), hw_ref[...],
                         preferred_element_type=jnp.float32) + logit_bias
        out_ref[0] = logits.astype(out_ref.dtype)


def vit_forward_pallas(x_patches, pe, params, *, heads, logit_bias):
    B, N, PD = x_patches.shape
    depth = params["wqkv_h"].shape[0]
    D = params["patch_w"].shape[1]
    dh = D // heads
    mlp = params["w1"].shape[2]
    nc = params["head_w"].shape[1]
    c_pad = ((nc + 127) // 128) * 128                          # lane-dense logits
    hw_pad = jnp.pad(params["head_w"], ((0, 0), (0, c_pad - nc)))
    scale = dh ** -0.5
    kern = functools.partial(_vit_kernel, heads=heads, scale=scale,
                             logit_bias=logit_bias, inv_n=1.0 / N)

    def batch_map(b, d):
        return (b, 0, 0)

    def layer_map(b, d):
        return (d, 0, 0)

    def layer_map4(b, d):
        return (d, 0, 0, 0)

    def const2(b, d):
        return (0, 0)

    out = pl.pallas_call(
        kern,
        out_shape=jax.ShapeDtypeStruct((B, 1, c_pad), jnp.float32),
        grid=(B, depth),
        in_specs=[
            pl.BlockSpec((1, N, PD), batch_map),               # patches (bf16)
            pl.BlockSpec((N, D), const2),                      # sincos pos-emb (f32)
            pl.BlockSpec((PD, D), const2),                     # patch embedding W
            pl.BlockSpec((1, 1, D), layer_map),                # ln1 gamma
            pl.BlockSpec((1, 1, D), layer_map),                # ln1 beta
            pl.BlockSpec((1, heads, D, 3 * dh), layer_map4),   # per-head QKV W (bf16)
            pl.BlockSpec((1, heads, dh, D), layer_map4),       # per-head out-proj W
            pl.BlockSpec((1, 1, D), layer_map),                # ln2 gamma
            pl.BlockSpec((1, 1, D), layer_map),                # ln2 beta
            pl.BlockSpec((1, D, mlp), layer_map),              # mlp W1 (bf16)
            pl.BlockSpec((1, mlp, D), layer_map),              # mlp W2 (bf16)
            pl.BlockSpec((1, D), const2),                      # head LN gamma
            pl.BlockSpec((1, D), const2),                      # head LN beta
            pl.BlockSpec((D, c_pad), const2),                  # head W (padded, bf16)
        ],
        out_specs=pl.BlockSpec((1, 1, c_pad), batch_map),
        scratch_shapes=[pltpu.VMEM((N, D), jnp.float32)],      # activation carry
        compiler_params=pltpu.CompilerParams(
            dimension_semantics=("parallel", "arbitrary"),
            vmem_limit_bytes=_vmem_limit_bytes(),
        ),
    )(x_patches, pe, params["patch_w"],
      params["ln1_g"], params["ln1_b"], params["wqkv_h"], params["wo_h"],
      params["ln2_g"], params["ln2_b"], params["w1"], params["w2"],
      params["head_g"], params["head_b"], hw_pad)
    return out.reshape(B, c_pad)[:, :nc]


# -----------------------------------------------------------------------------
# Glue: patchify, sincos positional embedding, parameter init, full forward
# -----------------------------------------------------------------------------
def posemb_sincos_2d(h, w, dim, temperature=10000.0, dtype=jnp.float32):
    y, x = jnp.meshgrid(jnp.arange(h), jnp.arange(w), indexing="ij")
    assert dim % 4 == 0, "feature dimension must be multiple of 4 for sincos emb"
    omega = jnp.arange(dim // 4) / (dim // 4 - 1)
    omega = 1.0 / (temperature ** omega)
    y = y.flatten()[:, None] * omega[None, :]
    x = x.flatten()[:, None] * omega[None, :]
    pe = jnp.concatenate([jnp.sin(x), jnp.cos(x), jnp.sin(y), jnp.cos(y)], axis=1)
    return pe.astype(dtype)


def init_params(key, *, channels, patch, dim, depth, heads, mlp_dim, num_classes):
    assert dim % heads == 0
    patch_dim = channels * patch * patch
    dh = dim // heads
    ks = jax.random.split(key, 6)

    def w(shape, kk, scale=0.02):
        # bf16 host storage -> halved weight DMA bytes / VMEM residency.
        return (scale * jax.random.normal(kk, shape)).astype(jnp.bfloat16)

    wqkv = w((depth, dim, 3 * dim), ks[1])         # columns [q | k | v], head-major
    wo = w((depth, dim, dim), ks[2])
    # Host-side head-major re-layout (free, done once): the kernel then runs
    # attention as leading-batch einsums with no in-kernel head relayouts.
    wq = wqkv[:, :, 0 * dim:1 * dim].reshape(depth, dim, heads, dh)
    wk = wqkv[:, :, 1 * dim:2 * dim].reshape(depth, dim, heads, dh)
    wv = wqkv[:, :, 2 * dim:3 * dim].reshape(depth, dim, heads, dh)
    wqkv_h = jnp.transpose(jnp.concatenate([wq, wk, wv], axis=-1),
                           (0, 2, 1, 3))                        # (depth, heads, D, 3*dh)
    wo_h = wo.reshape(depth, heads, dh, dim)                    # row h*dh+d -> [h, d]

    return {
        "patch_w": w((patch_dim, dim), ks[0]),
        "ln1_g": jnp.ones((depth, 1, dim), jnp.float32),
        "ln1_b": jnp.zeros((depth, 1, dim), jnp.float32),
        "wqkv_h": wqkv_h,
        "wo_h": wo_h,
        "ln2_g": jnp.ones((depth, 1, dim), jnp.float32),
        "ln2_b": jnp.zeros((depth, 1, dim), jnp.float32),
        "w1": w((depth, dim, mlp_dim), ks[3]),
        "w2": w((depth, mlp_dim, dim), ks[4]),
        "head_g": jnp.ones((1, dim), jnp.float32),
        "head_b": jnp.zeros((1, dim), jnp.float32),
        "head_w": w((dim, num_classes), ks[5]),
    }


def simple_vit_forward(img, params, *, patch, dim, heads, logit_bias):
    # layout: img is NCHW (B, C, H, W), same as PyTorch.
    B, C, H, W = img.shape
    assert H % patch == 0 and W % patch == 0
    h, w = H // patch, W // patch
    # bf16 cast BEFORE the patchify transpose (halves transpose bytes), then
    # rearrange 'b c (h p1) (w p2) -> b h w (p1 p2 c)' and flatten (h w) -> N.
    x = img.astype(jnp.bfloat16).reshape(B, C, h, patch, w, patch)
    x = jnp.transpose(x, (0, 2, 4, 3, 5, 1)).reshape(B, h * w, patch * patch * C)
    pe = posemb_sincos_2d(h, w, dim, dtype=jnp.float32)
    return vit_forward_pallas(x, pe, params, heads=heads, logit_bias=logit_bias)


# -----------------------------------------------------------------------------
# Pure-JAX reference (mirrors the kernel's bf16 operand casts, f32 accumulation)
# -----------------------------------------------------------------------------
def reference_forward(img, params, *, patch, dim, heads, logit_bias):
    bf = jnp.bfloat16
    B, C, H, W = img.shape
    h, w = H // patch, W // patch
    dh = dim // heads
    scale = dh ** -0.5
    depth = params["wqkv_h"].shape[0]

    x = img.astype(bf).reshape(B, C, h, patch, w, patch)
    x = jnp.transpose(x, (0, 2, 4, 3, 5, 1)).reshape(B, h * w, patch * patch * C)
    x = jnp.einsum("bnk,kd->bnd", x, params["patch_w"],
                   preferred_element_type=jnp.float32)
    x = x + posemb_sincos_2d(h, w, dim)[None]

    for d in range(depth):
        xn = _layernorm(x, params["ln1_g"][d], params["ln1_b"][d]).astype(bf)
        qkv = jnp.einsum("bnd,hdc->bhnc", xn, params["wqkv_h"][d],
                         preferred_element_type=jnp.float32)
        q = (qkv[..., 0 * dh:1 * dh] * scale).astype(bf)
        k = qkv[..., 1 * dh:2 * dh].astype(bf)
        v = qkv[..., 2 * dh:3 * dh].astype(bf)
        dots = jnp.einsum("bhqd,bhkd->bhqk", q, k,
                          preferred_element_type=jnp.float32)
        dots = dots - jnp.max(dots, axis=-1, keepdims=True)
        p = jnp.exp(dots)
        attn = (p / jnp.sum(p, axis=-1, keepdims=True)).astype(bf)
        oh = jnp.einsum("bhqk,bhkd->bhqd", attn, v,
                        preferred_element_type=jnp.float32)
        att_out = jnp.einsum("bhqd,hde->bqe", oh.astype(bf), params["wo_h"][d],
                             preferred_element_type=jnp.float32)
        x = x + att_out
        xn2 = _layernorm(x, params["ln2_g"][d], params["ln2_b"][d]).astype(bf)
        h1 = jnp.einsum("bnd,de->bne", xn2, params["w1"][d],
                        preferred_element_type=jnp.float32)
        x = x + jnp.einsum("bne,ed->bnd", h1.astype(bf), params["w2"][d],
                           preferred_element_type=jnp.float32)

    pooled = jnp.mean(x, axis=1)
    pn = _layernorm(pooled, params["head_g"], params["head_b"])
    return jnp.einsum("bd,dc->bc", pn.astype(bf), params["head_w"],
                      preferred_element_type=jnp.float32) + logit_bias


# -----------------------------------------------------------------------------
if __name__ == "__main__":
    # small custom config consistent with SimpleViT's custom-config branch
    # (lane-dense dims: dim / mlp_dim / dim_head multiples of 128)
    B, C, IMG, PATCH = 2, 4, 16, 4
    DIM, DEPTH, HEADS, MLP, NUM_CLASSES = 256, 2, 2, 512, 10
    LOGIT_BIAS = math.log(1.0 / (NUM_CLASSES - 1))

    key = jax.random.PRNGKey(0)
    k_img, k_par = jax.random.split(key)
    img = jax.random.normal(k_img, (B, C, IMG, IMG), dtype=jnp.float32)
    params = init_params(k_par, channels=C, patch=PATCH, dim=DIM, depth=DEPTH,
                         heads=HEADS, mlp_dim=MLP, num_classes=NUM_CLASSES)

    fwd = jax.jit(functools.partial(simple_vit_forward, patch=PATCH, dim=DIM,
                                    heads=HEADS, logit_bias=LOGIT_BIAS))
    out = jax.block_until_ready(fwd(img, params))

    ref = reference_forward(img, params, patch=PATCH, dim=DIM,
                            heads=HEADS, logit_bias=LOGIT_BIAS)

    assert out.shape == (B, NUM_CLASSES)
    assert bool(jnp.all(jnp.isfinite(out)))
    assert bool(jnp.allclose(out, ref, atol=1e-2, rtol=1e-2)), "mismatch vs JAX reference"

    print("KERNEL_OK")
</pallas_src>

<mosaic_0001>
module attributes {stable_mosaic.version = 11 : i64} {
  func.func @_vit_kernel(%arg0: i32, %arg1: i32, %arg2: memref<1x16x64xbf16, #tpu.memory_space<vmem>>, %arg3: memref<16x256xf32, #tpu.memory_space<vmem>>, %arg4: memref<64x256xbf16, #tpu.memory_space<vmem>>, %arg5: memref<1x1x256xf32, #tpu.memory_space<vmem>>, %arg6: memref<1x1x256xf32, #tpu.memory_space<vmem>>, %arg7: memref<1x2x256x384xbf16, #tpu.memory_space<vmem>>, %arg8: memref<1x2x128x256xbf16, #tpu.memory_space<vmem>>, %arg9: memref<1x1x256xf32, #tpu.memory_space<vmem>>, %arg10: memref<1x1x256xf32, #tpu.memory_space<vmem>>, %arg11: memref<1x256x512xbf16, #tpu.memory_space<vmem>>, %arg12: memref<1x512x256xbf16, #tpu.memory_space<vmem>>, %arg13: memref<1x256xf32, #tpu.memory_space<vmem>>, %arg14: memref<1x256xf32, #tpu.memory_space<vmem>>, %arg15: memref<256x128xbf16, #tpu.memory_space<vmem>>, %arg16: memref<1x1x128xf32, #tpu.memory_space<vmem>>, %arg17: memref<16x256xf32, #tpu.memory_space<vmem>>) attributes {dimension_semantics = [#tpu.dimension_semantics<parallel>, #tpu.dimension_semantics<arbitrary>], iteration_bounds = array<i64: 2, 2>, scalar_prefetch = 0 : i64, scratch_operands = 1 : i64, tpu.core_type = #tpu.core_type<tc>, window_params = [{transform_indices = @transform_0, window_bounds = array<i64: 1, 16, 64>}, {pipeline_mode = #tpu.pipeline_mode<synchronous>, transform_indices = @transform_1, window_bounds = array<i64: 16, 256>}, {pipeline_mode = #tpu.pipeline_mode<synchronous>, transform_indices = @transform_2, window_bounds = array<i64: 64, 256>}, {transform_indices = @transform_3, window_bounds = array<i64: 1, 1, 256>}, {transform_indices = @transform_4, window_bounds = array<i64: 1, 1, 256>}, {transform_indices = @transform_5, window_bounds = array<i64: 1, 2, 256, 384>}, {transform_indices = @transform_6, window_bounds = array<i64: 1, 2, 128, 256>}, {transform_indices = @transform_7, window_bounds = array<i64: 1, 1, 256>}, {transform_indices = @transform_8, window_bounds = array<i64: 1, 1, 256>}, {transform_indices = @transform_9, window_bounds = array<i64: 1, 256, 512>}, {transform_indices = @transform_10, window_bounds = array<i64: 1, 512, 256>}, {pipeline_mode = #tpu.pipeline_mode<synchronous>, transform_indices = @transform_11, window_bounds = array<i64: 1, 256>}, {pipeline_mode = #tpu.pipeline_mode<synchronous>, transform_indices = @transform_12, window_bounds = array<i64: 1, 256>}, {pipeline_mode = #tpu.pipeline_mode<synchronous>, transform_indices = @transform_13, window_bounds = array<i64: 256, 128>}, {transform_indices = @transform_14, window_bounds = array<i64: 1, 1, 128>}]} {
    %c0_i32 = arith.constant 0 : i32
    %0 = arith.cmpi eq, %arg1, %c0_i32 : i32
    %1 = arith.extui %0 : i1 to i32
    %c0_i32_0 = arith.constant 0 : i32
    %2 = arith.cmpi ne, %1, %c0_i32_0 : i32
    scf.if %2 {
      %c0_50 = arith.constant 0 : index
      %c0_51 = arith.constant 0 : index
      %c0_52 = arith.constant 0 : index
      %102 = vector.load %arg2[%c0_50, %c0_51, %c0_52] : memref<1x16x64xbf16, #tpu.memory_space<vmem>>, vector<1x16x64xbf16>
      %103 = vector.shape_cast %102 : vector<1x16x64xbf16> to vector<16x64xbf16>
      %c0_53 = arith.constant 0 : index
      %c0_54 = arith.constant 0 : index
      %104 = vector.load %arg4[%c0_53, %c0_54] : memref<64x256xbf16, #tpu.memory_space<vmem>>, vector<64x256xbf16>
      %cst_55 = arith.constant dense<0.000000e+00> : vector<16x256xf32>
      %105 = tpu.matmul %103, %104, %cst_55 {dimension_numbers = #tpu.dot_dimension_numbers<[1], [0], [0], [1], [0, 0, 1, 1], [], []>} : vector<16x64xbf16>, vector<64x256xbf16>, vector<16x256xf32> -> vector<16x256xf32>
      %c0_56 = arith.constant 0 : index
      %c0_57 = arith.constant 0 : index
      %106 = vector.load %arg3[%c0_56, %c0_57] : memref<16x256xf32, #tpu.memory_space<vmem>>, vector<16x256xf32>
      %107 = arith.addf %105, %106 : vector<16x256xf32>
      %c0_58 = arith.constant 0 : index
      %c0_59 = arith.constant 0 : index
      %108 = vector.load %arg17[%c0_58, %c0_59] : memref<16x256xf32, #tpu.memory_space<vmem>>, vector<16x256xf32>
      tpu.vector_store %arg17[%c0_58, %c0_59], %107 {strides = array<i32>} : memref<16x256xf32, #tpu.memory_space<vmem>>, vector<16x256xf32>,
    } else {
    }
    %c0 = arith.constant 0 : index
    %c0_1 = arith.constant 0 : index
    %3 = vector.load %arg17[%c0, %c0_1] : memref<16x256xf32, #tpu.memory_space<vmem>>, vector<16x256xf32>
    %c0_2 = arith.constant 0 : index
    %c0_3 = arith.constant 0 : index
    %c0_4 = arith.constant 0 : index
    %4 = vector.load %arg5[%c0_2, %c0_3, %c0_4] : memref<1x1x256xf32, #tpu.memory_space<vmem>>, vector<1x1x256xf32>
    %5 = vector.shape_cast %4 : vector<1x1x256xf32> to vector<1x256xf32>
    %c0_5 = arith.constant 0 : index
    %c0_6 = arith.constant 0 : index
    %c0_7 = arith.constant 0 : index
    %6 = vector.load %arg6[%c0_5, %c0_6, %c0_7] : memref<1x1x256xf32, #tpu.memory_space<vmem>>, vector<1x1x256xf32>
    %7 = vector.shape_cast %6 : vector<1x1x256xf32> to vector<1x256xf32>
    %cst = arith.constant dense<0.000000e+00> : vector<16xf32>
    %8 = vector.multi_reduction <add>, %3, %cst [1] : vector<16x256xf32> to vector<16xf32>
    %9 = vector.shape_cast %8 : vector<16xf32> to vector<16x1xf32>
    %cst_8 = arith.constant 2.560000e+02 : f32
    %10 = vector.broadcast %cst_8 : f32 to vector<16x1xf32>
    %11 = arith.divf %9, %10 : vector<16x1xf32>
    %12 = vector.broadcast %11 : vector<16x1xf32> to vector<16x256xf32>
    %13 = arith.subf %3, %12 : vector<16x256xf32>
    %14 = arith.mulf %13, %13 : vector<16x256xf32>
    %cst_9 = arith.constant dense<0.000000e+00> : vector<16xf32>
    %15 = vector.multi_reduction <add>, %14, %cst_9 [1] : vector<16x256xf32> to vector<16xf32>
    %16 = vector.shape_cast %15 : vector<16xf32> to vector<16x1xf32>
    %cst_10 = arith.constant 2.560000e+02 : f32
    %17 = vector.broadcast %cst_10 : f32 to vector<16x1xf32>
    %18 = arith.divf %16, %17 : vector<16x1xf32>
    %19 = vector.broadcast %11 : vector<16x1xf32> to vector<16x256xf32>
    %20 = arith.subf %3, %19 : vector<16x256xf32>
    %cst_11 = arith.constant 9.99999974E-6 : f32
    %21 = vector.broadcast %cst_11 : f32 to vector<16x1xf32>
    %22 = arith.addf %18, %21 : vector<16x1xf32>
    %23 = math.rsqrt %22 : vector<16x1xf32>
    %24 = vector.broadcast %23 : vector<16x1xf32> to vector<16x256xf32>
    %25 = arith.mulf %20, %24 : vector<16x256xf32>
    %26 = vector.broadcast %5 : vector<1x256xf32> to vector<16x256xf32>
    %27 = arith.mulf %25, %26 : vector<16x256xf32>
    %28 = vector.broadcast %7 : vector<1x256xf32> to vector<16x256xf32>
    %29 = arith.addf %27, %28 : vector<16x256xf32>
    %30 = arith.truncf %29 : vector<16x256xf32> to vector<16x256xbf16>
    %31 = vector.shape_cast %30 : vector<16x256xbf16> to vector<1x16x256xbf16>
    %32 = vector.broadcast %31 : vector<1x16x256xbf16> to vector<2x16x256xbf16>
    %c0_12 = arith.constant 0 : index
    %c0_13 = arith.constant 0 : index
    %c0_14 = arith.constant 0 : index
    %c0_15 = arith.constant 0 : index
    %33 = vector.load %arg7[%c0_12, %c0_13, %c0_14, %c0_15] : memref<1x2x256x384xbf16, #tpu.memory_space<vmem>>, vector<1x2x256x384xbf16>
    %34 = vector.shape_cast %33 : vector<1x2x256x384xbf16> to vector<2x256x384xbf16>
    "tpu.trace_start"() <{level = 10 : i32, message = "hnd,hdc->hnc"}> : () -> ()
    %cst_16 = arith.constant dense<0.000000e+00> : vector<2x16x384xf32>
    %35 = tpu.matmul %32, %34, %cst_16 {dimension_numbers = #tpu.dot_dimension_numbers<[2], [1], [1], [2], [0, 0, 0, 1, 1, 2], [0], [0]>} : vector<2x16x256xbf16>, vector<2x256x384xbf16>, vector<2x16x384xf32> -> vector<2x16x384xf32>
    "tpu.trace_stop"() : () -> ()
    %36 = vector.extract_strided_slice %35 {offsets = [0, 0, 0], sizes = [2, 16, 128], strides = [1, 1, 1]} : vector<2x16x384xf32> to vector<2x16x128xf32>
    %cst_17 = arith.constant 0.0883883461 : f32
    %37 = vector.broadcast %cst_17 : f32 to vector<2x16x128xf32>
    %38 = arith.mulf %36, %37 : vector<2x16x128xf32>
    %39 = arith.truncf %38 : vector<2x16x128xf32> to vector<2x16x128xbf16>
    %40 = vector.extract_strided_slice %35 {offsets = [0, 0, 128], sizes = [2, 16, 128], strides = [1, 1, 1]} : vector<2x16x384xf32> to vector<2x16x128xf32>
    %41 = arith.truncf %40 : vector<2x16x128xf32> to vector<2x16x128xbf16>
    %42 = vector.extract_strided_slice %35 {offsets = [0, 0, 256], sizes = [2, 16, 128], strides = [1, 1, 1]} : vector<2x16x384xf32> to vector<2x16x128xf32>
    %43 = arith.truncf %42 : vector<2x16x128xf32> to vector<2x16x128xbf16>
    "tpu.trace_start"() <{level = 10 : i32, message = "hqd,hkd->hqk"}> : () -> ()
    %cst_18 = arith.constant dense<0.000000e+00> : vector<2x16x16xf32>
    %44 = tpu.matmul %39, %41, %cst_18 {dimension_numbers = #tpu.dot_dimension_numbers<[2], [2], [1], [1], [0, 0, 0, 1, 1, 1], [0], [0]>} : vector<2x16x128xbf16>, vector<2x16x128xbf16>, vector<2x16x16xf32> -> vector<2x16x16xf32>
    "tpu.trace_stop"() : () -> ()
    %cst_19 = arith.constant dense<0xFF800000> : vector<2x16xf32>
    %45 = vector.multi_reduction <maximumf>, %44, %cst_19 [2] : vector<2x16x16xf32> to vector<2x16xf32>
    %46 = vector.shape_cast %45 : vector<2x16xf32> to vector<2x16x1xf32>
    %47 = vector.broadcast %46 : vector<2x16x1xf32> to vector<2x16x16xf32>
    %48 = arith.subf %44, %47 : vector<2x16x16xf32>
    %49 = math.exp %48 : vector<2x16x16xf32>
    %cst_20 = arith.constant dense<0.000000e+00> : vector<2x16xf32>
    %50 = vector.multi_reduction <add>, %49, %cst_20 [2] : vector<2x16x16xf32> to vector<2x16xf32>
    %51 = vector.shape_cast %50 : vector<2x16xf32> to vector<2x16x1xf32>
    %52 = tpu.reciprocal %51 {approx = true} : vector<2x16x1xf32> -> vector<2x16x1xf32>
    %53 = vector.broadcast %52 : vector<2x16x1xf32> to vector<2x16x16xf32>
    %54 = arith.mulf %49, %53 : vector<2x16x16xf32>
    %55 = arith.truncf %54 : vector<2x16x16xf32> to vector<2x16x16xbf16>
    "tpu.trace_start"() <{level = 10 : i32, message = "hqk,hkd->hqd"}> : () -> ()
    %cst_21 = arith.constant dense<0.000000e+00> : vector<2x16x128xf32>
    %56 = tpu.matmul %55, %43, %cst_21 {dimension_numbers = #tpu.dot_dimension_numbers<[2], [1], [1], [2], [0, 0, 0, 1, 1, 2], [0], [0]>} : vector<2x16x16xbf16>, vector<2x16x128xbf16>, vector<2x16x128xf32> -> vector<2x16x128xf32>
    "tpu.trace_stop"() : () -> ()
    %57 = arith.truncf %56 : vector<2x16x128xf32> to vector<2x16x128xbf16>
    %c0_22 = arith.constant 0 : index
    %c0_23 = arith.constant 0 : index
    %c0_24 = arith.constant 0 : index
    %c0_25 = arith.constant 0 : index
    %58 = vector.load %arg8[%c0_22, %c0_23, %c0_24, %c0_25] : memref<1x2x128x256xbf16, #tpu.memory_space<vmem>>, vector<1x2x128x256xbf16>
    %59 = vector.shape_cast %58 : vector<1x2x128x256xbf16> to vector<2x128x256xbf16>
    "tpu.trace_start"() <{level = 10 : i32, message = "hqd,hde->hqe"}> : () -> ()
    %cst_26 = arith.constant dense<0.000000e+00> : vector<2x16x256xf32>
    %60 = tpu.matmul %57, %59, %cst_26 {dimension_numbers = #tpu.dot_dimension_numbers<[2], [1], [1], [2], [0, 0, 0, 1, 1, 2], [0], [0]>} : vector<2x16x128xbf16>, vector<2x128x256xbf16>, vector<2x16x256xf32> -> vector<2x16x256xf32>
    "tpu.trace_stop"() : () -> ()
    %cst_27 = arith.constant dense<0.000000e+00> : vector<16x256xf32>
    %61 = vector.multi_reduction <add>, %60, %cst_27 [0] : vector<2x16x256xf32> to vector<16x256xf32>
    %62 = arith.addf %3, %61 : vector<16x256xf32>
    %c0_28 = arith.constant 0 : index
    %c0_29 = arith.constant 0 : index
    %c0_30 = arith.constant 0 : index
    %63 = vector.load %arg9[%c0_28, %c0_29, %c0_30] : memref<1x1x256xf32, #tpu.memory_space<vmem>>, vector<1x1x256xf32>
    %64 = vector.shape_cast %63 : vector<1x1x256xf32> to vector<1x256xf32>
    %c0_31 = arith.constant 0 : index
    %c0_32 = arith.constant 0 : index
    %c0_33 = arith.constant 0 : index
    %65 = vector.load %arg10[%c0_31, %c0_32, %c0_33] : memref<1x1x256xf32, #tpu.memory_space<vmem>>, vector<1x1x256xf32>
    %66 = vector.shape_cast %65 : vector<1x1x256xf32> to vector<1x256xf32>
    %cst_34 = arith.constant dense<0.000000e+00> : vector<16xf32>
    %67 = vector.multi_reduction <add>, %62, %cst_34 [1] : vector<16x256xf32> to vector<16xf32>
    %68 = vector.shape_cast %67 : vector<16xf32> to vector<16x1xf32>
    %cst_35 = arith.constant 2.560000e+02 : f32
    %69 = vector.broadcast %cst_35 : f32 to vector<16x1xf32>
    %70 = arith.divf %68, %69 : vector<16x1xf32>
    %71 = vector.broadcast %70 : vector<16x1xf32> to vector<16x256xf32>
    %72 = arith.subf %62, %71 : vector<16x256xf32>
    %73 = arith.mulf %72, %72 : vector<16x256xf32>
    %cst_36 = arith.constant dense<0.000000e+00> : vector<16xf32>
    %74 = vector.multi_reduction <add>, %73, %cst_36 [1] : vector<16x256xf32> to vector<16xf32>
    %75 = vector.shape_cast %74 : vector<16xf32> to vector<16x1xf32>
    %cst_37 = arith.constant 2.560000e+02 : f32
    %76 = vector.broadcast %cst_37 : f32 to vector<16x1xf32>
    %77 = arith.divf %75, %76 : vector<16x1xf32>
    %78 = vector.broadcast %70 : vector<16x1xf32> to vector<16x256xf32>
    %79 = arith.subf %62, %78 : vector<16x256xf32>
    %cst_38 = arith.constant 9.99999974E-6 : f32
    %80 = vector.broadcast %cst_38 : f32 to vector<16x1xf32>
    %81 = arith.addf %77, %80 : vector<16x1xf32>
    %82 = math.rsqrt %81 : vector<16x1xf32>
    %83 = vector.broadcast %82 : vector<16x1xf32> to vector<16x256xf32>
    %84 = arith.mulf %79, %83 : vector<16x256xf32>
    %85 = vector.broadcast %64 : vector<1x256xf32> to vector<16x256xf32>
    %86 = arith.mulf %84, %85 : vector<16x256xf32>
    %87 = vector.broadcast %66 : vector<1x256xf32> to vector<16x256xf32>
    %88 = arith.addf %86, %87 : vector<16x256xf32>
    %89 = arith.truncf %88 : vector<16x256xf32> to vector<16x256xbf16>
    %c0_39 = arith.constant 0 : index
    %c0_40 = arith.constant 0 : index
    %c0_41 = arith.constant 0 : index
    %90 = vector.load %arg11[%c0_39, %c0_40, %c0_41] : memref<1x256x512xbf16, #tpu.memory_space<vmem>>, vector<1x256x512xbf16>
    %91 = vector.shape_cast %90 : vector<1x256x512xbf16> to vector<256x512xbf16>
    %cst_42 = arith.constant dense<0.000000e+00> : vector<16x512xf32>
    %92 = tpu.matmul %89, %91, %cst_42 {dimension_numbers = #tpu.dot_dimension_numbers<[1], [0], [0], [1], [0, 0, 1, 1], [], []>} : vector<16x256xbf16>, vector<256x512xbf16>, vector<16x512xf32> -> vector<16x512xf32>
    %93 = arith.truncf %92 : vector<16x512xf32> to vector<16x512xbf16>
    %c0_43 = arith.constant 0 : index
    %c0_44 = arith.constant 0 : index
    %c0_45 = arith.constant 0 : index
    %94 = vector.load %arg12[%c0_43, %c0_44, %c0_45] : memref<1x512x256xbf16, #tpu.memory_space<vmem>>, vector<1x512x256xbf16>
    %95 = vector.shape_cast %94 : vector<1x512x256xbf16> to vector<512x256xbf16>
    %cst_46 = arith.constant dense<0.000000e+00> : vector<16x256xf32>
    %96 = tpu.matmul %93, %95, %cst_46 {dimension_numbers = #tpu.dot_dimension_numbers<[1], [0], [0], [1], [0, 0, 1, 1], [], []>} : vector<16x512xbf16>, vector<512x256xbf16>, vector<16x256xf32> -> vector<16x256xf32>
    %97 = arith.addf %62, %96 : vector<16x256xf32>
    %c0_47 = arith.constant 0 : index
    %c0_48 = arith.constant 0 : index
    %98 = vector.load %arg17[%c0_47, %c0_48] : memref<16x256xf32, #tpu.memory_space<vmem>>, vector<16x256xf32>
    tpu.vector_store %arg17[%c0_47, %c0_48], %97 {strides = array<i32>} : memref<16x256xf32, #tpu.memory_space<vmem>>, vector<16x256xf32>,
    %c1_i32 = arith.constant 1 : i32
    %99 = arith.cmpi eq, %arg1, %c1_i32 : i32
    %100 = arith.extui %99 : i1 to i32
    %c0_i32_49 = arith.constant 0 : i32
    %101 = arith.cmpi ne, %100, %c0_i32_49 : i32
    scf.if %101 {
      %cst_50 = arith.constant dense<0.000000e+00> : vector<256xf32>
      %102 = vector.multi_reduction <add>, %97, %cst_50 [0] : vector<16x256xf32> to vector<256xf32>
      %103 = vector.shape_cast %102 : vector<256xf32> to vector<1x256xf32>
      %cst_51 = arith.constant 6.250000e-02 : f32
      %104 = vector.broadcast %cst_51 : f32 to vector<1x256xf32>
      %105 = arith.mulf %103, %104 : vector<1x256xf32>
      %c0_52 = arith.constant 0 : index
      %c0_53 = arith.constant 0 : index
      %106 = vector.load %arg13[%c0_52, %c0_53] : memref<1x256xf32, #tpu.memory_space<vmem>>, vector<1x256xf32>
      %c0_54 = arith.constant 0 : index
      %c0_55 = arith.constant 0 : index
      %107 = vector.load %arg14[%c0_54, %c0_55] : memref<1x256xf32, #tpu.memory_space<vmem>>, vector<1x256xf32>
      %cst_56 = arith.constant dense<0.000000e+00> : vector<1xf32>
      %108 = vector.multi_reduction <add>, %105, %cst_56 [1] : vector<1x256xf32> to vector<1xf32>
      %109 = vector.shape_cast %108 : vector<1xf32> to vector<1x1xf32>
      %cst_57 = arith.constant 2.560000e+02 : f32
      %110 = vector.broadcast %cst_57 : f32 to vector<1x1xf32>
      %111 = arith.divf %109, %110 : vector<1x1xf32>
      %112 = vector.broadcast %111 : vector<1x1xf32> to vector<1x256xf32>
      %113 = arith.subf %105, %112 : vector<1x256xf32>
      %114 = arith.mulf %113, %113 : vector<1x256xf32>
      %cst_58 = arith.constant dense<0.000000e+00> : vector<1xf32>
      %115 = vector.multi_reduction <add>, %114, %cst_58 [1] : vector<1x256xf32> to vector<1xf32>
      %116 = vector.shape_cast %115 : vector<1xf32> to vector<1x1xf32>
      %cst_59 = arith.constant 2.560000e+02 : f32
      %117 = vector.broadcast %cst_59 : f32 to vector<1x1xf32>
      %118 = arith.divf %116, %117 : vector<1x1xf32>
      %119 = vector.broadcast %111 : vector<1x1xf32> to vector<1x256xf32>
      %120 = arith.subf %105, %119 : vector<1x256xf32>
      %cst_60 = arith.constant 9.99999974E-6 : f32
      %121 = vector.broadcast %cst_60 : f32 to vector<1x1xf32>
      %122 = arith.addf %118, %121 : vector<1x1xf32>
      %123 = math.rsqrt %122 : vector<1x1xf32>
      %124 = vector.broadcast %123 : vector<1x1xf32> to vector<1x256xf32>
      %125 = arith.mulf %120, %124 : vector<1x256xf32>
      %126 = arith.mulf %125, %106 : vector<1x256xf32>
      %127 = arith.addf %126, %107 : vector<1x256xf32>
      %128 = arith.truncf %127 : vector<1x256xf32> to vector<1x256xbf16>
      %c0_61 = arith.constant 0 : index
      %c0_62 = arith.constant 0 : index
      %129 = vector.load %arg15[%c0_61, %c0_62] : memref<256x128xbf16, #tpu.memory_space<vmem>>, vector<256x128xbf16>
      %cst_63 = arith.constant dense<0.000000e+00> : vector<1x128xf32>
      %130 = tpu.matmul %128, %129, %cst_63 {dimension_numbers = #tpu.dot_dimension_numbers<[1], [0], [0], [1], [0, 0, 1, 1], [], []>} : vector<1x256xbf16>, vector<256x128xbf16>, vector<1x128xf32> -> vector<1x128xf32>
      %cst_64 = arith.constant -2.19722462 : f32
      %131 = vector.broadcast %cst_64 : f32 to vector<1x128xf32>
      %132 = arith.addf %130, %131 : vector<1x128xf32>
      %c0_65 = arith.constant 0 : index
      %c0_66 = arith.constant 0 : index
      %c0_67 = arith.constant 0 : index
      %133 = vector.load %arg16[%c0_65, %c0_66, %c0_67] : memref<1x1x128xf32, #tpu.memory_space<vmem>>, vector<1x1x128xf32>
      %134 = vector.shape_cast %133 : vector<1x1x128xf32> to vector<1x128xf32>
      %135 = vector.shape_cast %132 : vector<1x128xf32> to vector<1x1x128xf32>
      tpu.vector_store %arg16[%c0_65, %c0_66, %c0_67], %135 {strides = array<i32>} : memref<1x1x128xf32, #tpu.memory_space<vmem>>, vector<1x1x128xf32>,
    } else {
    }
    return
  }
  func.func @transform_0(%arg0: i32, %arg1: i32) -> (i32, i32, i32) {
    %c0_i32 = arith.constant 0 : i32
    %c0_i32_0 = arith.constant 0 : i32
    %c0_i32_1 = arith.constant 0 : i32
    return %arg0, %c0_i32, %c0_i32_0 : i32, i32, i32
  }
  func.func @transform_1(%arg0: i32, %arg1: i32) -> (i32, i32) {
    %c0_i32 = arith.constant 0 : i32
    %c0_i32_0 = arith.constant 0 : i32
    %c0_i32_1 = arith.constant 0 : i32
    return %c0_i32, %c0_i32_0 : i32, i32
  }
  func.func @transform_2(%arg0: i32, %arg1: i32) -> (i32, i32) {
    %c0_i32 = arith.constant 0 : i32
    %c0_i32_0 = arith.constant 0 : i32
    %c0_i32_1 = arith.constant 0 : i32
    return %c0_i32, %c0_i32_0 : i32, i32
  }
  func.func @transform_3(%arg0: i32, %arg1: i32) -> (i32, i32, i32) {
    %c0_i32 = arith.constant 0 : i32
    %c0_i32_0 = arith.constant 0 : i32
    %c0_i32_1 = arith.constant 0 : i32
    return %arg1, %c0_i32, %c0_i32_0 : i32, i32, i32
  }
  func.func @transform_4(%arg0: i32, %arg1: i32) -> (i32, i32, i32) {
    %c0_i32 = arith.constant 0 : i32
    %c0_i32_0 = arith.constant 0 : i32
    %c0_i32_1 = arith.constant 0 : i32
    return %arg1, %c0_i32, %c0_i32_0 : i32, i32, i32
  }
  func.func @transform_5(%arg0: i32, %arg1: i32) -> (i32, i32, i32, i32) {
    %c0_i32 = arith.constant 0 : i32
    %c0_i32_0 = arith.constant 0 : i32
    %c0_i32_1 = arith.constant 0 : i32
    %c0_i32_2 = arith.constant 0 : i32
    return %arg1, %c0_i32, %c0_i32_0, %c0_i32_1 : i32, i32, i32, i32
  }
  func.func @transform_6(%arg0: i32, %arg1: i32) -> (i32, i32, i32, i32) {
    %c0_i32 = arith.constant 0 : i32
    %c0_i32_0 = arith.constant 0 : i32
    %c0_i32_1 = arith.constant 0 : i32
    %c0_i32_2 = arith.constant 0 : i32
    return %arg1, %c0_i32, %c0_i32_0, %c0_i32_1 : i32, i32, i32, i32
  }
  func.func @transform_7(%arg0: i32, %arg1: i32) -> (i32, i32, i32) {
    %c0_i32 = arith.constant 0 : i32
    %c0_i32_0 = arith.constant 0 : i32
    %c0_i32_1 = arith.constant 0 : i32
    return %arg1, %c0_i32, %c0_i32_0 : i32, i32, i32
  }
  func.func @transform_8(%arg0: i32, %arg1: i32) -> (i32, i32, i32) {
    %c0_i32 = arith.constant 0 : i32
    %c0_i32_0 = arith.constant 0 : i32
    %c0_i32_1 = arith.constant 0 : i32
    return %arg1, %c0_i32, %c0_i32_0 : i32, i32, i32
  }
  func.func @transform_9(%arg0: i32, %arg1: i32) -> (i32, i32, i32) {
    %c0_i32 = arith.constant 0 : i32
    %c0_i32_0 = arith.constant 0 : i32
    %c0_i32_1 = arith.constant 0 : i32
    return %arg1, %c0_i32, %c0_i32_0 : i32, i32, i32
  }
  func.func @transform_10(%arg0: i32, %arg1: i32) -> (i32, i32, i32) {
    %c0_i32 = arith.constant 0 : i32
    %c0_i32_0 = arith.constant 0 : i32
    %c0_i32_1 = arith.constant 0 : i32
    return %arg1, %c0_i32, %c0_i32_0 : i32, i32, i32
  }
  func.func @transform_11(%arg0: i32, %arg1: i32) -> (i32, i32) {
    %c0_i32 = arith.constant 0 : i32
    %c0_i32_0 = arith.constant 0 : i32
    %c0_i32_1 = arith.constant 0 : i32
    return %c0_i32, %c0_i32_0 : i32, i32
  }
  func.func @transform_12(%arg0: i32, %arg1: i32) -> (i32, i32) {
    %c0_i32 = arith.constant 0 : i32
    %c0_i32_0 = arith.constant 0 : i32
    %c0_i32_1 = arith.constant 0 : i32
    return %c0_i32, %c0_i32_0 : i32, i32
  }
  func.func @transform_13(%arg0: i32, %arg1: i32) -> (i32, i32) {
    %c0_i32 = arith.constant 0 : i32
    %c0_i32_0 = arith.constant 0 : i32
    %c0_i32_1 = arith.constant 0 : i32
    return %c0_i32, %c0_i32_0 : i32, i32
  }
  func.func @transform_14(%arg0: i32, %arg1: i32) -> (i32, i32, i32) {
    %c0_i32 = arith.constant 0 : i32
    %c0_i32_0 = arith.constant 0 : i32
    %c0_i32_1 = arith.constant 0 : i32
    return %arg0, %c0_i32, %c0_i32_0 : i32, i32, i32
  }
}

</mosaic_0001>

<llo_original>
// kernel: simple_vit_forward.1
$region0: #{simple_vit_forward.1}
  #allocation0 [shape = 'u32[]', space=smem, size = 0x4, offset = 0x4, fixed_abs, tag = 'smem constant byte address 0x4 - core index']
  #allocation1 [shape = 'u32[144,128]{1,0:T(1,128)}', space=vmem, size = 0x12000, scoped, tag = 'internal scratch']
  #allocation2 [shape = 'f32[16,256]{1,0:T(8,128)}', space=vmem, size = 0x4000, scoped, tag = 'scratch operand']
  %s0 = inlined_call_operand.vmem [shape: bf16[2,16,64], index: 0, kind: input, shape index: {}]
  %s1 = inlined_call_operand.vmem [shape: f32[16,256], index: 1, kind: input, shape index: {}]
  %s2 = inlined_call_operand.vmem [shape: bf16[64,256], index: 2, kind: input, shape index: {}]
  %s3 = inlined_call_operand.vmem [shape: f32[2,1,256], index: 3, kind: input, shape index: {}]
  %s4 = inlined_call_operand.vmem [shape: f32[2,1,256], index: 4, kind: input, shape index: {}]
  %s5 = inlined_call_operand.vmem [shape: bf16[2,2,256,384], index: 5, kind: input, shape index: {}]
  %s6 = inlined_call_operand.hbm [shape: bf16[2,2,128,256], index: 6, kind: input, shape index: {}]
  %s7 = inlined_call_operand.vmem [shape: f32[2,1,256], index: 7, kind: input, shape index: {}]
  %s8 = inlined_call_operand.vmem [shape: f32[2,1,256], index: 8, kind: input, shape index: {}]
  %s9 = inlined_call_operand.hbm [shape: bf16[2,256,512], index: 9, kind: input, shape index: {}]
  %s10 = inlined_call_operand.hbm [shape: bf16[2,512,256], index: 10, kind: input, shape index: {}]
  %s11 = inlined_call_operand.vmem [shape: f32[1,256], index: 11, kind: input, shape index: {}]
  %s12 = inlined_call_operand.vmem [shape: f32[1,256], index: 12, kind: input, shape index: {}]
  %s13 = inlined_call_operand.vmem [shape: bf16[256,128], index: 13, kind: input, shape index: {}]
  %s14 = inlined_call_operand.hbm [shape: f32[2,1,128], index: 14, kind: output, shape index: {}]
  %s15 = sld [smem:[#allocation0]]
  $region109: #{simple_vit_forward.1} parent=0
    _
  %s17 = ssub.s32 1, %s15
  %s18 = scalar_select 0, %s17, %s15
  $region1: #{simple_vit_forward.1} parent=0
    #allocation3 [shape = 'u8[262144]{0}', space=vmem, size = 0x40000, scoped, tag = 'input window, operand 6']
    #allocation4 [shape = 's32[2]{0}', space=sflag, size = 0x8, scoped, tag = 'scoped memory for simple_vit_forward.1']
    #allocation5 [shape = 's32[2]{0}', space=sflag, size = 0x8, scoped, tag = 'scoped memory for simple_vit_forward.1']
    #allocation6 [shape = 'u8[524288]{0}', space=vmem, size = 0x80000, scoped, tag = 'input window, operand 9']
    #allocation7 [shape = 's32[2]{0}', space=sflag, size = 0x8, scoped, tag = 'scoped memory for simple_vit_forward.1']
    #allocation8 [shape = 'u8[524288]{0}', space=vmem, size = 0x80000, scoped, tag = 'input window, operand 10']
    #allocation9 [shape = 'u8[1024]{0}', space=vmem, size = 0x400, scoped, tag = 'output window, operand 0']
    %19 = vsyncpa [#allocation4], 0
    %s20 = scalar_lea.sflag [#allocation4], 1
    %21 = vsyncpa %s20, 0
    %22 = vsyncpa [#allocation7], 0
    %s23 = scalar_lea.sflag [#allocation7], 1
    %24 = vsyncpa %s23, 0
    %25 = vsyncpa [#allocation5], 0
    %s26 = scalar_lea.sflag [#allocation5], 1
    %27 = vsyncpa %s26, 0
    loop: start=0, step=1, limit=6
    $region2: #{simple_vit_forward.1} parent=1 // loop_pre_header
      _
    $region3: #{simple_vit_forward.1} parent=1 // loop_header
      %s29 = sphi 0, %s33
      %p30 = scmp.ge.s32.totalorder %s29, 6
      %s36 = sphi 0, %s48
      %s37 = sphi 0, %s44
      %s38 = sphi 0, %s36
      %s39 = sphi 0, %s37
      %s40 = sphi 0, %s38
      %s41 = sphi 0, %s39
      %s51 = sphi 0, %s53
      %s54 = sphi 0, %s51
      %s55 = sphi 0, %s54
      %s71 = sphi 0, %s55
      %s75 = sphi 0, %s75
      %s77 = sphi 0, %s75
      %s78 = sphi 0, %s77
      %s92 = sphi 0, %s78
      %s96 = sphi 0, %s96
      %s98 = sphi 0, %s96
      %s99 = sphi 0, %s98
      %s113 = sphi 0, %s99
      %s119 = sphi 0, %s121
      %s122 = sphi 0, %s119
      %s123 = sphi 0, %s122
      %s139 = sphi 0, %s123
      %s145 = sphi 0, %s147
      %s148 = sphi 0, %s145
      %s149 = sphi 0, %s148
      %s165 = sphi 0, %s149
      %s171 = sphi 0, %s173
      %s174 = sphi 0, %s171
      %s175 = sphi 0, %s174
      %s191 = sphi 0, %s175
      %s197 = sphi 0, %s199
      %s200 = sphi 0, %s197
      %s201 = sphi 0, %s200
      %s217 = sphi 0, %s201
      %s223 = sphi 0, %s225
      %s226 = sphi 0, %s223
      %s227 = sphi 0, %s226
      %s243 = sphi 0, %s227
      %s249 = sphi 0, %s251
      %s252 = sphi 0, %s249
      %s253 = sphi 0, %s252
      %s269 = sphi 0, %s253
      %s275 = sphi 0, %s277
      %s278 = sphi 0, %s275
      %s279 = sphi 0, %s278
      %s295 = sphi 0, %s279
      %s301 = sphi 0, %s303
      %s304 = sphi 0, %s301
      %s305 = sphi 0, %s304
      %s321 = sphi 0, %s305
      %s325 = sphi 0, %s325
      %s327 = sphi 0, %s325
      %s328 = sphi 0, %s327
      %s342 = sphi 0, %s328
      %s346 = sphi 0, %s346
      %s348 = sphi 0, %s346
      %s349 = sphi 0, %s348
      %s363 = sphi 0, %s349
      %s367 = sphi 0, %s367
      %s369 = sphi 0, %s367
      %s370 = sphi 0, %s369
      %s384 = sphi 0, %s370
      %s390 = sphi 0, %s392
      %s393 = sphi 0, %s390
      %s394 = sphi 0, %s393
      %s410 = sphi 0, %s394
    $region4: #{simple_vit_forward.1} parent=1 // loop_header_branch
      %32 = sbr.rel (%p30) target = $region8
    $region5: #{simple_vit_forward.1} parent=1 // loop_body
      %s34 = ssub.s32 %s29, 1
      %s35 = ssub.s32 %s29, 2
      %s42 = sadd.s32 1, %s37
      %p43 = scmp.ge.s32.totalorder %s42, 2
      %s44 = scalar_select %p43, 0, %s42
      %s45 = sadd.s32 1, %s36
      %s46 = scalar_select %p43, %s45, %s36
      %p47 = scmp.ge.s32.totalorder %s46, 2
      %s48 = scalar_select %p47, 0, %s46
      %s49 = ssub.s32 %s36, %s48
      %p50 = scmp.eq.s32.totalorder %s49, 0
      %s52 = sadd.s32 %s51, 1
      %s53 = scalar_select %p50, %s51, %s52
      %p56 = pneg %p50
      %p57 = scmp.eq.s32.totalorder %s29, 3
      %p58 = por %p56, %p57
      %p59 = scmp.ne.s32.totalorder %s51, %s54
      %p60 = scmp.eq.s32.totalorder %s29, 0
      %p61 = por %p59, %p60
      %p62 = scmp.ne.s32.totalorder %s51, %s54
      %p63 = scmp.eq.s32.totalorder %s34, 3
      %p64 = por %p62, %p63
      %p65 = scmp.ne.s32.totalorder %s54, %s55
      %p66 = scmp.eq.s32.totalorder %s34, 0
      %p67 = por %p65, %p66
      %p68 = scmp.ne.s32.totalorder %s54, %s55
      %p69 = scmp.eq.s32.totalorder %s35, 3
      %p70 = por %p68, %p69
      %p72 = scmp.ne.s32.totalorder %s55, %s71
      %p73 = scmp.eq.s32.totalorder %s35, 0
      %p74 = por %p72, %p73
      %s76 = sadd.s32 %s75, 1
      %p79 = scmp.eq.s32.totalorder %s29, 3
      %p80 = scmp.ne.s32.totalorder %s75, %s77
      %p81 = scmp.eq.s32.totalorder %s29, 0
      %p82 = por %p80, %p81
      %p83 = scmp.ne.s32.totalorder %s75, %s77
      %p84 = scmp.eq.s32.totalorder %s34, 3
      %p85 = por %p83, %p84
      %p86 = scmp.ne.s32.totalorder %s77, %s78
      %p87 = scmp.eq.s32.totalorder %s34, 0
      %p88 = por %p86, %p87
      %p89 = scmp.ne.s32.totalorder %s77, %s78
      %p90 = scmp.eq.s32.totalorder %s35, 3
      %p91 = por %p89, %p90
      %p93 = scmp.ne.s32.totalorder %s78, %s92
      %p94 = scmp.eq.s32.totalorder %s35, 0
      %p95 = por %p93, %p94
      %s97 = sadd.s32 %s96, 1
      %p100 = scmp.eq.s32.totalorder %s29, 3
      %p101 = scmp.ne.s32.totalorder %s96, %s98
      %p102 = scmp.eq.s32.totalorder %s29, 0
      %p103 = por %p101, %p102
      %p104 = scmp.ne.s32.totalorder %s96, %s98
      %p105 = scmp.eq.s32.totalorder %s34, 3
      %p106 = por %p104, %p105
      %p107 = scmp.ne.s32.totalorder %s98, %s99
      %p108 = scmp.eq.s32.totalorder %s34, 0
      %p109 = por %p107, %p108
      %p110 = scmp.ne.s32.totalorder %s98, %s99
      %p111 = scmp.eq.s32.totalorder %s35, 3
      %p112 = por %p110, %p111
      %p114 = scmp.ne.s32.totalorder %s99, %s113
      %p115 = scmp.eq.s32.totalorder %s35, 0
      %p116 = por %p114, %p115
      %s117 = ssub.s32 %s37, %s44
      %p118 = scmp.eq.s32.totalorder %s117, 0
      %s120 = sadd.s32 %s119, 1
      %s121 = scalar_select %p118, %s119, %s120
      %p124 = pneg %p118
      %p125 = scmp.eq.s32.totalorder %s29, 3
      %p126 = por %p124, %p125
      %p127 = scmp.ne.s32.totalorder %s119, %s122
      %p128 = scmp.eq.s32.totalorder %s29, 0
      %p129 = por %p127, %p128
      %p130 = scmp.ne.s32.totalorder %s119, %s122
      %p131 = scmp.eq.s32.totalorder %s34, 3
      %p132 = por %p130, %p131
      %p133 = scmp.ne.s32.totalorder %s122, %s123
      %p134 = scmp.eq.s32.totalorder %s34, 0
      %p135 = por %p133, %p134
      %p136 = scmp.ne.s32.totalorder %s122, %s123
      %p137 = scmp.eq.s32.totalorder %s35, 3
      %p138 = por %p136, %p137
      %p140 = scmp.ne.s32.totalorder %s123, %s139
      %p141 = scmp.eq.s32.totalorder %s35, 0
      %p142 = por %p140, %p141
      %s143 = ssub.s32 %s37, %s44
      %p144 = scmp.eq.s32.totalorder %s143, 0
      %s146 = sadd.s32 %s145, 1
      %s147 = scalar_select %p144, %s145, %s146
      %p150 = pneg %p144
      %p151 = scmp.eq.s32.totalorder %s29, 3
      %p152 = por %p150, %p151
      %p153 = scmp.ne.s32.totalorder %s145, %s148
      %p154 = scmp.eq.s32.totalorder %s29, 0
      %p155 = por %p153, %p154
      %p156 = scmp.ne.s32.totalorder %s145, %s148
      %p157 = scmp.eq.s32.totalorder %s34, 3
      %p158 = por %p156, %p157
      %p159 = scmp.ne.s32.totalorder %s148, %s149
      %p160 = scmp.eq.s32.totalorder %s34, 0
      %p161 = por %p159, %p160
      %p162 = scmp.ne.s32.totalorder %s148, %s149
      %p163 = scmp.eq.s32.totalorder %s35, 3
      %p164 = por %p162, %p163
      %p166 = scmp.ne.s32.totalorder %s149, %s165
      %p167 = scmp.eq.s32.totalorder %s35, 0
      %p168 = por %p166, %p167
      %s169 = ssub.s32 %s37, %s44
      %p170 = scmp.eq.s32.totalorder %s169, 0
      %s172 = sadd.s32 %s171, 1
      %s173 = scalar_select %p170, %s171, %s172
      %p176 = pneg %p170
      %p177 = scmp.eq.s32.totalorder %s29, 3
      %p178 = por %p176, %p177
      %p179 = scmp.ne.s32.totalorder %s171, %s174
      %p180 = scmp.eq.s32.totalorder %s29, 0
      %p181 = por %p179, %p180
      %p182 = scmp.ne.s32.totalorder %s171, %s174
      %p183 = scmp.eq.s32.totalorder %s34, 3
      %p184 = por %p182, %p183
      %p185 = scmp.ne.s32.totalorder %s174, %s175
      %p186 = scmp.eq.s32.totalorder %s34, 0
      %p187 = por %p185, %p186
      %p188 = scmp.ne.s32.totalorder %s174, %s175
      %p189 = scmp.eq.s32.totalorder %s35, 3
      %p190 = por %p188, %p189
      %p192 = scmp.ne.s32.totalorder %s175, %s191
      %p193 = scmp.eq.s32.totalorder %s35, 0
      %p194 = por %p192, %p193
      %s195 = ssub.s32 %s37, %s44
      %p196 = scmp.eq.s32.totalorder %s195, 0
      %s198 = sadd.s32 %s197, 1
      %s199 = scalar_select %p196, %s197, %s198
      %p202 = pneg %p196
      %p203 = scmp.eq.s32.totalorder %s29, 3
      %p204 = por %p202, %p203
      %p205 = scmp.ne.s32.totalorder %s197, %s200
      %p206 = scmp.eq.s32.totalorder %s29, 0
      %p207 = por %p205, %p206
      %p208 = scmp.ne.s32.totalorder %s197, %s200
      %p209 = scmp.eq.s32.totalorder %s34, 3
      %p210 = por %p208, %p209
      %p211 = scmp.ne.s32.totalorder %s200, %s201
      %p212 = scmp.eq.s32.totalorder %s34, 0
      %p213 = por %p211, %p212
      %p214 = scmp.ne.s32.totalorder %s200, %s201
      %p215 = scmp.eq.s32.totalorder %s35, 3
      %p216 = por %p214, %p215
      %p218 = scmp.ne.s32.totalorder %s201, %s217
      %p219 = scmp.eq.s32.totalorder %s35, 0
      %p220 = por %p218, %p219
      %s221 = ssub.s32 %s37, %s44
      %p222 = scmp.eq.s32.totalorder %s221, 0
      %s224 = sadd.s32 %s223, 1
      %s225 = scalar_select %p222, %s223, %s224
      %p228 = pneg %p222
      %p229 = scmp.eq.s32.totalorder %s29, 3
      %p230 = por %p228, %p229
      %p231 = scmp.ne.s32.totalorder %s223, %s226
      %p232 = scmp.eq.s32.totalorder %s29, 0
      %p233 = por %p231, %p232
      %p234 = scmp.ne.s32.totalorder %s223, %s226
      %p235 = scmp.eq.s32.totalorder %s34, 3
      %p236 = por %p234, %p235
      %p237 = scmp.ne.s32.totalorder %s226, %s227
      %p238 = scmp.eq.s32.totalorder %s34, 0
      %p239 = por %p237, %p238
      %p240 = scmp.ne.s32.totalorder %s226, %s227
      %p241 = scmp.eq.s32.totalorder %s35, 3
      %p242 = por %p240, %p241
      %p244 = scmp.ne.s32.totalorder %s227, %s243
      %p245 = scmp.eq.s32.totalorder %s35, 0
      %p246 = por %p244, %p245
      %s247 = ssub.s32 %s37, %s44
      %p248 = scmp.eq.s32.totalorder %s247, 0
      %s250 = sadd.s32 %s249, 1
      %s251 = scalar_select %p248, %s249, %s250
      %p254 = pneg %p248
      %p255 = scmp.eq.s32.totalorder %s29, 3
      %p256 = por %p254, %p255
      %p257 = scmp.ne.s32.totalorder %s249, %s252
      %p258 = scmp.eq.s32.totalorder %s29, 0
      %p259 = por %p257, %p258
      %p260 = scmp.ne.s32.totalorder %s249, %s252
      %p261 = scmp.eq.s32.totalorder %s34, 3
      %p262 = por %p260, %p261
      %p263 = scmp.ne.s32.totalorder %s252, %s253
      %p264 = scmp.eq.s32.totalorder %s34, 0
      %p265 = por %p263, %p264
      %p266 = scmp.ne.s32.totalorder %s252, %s253
      %p267 = scmp.eq.s32.totalorder %s35, 3
      %p268 = por %p266, %p267
      %p270 = scmp.ne.s32.totalorder %s253, %s269
      %p271 = scmp.eq.s32.totalorder %s35, 0
      %p272 = por %p270, %p271
      %s273 = ssub.s32 %s37, %s44
      %p274 = scmp.eq.s32.totalorder %s273, 0
      %s276 = sadd.s32 %s275, 1
      %s277 = scalar_select %p274, %s275, %s276
      %p280 = pneg %p274
      %p281 = scmp.eq.s32.totalorder %s29, 3
      %p282 = por %p280, %p281
      %p283 = scmp.ne.s32.totalorder %s275, %s278
      %p284 = scmp.eq.s32.totalorder %s29, 0
      %p285 = por %p283, %p284
      %p286 = scmp.ne.s32.totalorder %s275, %s278
      %p287 = scmp.eq.s32.totalorder %s34, 3
      %p288 = por %p286, %p287
      %p289 = scmp.ne.s32.totalorder %s278, %s279
      %p290 = scmp.eq.s32.totalorder %s34, 0
      %p291 = por %p289, %p290
      %p292 = scmp.ne.s32.totalorder %s278, %s279
      %p293 = scmp.eq.s32.totalorder %s35, 3
      %p294 = por %p292, %p293
      %p296 = scmp.ne.s32.totalorder %s279, %s295
      %p297 = scmp.eq.s32.totalorder %s35, 0
      %p298 = por %p296, %p297
      %s299 = ssub.s32 %s37, %s44
      %p300 = scmp.eq.s32.totalorder %s299, 0
      %s302 = sadd.s32 %s301, 1
      %s303 = scalar_select %p300, %s301, %s302
      %p306 = pneg %p300
      %p307 = scmp.eq.s32.totalorder %s29, 3
      %p308 = por %p306, %p307
      %p309 = scmp.ne.s32.totalorder %s301, %s304
      %p310 = scmp.eq.s32.totalorder %s29, 0
      %p311 = por %p309, %p310
      %p312 = scmp.ne.s32.totalorder %s301, %s304
      %p313 = scmp.eq.s32.totalorder %s34, 3
      %p314 = por %p312, %p313
      %p315 = scmp.ne.s32.totalorder %s304, %s305
      %p316 = scmp.eq.s32.totalorder %s34, 0
      %p317 = por %p315, %p316
      %p318 = scmp.ne.s32.totalorder %s304, %s305
      %p319 = scmp.eq.s32.totalorder %s35, 3
      %p320 = por %p318, %p319
      %p322 = scmp.ne.s32.totalorder %s305, %s321
      %p323 = scmp.eq.s32.totalorder %s35, 0
      %p324 = por %p322, %p323
      %s326 = sadd.s32 %s325, 1
      %p329 = scmp.eq.s32.totalorder %s29, 3
      %p330 = scmp.ne.s32.totalorder %s325, %s327
      %p331 = scmp.eq.s32.totalorder %s29, 0
      %p332 = por %p330, %p331
      %p333 = scmp.ne.s32.totalorder %s325, %s327
      %p334 = scmp.eq.s32.totalorder %s34, 3
      %p335 = por %p333, %p334
      %p336 = scmp.ne.s32.totalorder %s327, %s328
      %p337 = scmp.eq.s32.totalorder %s34, 0
      %p338 = por %p336, %p337
      %p339 = scmp.ne.s32.totalorder %s327, %s328
      %p340 = scmp.eq.s32.totalorder %s35, 3
      %p341 = por %p339, %p340
      %p343 = scmp.ne.s32.totalorder %s328, %s342
      %p344 = scmp.eq.s32.totalorder %s35, 0
      %p345 = por %p343, %p344
      %s347 = sadd.s32 %s346, 1
      %p350 = scmp.eq.s32.totalorder %s29, 3
      %p351 = scmp.ne.s32.totalorder %s346, %s348
      %p352 = scmp.eq.s32.totalorder %s29, 0
      %p353 = por %p351, %p352
      %p354 = scmp.ne.s32.totalorder %s346, %s348
      %p355 = scmp.eq.s32.totalorder %s34, 3
      %p356 = por %p354, %p355
      %p357 = scmp.ne.s32.totalorder %s348, %s349
      %p358 = scmp.eq.s32.totalorder %s34, 0
      %p359 = por %p357, %p358
      %p360 = scmp.ne.s32.totalorder %s348, %s349
      %p361 = scmp.eq.s32.totalorder %s35, 3
      %p362 = por %p360, %p361
      %p364 = scmp.ne.s32.totalorder %s349, %s363
      %p365 = scmp.eq.s32.totalorder %s35, 0
      %p366 = por %p364, %p365
      %s368 = sadd.s32 %s367, 1
      %p371 = scmp.eq.s32.totalorder %s29, 3
      %p372 = scmp.ne.s32.totalorder %s367, %s369
      %p373 = scmp.eq.s32.totalorder %s29, 0
      %p374 = por %p372, %p373
      %p375 = scmp.ne.s32.totalorder %s367, %s369
      %p376 = scmp.eq.s32.totalorder %s34, 3
      %p377 = por %p375, %p376
      %p378 = scmp.ne.s32.totalorder %s369, %s370
      %p379 = scmp.eq.s32.totalorder %s34, 0
      %p380 = por %p378, %p379
      %p381 = scmp.ne.s32.totalorder %s369, %s370
      %p382 = scmp.eq.s32.totalorder %s35, 3
      %p383 = por %p381, %p382
      %p385 = scmp.ne.s32.totalorder %s370, %s384
      %p386 = scmp.eq.s32.totalorder %s35, 0
      %p387 = por %p385, %p386
      %s388 = ssub.s32 %s36, %s48
      %p389 = scmp.eq.s32.totalorder %s388, 0
      %s391 = sadd.s32 %s390, 1
      %s392 = scalar_select %p389, %s390, %s391
      %p395 = pneg %p389
      %p396 = scmp.eq.s32.totalorder %s29, 3
      %p397 = por %p395, %p396
      %p398 = scmp.ne.s32.totalorder %s390, %s393
      %p399 = scmp.eq.s32.totalorder %s29, 0
      %p400 = por %p398, %p399
      %p401 = scmp.ne.s32.totalorder %s390, %s393
      %p402 = scmp.eq.s32.totalorder %s34, 3
      %p403 = por %p401, %p402
      %p404 = scmp.ne.s32.totalorder %s393, %s394
      %p405 = scmp.eq.s32.totalorder %s34, 0
      %p406 = por %p404, %p405
      %p407 = scmp.ne.s32.totalorder %s393, %s394
      %p408 = scmp.eq.s32.totalorder %s35, 3
      %p409 = por %p407, %p408
      %p411 = scmp.ne.s32.totalorder %s394, %s410
      %p412 = scmp.eq.s32.totalorder %s35, 0
      %p413 = por %p411, %p412
      %p414 = scmp.le.s32.totalorder 1, %s29
      %p415 = scmp.lt.s32.totalorder %s29, 5
      %p416 = pnand %p414, %p415
      %p417 = pneg %p416
      // Predicated region
      $region9: #{simple_vit_forward.1} parent=5 // pred_check
        _
      $region10: #{simple_vit_forward.1} parent=5 // pred_check_branch
        %419 = sbr.rel (%p416) target = $region12
      $region11: #{simple_vit_forward.1} parent=5 // pred_region
        %s420 = ssub.s32 %s29, 1
        // Predicated region
        $region13: #{simple_vit_forward.1} parent=11 // pred_check
          %p421 = pneg %p88
        $region14: #{simple_vit_forward.1} parent=11 // pred_check_branch
          %423 = sbr.rel (%p421) target = $region16
        $region15: #{simple_vit_forward.1} parent=11 // pred_region
          _
        $region16: #{simple_vit_forward.1} parent=11 // pred_fallthru
          _
        // Predicated region
        $region17: #{simple_vit_forward.1} parent=11 // pred_check
          %p424 = pneg %p109
        $region18: #{simple_vit_forward.1} parent=11 // pred_check_branch
          %426 = sbr.rel (%p424) target = $region20
        $region19: #{simple_vit_forward.1} parent=11 // pred_region
          _
        $region20: #{simple_vit_forward.1} parent=11 // pred_fallthru
          _
        // Predicated region
        $region21: #{simple_vit_forward.1} parent=11 // pred_check
          %p427 = pneg %p338
        $region22: #{simple_vit_forward.1} parent=11 // pred_check_branch
          %429 = sbr.rel (%p427) target = $region24
        $region23: #{simple_vit_forward.1} parent=11 // pred_region
          _
        $region24: #{simple_vit_forward.1} parent=11 // pred_fallthru
          _
        // Predicated region
        $region25: #{simple_vit_forward.1} parent=11 // pred_check
          %p430 = pneg %p359
        $region26: #{simple_vit_forward.1} parent=11 // pred_check_branch
          %432 = sbr.rel (%p430) target = $region28
        $region27: #{simple_vit_forward.1} parent=11 // pred_region
          _
        $region28: #{simple_vit_forward.1} parent=11 // pred_fallthru
          _
        // Predicated region
        $region29: #{simple_vit_forward.1} parent=11 // pred_check
          %p433 = pneg %p380
        $region30: #{simple_vit_forward.1} parent=11 // pred_check_branch
          %435 = sbr.rel (%p433) target = $region32
        $region31: #{simple_vit_forward.1} parent=11 // pred_region
          _
        $region32: #{simple_vit_forward.1} parent=11 // pred_fallthru
          _
      $region12: #{simple_vit_forward.1} parent=5 // pred_fallthru
        _
      %p436 = scmp.lt.s32.totalorder %s29, 4
      // Predicated region
      $region33: #{simple_vit_forward.1} parent=5 // pred_check
        %p437 = pneg %p436
      $region34: #{simple_vit_forward.1} parent=5 // pred_check_branch
        %439 = sbr.rel (%p437) target = $region36
      $region35: #{simple_vit_forward.1} parent=5 // pred_region
        // Predicated region
        $region37: #{simple_vit_forward.1} parent=35 // pred_check
          %p440 = pneg %p61
        $region38: #{simple_vit_forward.1} parent=35 // pred_check_branch
          %442 = sbr.rel (%p440) target = $region40
        $region39: #{simple_vit_forward.1} parent=35 // pred_region
          %p443 = scmp.lt.s32.totalorder %s36, 1
          %s444 = scalar_select %p443, %s36, 1
          %s445 = smul.addr %s444, 2
          %s446 = smul.addr %s445, 4
          %s447 = scalar_lea.vmem %s0, %s446
        $region40: #{simple_vit_forward.1} parent=35 // pred_fallthru
          _
        // Predicated region
        $region41: #{simple_vit_forward.1} parent=35 // pred_check
          %p448 = pneg %p129
        $region42: #{simple_vit_forward.1} parent=35 // pred_check_branch
          %450 = sbr.rel (%p448) target = $region44
        $region43: #{simple_vit_forward.1} parent=35 // pred_region
          %p451 = scmp.lt.s32.totalorder %s37, 1
          %s452 = scalar_select %p451, %s37, 1
          %s453 = smul.addr %s452, 2
          %s454 = scalar_lea.vmem %s3, %s453
        $region44: #{simple_vit_forward.1} parent=35 // pred_fallthru
          _
        // Predicated region
        $region45: #{simple_vit_forward.1} parent=35 // pred_check
          %p455 = pneg %p155
        $region46: #{simple_vit_forward.1} parent=35 // pred_check_branch
          %457 = sbr.rel (%p455) target = $region48
        $region47: #{simple_vit_forward.1} parent=35 // pred_region
          %p458 = scmp.lt.s32.totalorder %s37, 1
          %s459 = scalar_select %p458, %s37, 1
          %s460 = smul.addr %s459, 2
          %s461 = scalar_lea.vmem %s4, %s460
        $region48: #{simple_vit_forward.1} parent=35 // pred_fallthru
          _
        // Predicated region
        $region49: #{simple_vit_forward.1} parent=35 // pred_check
          %p462 = pneg %p181
        $region50: #{simple_vit_forward.1} parent=35 // pred_check_branch
          %464 = sbr.rel (%p462) target = $region52
        $region51: #{simple_vit_forward.1} parent=35 // pred_region
          %p465 = scmp.lt.s32.totalorder %s37, 1
          %s466 = scalar_select %p465, %s37, 1
          %s467 = smul.addr %s466, 192
          %s468 = smul.addr %s467, 4
          %s469 = scalar_lea.vmem %s5, %s468
        $region52: #{simple_vit_forward.1} parent=35 // pred_fallthru
          _
        // Predicated region
        $region53: #{simple_vit_forward.1} parent=35 // pred_check
          %p470 = pneg %p207
        $region54: #{simple_vit_forward.1} parent=35 // pred_check_branch
          %472 = sbr.rel (%p470) target = $region56
        $region55: #{simple_vit_forward.1} parent=35 // pred_region
          %s473 = sand.u32 %s197, 1
          %s474 = scalar_lea.sflag [#allocation4], %s473
          %s475 = sand.u32 %s197, 1
          %s476 = smul.addr %s475, 256
          %s477 = scalar_lea.vmem [#allocation3], %s476
          %s479 = ssub.s32 4096, 4096
          %480 = vsyncadd %s474, %s479
          %s481 = smul.addr %s37, 64
          %s482 = smul.addr %s481, 64
          %s483 = scalar_lea.hbm %s6, %s482
          %s484 = sshll.u32 %s477, 4
          %s485 = int_to_ptr.vmem [resolvable:$true] %s484
          %490 = dma.hbm_to_vmem [thread:$0]  %s483, 4096, %s485, %s474, 128, 128, 8
        $region56: #{simple_vit_forward.1} parent=35 // pred_fallthru
          _
        // Predicated region
        $region57: #{simple_vit_forward.1} parent=35 // pred_check
          %p491 = pneg %p233
        $region58: #{simple_vit_forward.1} parent=35 // pred_check_branch
          %493 = sbr.rel (%p491) target = $region60
        $region59: #{simple_vit_forward.1} parent=35 // pred_region
          %p494 = scmp.lt.s32.totalorder %s37, 1
          %s495 = scalar_select %p494, %s37, 1
          %s496 = smul.addr %s495, 2
          %s497 = scalar_lea.vmem %s7, %s496
        $region60: #{simple_vit_forward.1} parent=35 // pred_fallthru
          _
        // Predicated region
        $region61: #{simple_vit_forward.1} parent=35 // pred_check
          %p498 = pneg %p259
        $region62: #{simple_vit_forward.1} parent=35 // pred_check_branch
          %500 = sbr.rel (%p498) target = $region64
        $region63: #{simple_vit_forward.1} parent=35 // pred_region
          %p501 = scmp.lt.s32.totalorder %s37, 1
          %s502 = scalar_select %p501, %s37, 1
          %s503 = smul.addr %s502, 2
          %s504 = scalar_lea.vmem %s8, %s503
        $region64: #{simple_vit_forward.1} parent=35 // pred_fallthru
          _
        // Predicated region
        $region65: #{simple_vit_forward.1} parent=35 // pred_check
          %p505 = pneg %p285
        $region66: #{simple_vit_forward.1} parent=35 // pred_check_branch
          %507 = sbr.rel (%p505) target = $region68
        $region67: #{simple_vit_forward.1} parent=35 // pred_region
          %s508 = sand.u32 %s29, 1
          %s509 = scalar_lea.sflag [#allocation7], %s508
          %s510 = sand.u32 %s275, 1
          %s511 = smul.addr %s510, 512
          %s512 = scalar_lea.vmem [#allocation6], %s511
          %s514 = ssub.s32 8192, 8192
          %515 = vsyncadd %s509, %s514
          %s516 = smul.addr %s37, 128
          %s517 = smul.addr %s516, 64
          %s518 = scalar_lea.hbm %s9, %s517
          %s519 = sshll.u32 %s512, 4
          %s520 = int_to_ptr.vmem [resolvable:$true] %s519
          %525 = dma.hbm_to_vmem [thread:$0]  %s518, 8192, %s520, %s509, 256, 256, 16
        $region68: #{simple_vit_forward.1} parent=35 // pred_fallthru
          _
        // Predicated region
        $region69: #{simple_vit_forward.1} parent=35 // pred_check
          %p526 = pneg %p311
        $region70: #{simple_vit_forward.1} parent=35 // pred_check_branch
          %528 = sbr.rel (%p526) target = $region72
        $region71: #{simple_vit_forward.1} parent=35 // pred_region
          %s529 = sand.u32 %s29, 1
          %s530 = scalar_lea.sflag [#allocation7], %s529
          %s531 = sand.u32 %s301, 1
          %s532 = smul.addr %s531, 512
          %s533 = scalar_lea.vmem [#allocation8], %s532
          %s535 = ssub.s32 8192, 8192
          %536 = vsyncadd %s530, %s535
          %s537 = smul.addr %s37, 128
          %s538 = smul.addr %s537, 64
          %s539 = scalar_lea.hbm %s10, %s538
          %s540 = sshll.u32 %s533, 4
          %s541 = int_to_ptr.vmem [resolvable:$true] %s540
          %546 = dma.hbm_to_vmem [thread:$0]  %s539, 8192, %s541, %s530, 128, 128, 8
        $region72: #{simple_vit_forward.1} parent=35 // pred_fallthru
          _
      $region36: #{simple_vit_forward.1} parent=5 // pred_fallthru
        _
      %p547 = scmp.le.s32.totalorder 1, %s29
      %p548 = scmp.lt.s32.totalorder %s29, 5
      %p549 = pnand %p547, %p548
      %p550 = pneg %p549
      // Predicated region
      $region73: #{simple_vit_forward.1} parent=5 // pred_check
        _
      $region74: #{simple_vit_forward.1} parent=5 // pred_check_branch
        %552 = sbr.rel (%p549) target = $region76
      $region75: #{simple_vit_forward.1} parent=5 // pred_region
        %s553 = ssub.s32 %s29, 1
        %s554 = sand.u32 %s200, 1
        %s555 = scalar_lea.sflag [#allocation4], %s554
        %s556 = sand.u32 %s200, 1
        %s557 = smul.addr %s556, 256
        %s558 = scalar_lea.vmem [#allocation3], %s557
        // Predicated region
        $region77: #{simple_vit_forward.1} parent=75 // pred_check
          %p559 = pneg %p213
        $region78: #{simple_vit_forward.1} parent=75 // pred_check_branch
          %561 = sbr.rel (%p559) target = $region80
        $region79: #{simple_vit_forward.1} parent=75 // pred_region
          %562 = dma.done %s555, 4096
        $region80: #{simple_vit_forward.1} parent=75 // pred_fallthru
          _
        %s563 = sand.u32 %s34, 1
        %s564 = scalar_lea.sflag [#allocation7], %s563
        %s565 = sand.u32 %s278, 1
        %s566 = smul.addr %s565, 512
        %s567 = scalar_lea.vmem [#allocation6], %s566
        // Predicated region
        $region81: #{simple_vit_forward.1} parent=75 // pred_check
          %p568 = pneg %p291
        $region82: #{simple_vit_forward.1} parent=75 // pred_check_branch
          %570 = sbr.rel (%p568) target = $region84
        $region83: #{simple_vit_forward.1} parent=75 // pred_region
          %571 = dma.done %s564, 8192
        $region84: #{simple_vit_forward.1} parent=75 // pred_fallthru
          _
        %s572 = sand.u32 %s34, 1
        %s573 = scalar_lea.sflag [#allocation7], %s572
        %s574 = sand.u32 %s304, 1
        %s575 = smul.addr %s574, 512
        %s576 = scalar_lea.vmem [#allocation8], %s575
        // Predicated region
        $region85: #{simple_vit_forward.1} parent=75 // pred_check
          %p577 = pneg %p317
        $region86: #{simple_vit_forward.1} parent=75 // pred_check_branch
          %579 = sbr.rel (%p577) target = $region88
        $region87: #{simple_vit_forward.1} parent=75 // pred_region
          %580 = dma.done %s573, 8192
        $region88: #{simple_vit_forward.1} parent=75 // pred_fallthru
          _
        %p581 = scmp.lt.s32.totalorder %s38, 1
        %s582 = scalar_select %p581, %s38, 1
        %s583 = smul.addr %s582, 2
        %s584 = smul.addr %s583, 4
        %s585 = scalar_lea.vmem %s0, %s584
        %p586 = pneg %p67
        %p587 = pneg %p64
        %p588 = pneg %p88
        %p589 = pneg %p85
        %p590 = pneg %p109
        %p591 = pneg %p106
        %p592 = scmp.lt.s32.totalorder %s39, 1
        %s593 = scalar_select %p592, %s39, 1
        %s594 = smul.addr %s593, 2
        %s595 = scalar_lea.vmem %s3, %s594
        %p596 = pneg %p135
        %p597 = pneg %p132
        %p598 = scmp.lt.s32.totalorder %s39, 1
        %s599 = scalar_select %p598, %s39, 1
        %s600 = smul.addr %s599, 2
        %s601 = scalar_lea.vmem %s4, %s600
        %p602 = pneg %p161
        %p603 = pneg %p158
        %p604 = scmp.lt.s32.totalorder %s39, 1
        %s605 = scalar_select %p604, %s39, 1
        %s606 = smul.addr %s605, 192
        %s607 = smul.addr %s606, 4
        %s608 = scalar_lea.vmem %s5, %s607
        %p609 = pneg %p187
        %p610 = pneg %p184
        %s611 = sand.u32 %s200, 1
        %s612 = scalar_lea.sflag [#allocation4], %s611
        %s613 = sand.u32 %s200, 1
        %s614 = smul.addr %s613, 256
        %s615 = scalar_lea.vmem [#allocation3], %s614
        %p616 = pneg %p213
        %p617 = pneg %p210
        %p618 = scmp.lt.s32.totalorder %s39, 1
        %s619 = scalar_select %p618, %s39, 1
        %s620 = smul.addr %s619, 2
        %s621 = scalar_lea.vmem %s7, %s620
        %p622 = pneg %p239
        %p623 = pneg %p236
        %p624 = scmp.lt.s32.totalorder %s39, 1
        %s625 = scalar_select %p624, %s39, 1
        %s626 = smul.addr %s625, 2
        %s627 = scalar_lea.vmem %s8, %s626
        %p628 = pneg %p265
        %p629 = pneg %p262
        %s630 = sand.u32 %s34, 1
        %s631 = scalar_lea.sflag [#allocation7], %s630
        %s632 = sand.u32 %s278, 1
        %s633 = smul.addr %s632, 512
        %s634 = scalar_lea.vmem [#allocation6], %s633
        %p635 = pneg %p291
        %p636 = pneg %p288
        %s637 = sand.u32 %s34, 1
        %s638 = scalar_lea.sflag [#allocation7], %s637
        %s639 = sand.u32 %s304, 1
        %s640 = smul.addr %s639, 512
        %s641 = scalar_lea.vmem [#allocation8], %s640
        %p642 = pneg %p317
        %p643 = pneg %p314
        %p644 = pneg %p338
        %p645 = pneg %p335
        %p646 = pneg %p359
        %p647 = pneg %p356
        %p648 = pneg %p380
        %p649 = pneg %p377
        %p650 = pneg %p406
        %p651 = pneg %p403
        %s652 = sand.u32 %s393, 1
        %s653 = scalar_lea.sflag [#allocation5], %s652
        %s654 = sand.u32 %s393, 1
        %s655 = scalar_lea.vmem [#allocation9], %s654
        %p656 = scmp.lt.s32.totalorder %s38, 1
        %s657 = scalar_select %p656, %s38, 1
        %s658 = smul.addr %s657, 2
        %s659 = smul.addr %s658, 4
        %s660 = scalar_lea.vmem %s0, %s659
        %p661 = scmp.lt.s32.totalorder %s39, 1
        %s662 = scalar_select %p661, %s39, 1
        %s663 = smul.addr %s662, 2
        %s664 = scalar_lea.vmem %s3, %s663
        %p665 = scmp.lt.s32.totalorder %s39, 1
        %s666 = scalar_select %p665, %s39, 1
        %s667 = smul.addr %s666, 2
        %s668 = scalar_lea.vmem %s4, %s667
        %p669 = scmp.lt.s32.totalorder %s39, 1
        %s670 = scalar_select %p669, %s39, 1
        %s671 = smul.addr %s670, 192
        %s672 = smul.addr %s671, 4
        %s673 = scalar_lea.vmem %s5, %s672
        %p674 = scmp.lt.s32.totalorder %s39, 1
        %s675 = scalar_select %p674, %s39, 1
        %s676 = smul.addr %s675, 2
        %s677 = scalar_lea.vmem %s7, %s676
        %p678 = scmp.lt.s32.totalorder %s39, 1
        %s679 = scalar_select %p678, %s39, 1
        %s680 = smul.addr %s679, 2
        %s681 = scalar_lea.vmem %s8, %s680
        %p683 = scmp.eq.s32.totalorder %s39, 0
        // Predicated region
        $region89: #{simple_vit_forward.1} parent=75 // pred_check
          %p684 = pneg %p683
        $region90: #{simple_vit_forward.1} parent=75 // pred_check_branch
          %686 = sbr.rel (%p684) target = $region92
        $region91: #{simple_vit_forward.1} parent=75 // pred_region
          %v687 = vld [vmem:[%s660] sm:$0xf]
          %v688 = vld [vmem:[%s660 + $0x4] sm:$0xf]
          %v689 = vld [vmem:[%s2] sm:$0xff]
          %v690 = vld [vmem:[%s2 + $0x8] sm:$0xff]
          %v691 = vld [vmem:[%s2 + $0x10] sm:$0xff]
          %v692 = vld [vmem:[%s2 + $0x18] sm:$0xff]
          %v693 = vld [vmem:[%s2 + $0x20] sm:$0xff]
          %v694 = vld [vmem:[%s2 + $0x28] sm:$0xff]
          %v695 = vld [vmem:[%s2 + $0x30] sm:$0xff]
          %v696 = vld [vmem:[%s2 + $0x38] sm:$0xff]
          %v697 = vld [vmem:[%s1] sm:$0xff]
          %v698 = vld [vmem:[%s1 + $0x8] sm:$0xff]
          %v699 = vld [vmem:[%s1 + $0x10] sm:$0xff]
          %v700 = vld [vmem:[%s1 + $0x18] sm:$0xff]
          %v703 = vunpack.c.l.b16 %v687
          %v704 = vunpack.c.l.b16 %v688
          %v705 = vpack.c.b16 %v704, %v703
          %v714 = vunpack.c.l.b16 %v689
          %v715 = vunpack.c.h.b16 %v689
          %v716 = vunpack.c.l.b16 %v690
          %v717 = vunpack.c.h.b16 %v690
          %v718 = vunpack.c.l.b16 %v691
          %v719 = vunpack.c.h.b16 %v691
          %v720 = vunpack.c.l.b16 %v692
          %v721 = vunpack.c.h.b16 %v692
          %v722 = vunpack.c.l.b16 %v693
          %v723 = vunpack.c.h.b16 %v693
          %v724 = vunpack.c.l.b16 %v694
          %v725 = vunpack.c.h.b16 %v694
          %v726 = vunpack.c.l.b16 %v695
          %v727 = vunpack.c.h.b16 %v695
          %v728 = vunpack.c.l.b16 %v696
          %v729 = vunpack.c.h.b16 %v696
          %v730 = vpack.c.b16 %v716, %v714
          %v731 = vpack.c.b16 %v717, %v715
          %v732 = vpack.c.b16 %v720, %v718
          %v733 = vpack.c.b16 %v721, %v719
          %v734 = vpack.c.b16 %v724, %v722
          %v735 = vpack.c.b16 %v725, %v723
          %v736 = vpack.c.b16 %v728, %v726
          %v737 = vpack.c.b16 %v729, %v727
          %vm746 = vcmask 523264
          %v748 = vsel %vm746, %v705, 0
          %750 = vmatprep.subr.bf16.mxu0 0
          %751 = vmatpush1.bf16.msra.mxu0 0
          %752 = vmatprep.subr.bf16.mxu0 0
          %753 = vmatpush1.bf16.msra.mxu0 0
          %754 = vmatprep.subr.bf16.mxu0 0
          %755 = vmatpush1.bf16.msra.mxu0 0
          %756 = vmatprep.subr.bf16.mxu0 0
          %757 = vmatpush1.bf16.msra.mxu0 0
          %758 = vmatprep.subr.bf16.mxu0 %v737
          %759 = vmatpush1.bf16.msra.mxu0 %v736
          %760 = vmatprep.subr.bf16.mxu0 %v735
          %761 = vmatpush1.bf16.msra.mxu0 %v734
          %762 = vmatprep.subr.bf16.mxu0 %v733
          %763 = vmatpush1.bf16.msra.mxu0 %v732
          %764 = vmatprep.subr.bf16.mxu0 %v731
          %765 = vmatpush1.bf16.msra.mxu0 %v730
          %766 = vmatprep.subr.bf16.mxu0 0
          %767 = vmatpush2.bf16.msra.mxu0 0
          %768 = vmatprep.subr.bf16.mxu0 0
          %769 = vmatpush2.bf16.msra.mxu0 0
          %770 = vmatprep.subr.bf16.mxu0 0
          %771 = vmatpush2.bf16.msra.mxu0 0
          %772 = vmatprep.subr.bf16.mxu0 0
          %773 = vmatpush2.bf16.msra.mxu0 0
          %774 = vmatprep.subr.bf16.mxu0 0
          %775 = vmatpush2.bf16.msra.mxu0 0
          %776 = vmatprep.subr.bf16.mxu0 0
          %777 = vmatpush2.bf16.msra.mxu0 0
          %778 = vmatprep.subr.bf16.mxu0 0
          %779 = vmatpush2.bf16.msra.mxu0 0
          %780 = vmatprep.subr.bf16.mxu0 0
          %781 = vmatpush2.bf16.msra.mxu0 0
          %782 = vmatprep.mubr.bf16.mxu0 0
          %783 = vmatmul.mubr.bf16.gmra.mxu0 %v748
          %v784 = vpop.f32.mrf.mxu0
          %v785 = vadd.f32 %v697, %v784
          %v786 = vpop.f32.mrf.mxu0
          %v787 = vadd.f32 %v698, %v786
          %v788 = vpop.f32.mrf.mxu0
          %v789 = vadd.f32 %v699, %v788
          %v790 = vpop.f32.mrf.mxu0
          %v791 = vadd.f32 %v700, %v790
          %792 = vdwg.mxu0
          %793 = vst [vmem:[#allocation2] sm:$0xff] %v785
          %794 = vst [vmem:[#allocation2 + $0x8] sm:$0xff] %v787
          %795 = vst [vmem:[#allocation2 + $0x10] sm:$0xff] %v789
          %796 = vst [vmem:[#allocation2 + $0x18] sm:$0xff] %v791
        $region92: #{simple_vit_forward.1} parent=75 // pred_fallthru
          _
        %v797 = vld [vmem:[#allocation2] sm:$0xff]
        %v798 = vld [vmem:[#allocation2 + $0x8] sm:$0xff]
        %v799 = vld [vmem:[#allocation2 + $0x10] sm:$0xff]
        %v800 = vld [vmem:[#allocation2 + $0x18] sm:$0xff]
        %v801 = vld [vmem:[%s664] sm:$0x3]
        %v802 = vld [vmem:[%s668] sm:$0x3]
        %v803 = vadd.f32 %v797, %v798
        %804 = vadd.xlane.f32.xlu0 %v803
        %v805 = vpop.xlane.xlu0 %804
        %v806 = vadd.f32 %v799, %v800
        %807 = vadd.xlane.f32.xlu0 %v806
        %v808 = vpop.xlane.xlu0 %807
        %v809 = vrcp.pop 256.0
        %v810 = vmul.f32 %v805, %v809
        %v811 = vmul.f32 %v808, %v809
        %v812 = vsub.f32 %v797, %v810
        %v813 = vsub.f32 %v798, %v810
        %v814 = vsub.f32 %v799, %v811
        %v815 = vsub.f32 %v800, %v811
        %v816 = vmul.f32 %v812, %v812
        %v817 = vmul.f32 %v813, %v813
        %v818 = vmul.f32 %v814, %v814
        %v819 = vmul.f32 %v815, %v815
        %v820 = vadd.f32 %v816, %v817
        %821 = vadd.xlane.f32.xlu0 %v820
        %v822 = vpop.xlane.xlu0 %821
        %v823 = vadd.f32 %v818, %v819
        %824 = vadd.xlane.f32.xlu0 %v823
        %v825 = vpop.xlane.xlu0 %824
        %v826 = vmul.f32 %v822, %v809
        %v827 = vmul.f32 %v825, %v809
        %v828 = vadd.f32 %v826, 1e-05
        %v829 = vadd.f32 %v827, 1e-05
        %v830 = vrsqrt.pop %v828
        %v831 = vrsqrt.pop %v829
        %v832 = vmul.f32 %v812, %v830
        %v833 = vmul.f32 %v813, %v830
        %v834 = vmul.f32 %v814, %v831
        %v835 = vmul.f32 %v815, %v831
        %v837 = vlaneseq
        %v838 = vshrl.u32 %v837, 7
        %v839 = vsub.s32 0, %v838
        %v840 = vrot.slane %v801, %v839
        %v841 = vlaneseq
        %v842 = vshrl.u32 %v841, 7
        %v843 = vsub.s32 1, %v842
        %v844 = vrot.slane %v801, %v843
        %v847 = vmul.f32 %v832, %v840
        %v848 = vmul.f32 %v833, %v844
        %v849 = vmul.f32 %v834, %v840
        %v850 = vmul.f32 %v835, %v844
        %v852 = vlaneseq
        %v853 = vshrl.u32 %v852, 7
        %v854 = vsub.s32 0, %v853
        %v855 = vrot.slane %v802, %v854
        %v856 = vlaneseq
        %v857 = vshrl.u32 %v856, 7
        %v858 = vsub.s32 1, %v857
        %v859 = vrot.slane %v802, %v858
        %v862 = vadd.f32 %v847, %v855
        %v863 = vadd.f32 %v848, %v859
        %v864 = vadd.f32 %v849, %v855
        %v865 = vadd.f32 %v850, %v859
        %v866 = vpack.c.bf16 %v864, %v862
        %v867 = vpack.c.bf16 %v865, %v863
        %v868 = vld [vmem:[%s673] sm:$0xff]
        %v869 = vld [vmem:[%s673 + $0x8] sm:$0xf]
        %v870 = vld [vmem:[%s673 + $0xc] sm:$0xff]
        %v871 = vld [vmem:[%s673 + $0x14] sm:$0xf]
        %v872 = vld [vmem:[%s673 + $0x18] sm:$0xff]
        %v873 = vld [vmem:[%s673 + $0x20] sm:$0xf]
        %v874 = vld [vmem:[%s673 + $0x24] sm:$0xff]
        %v875 = vld [vmem:[%s673 + $0x2c] sm:$0xf]
        %v876 = vld [vmem:[%s673 + $0x30] sm:$0xff]
        %v877 = vld [vmem:[%s673 + $0x38] sm:$0xf]
        %v878 = vld [vmem:[%s673 + $0x3c] sm:$0xff]
        %v879 = vld [vmem:[%s673 + $0x44] sm:$0xf]
        %v880 = vld [vmem:[%s673 + $0x48] sm:$0xff]
        %v881 = vld [vmem:[%s673 + $0x50] sm:$0xf]
        %v882 = vld [vmem:[%s673 + $0x54] sm:$0xff]
        %v883 = vld [vmem:[%s673 + $0x5c] sm:$0xf]
        %v884 = vld [vmem:[%s673 + $0x60] sm:$0xff]
        %v885 = vld [vmem:[%s673 + $0x68] sm:$0xf]
        %v886 = vld [vmem:[%s673 + $0x6c] sm:$0xff]
        %v887 = vld [vmem:[%s673 + $0x74] sm:$0xf]
        %v888 = vld [vmem:[%s673 + $0x78] sm:$0xff]
        %v889 = vld [vmem:[%s673 + $0x80] sm:$0xf]
        %v890 = vld [vmem:[%s673 + $0x84] sm:$0xff]
        %v891 = vld [vmem:[%s673 + $0x8c] sm:$0xf]
        %v892 = vld [vmem:[%s673 + $0x90] sm:$0xff]
        %v893 = vld [vmem:[%s673 + $0x98] sm:$0xf]
        %v894 = vld [vmem:[%s673 + $0x9c] sm:$0xff]
        %v895 = vld [vmem:[%s673 + $0xa4] sm:$0xf]
        %v896 = vld [vmem:[%s673 + $0xa8] sm:$0xff]
        %v897 = vld [vmem:[%s673 + $0xb0] sm:$0xf]
        %v898 = vld [vmem:[%s673 + $0xb4] sm:$0xff]
        %v899 = vld [vmem:[%s673 + $0xbc] sm:$0xf]
        %v900 = vld [vmem:[%s673 + $0xc0] sm:$0xff]
        %v901 = vld [vmem:[%s673 + $0xc8] sm:$0xf]
        %v902 = vld [vmem:[%s673 + $0xcc] sm:$0xff]
        %v903 = vld [vmem:[%s673 + $0xd4] sm:$0xf]
        %v904 = vld [vmem:[%s673 + $0xd8] sm:$0xff]
        %v905 = vld [vmem:[%s673 + $0xe0] sm:$0xf]
        %v906 = vld [vmem:[%s673 + $0xe4] sm:$0xff]
        %v907 = vld [vmem:[%s673 + $0xec] sm:$0xf]
        %v908 = vld [vmem:[%s673 + $0xf0] sm:$0xff]
        %v909 = vld [vmem:[%s673 + $0xf8] sm:$0xf]
        %v910 = vld [vmem:[%s673 + $0xfc] sm:$0xff]
        %v911 = vld [vmem:[%s673 + $0x104] sm:$0xf]
        %v912 = vld [vmem:[%s673 + $0x108] sm:$0xff]
        %v913 = vld [vmem:[%s673 + $0x110] sm:$0xf]
        %v914 = vld [vmem:[%s673 + $0x114] sm:$0xff]
        %v915 = vld [vmem:[%s673 + $0x11c] sm:$0xf]
        %v916 = vld [vmem:[%s673 + $0x120] sm:$0xff]
        %v917 = vld [vmem:[%s673 + $0x128] sm:$0xf]
        %v918 = vld [vmem:[%s673 + $0x12c] sm:$0xff]
        %v919 = vld [vmem:[%s673 + $0x134] sm:$0xf]
        %v920 = vld [vmem:[%s673 + $0x138] sm:$0xff]
        %v921 = vld [vmem:[%s673 + $0x140] sm:$0xf]
        %v922 = vld [vmem:[%s673 + $0x144] sm:$0xff]
        %v923 = vld [vmem:[%s673 + $0x14c] sm:$0xf]
        %v924 = vld [vmem:[%s673 + $0x150] sm:$0xff]
        %v925 = vld [vmem:[%s673 + $0x158] sm:$0xf]
        %v926 = vld [vmem:[%s673 + $0x15c] sm:$0xff]
        %v927 = vld [vmem:[%s673 + $0x164] sm:$0xf]
        %v928 = vld [vmem:[%s673 + $0x168] sm:$0xff]
        %v929 = vld [vmem:[%s673 + $0x170] sm:$0xf]
        %v930 = vld [vmem:[%s673 + $0x174] sm:$0xff]
        %v931 = vld [vmem:[%s673 + $0x17c] sm:$0xf]
        %v932 = vld [vmem:[%s673 + $0x180] sm:$0xff]
        %v933 = vld [vmem:[%s673 + $0x188] sm:$0xf]
        %v934 = vld [vmem:[%s673 + $0x18c] sm:$0xff]
        %v935 = vld [vmem:[%s673 + $0x194] sm:$0xf]
        %v936 = vld [vmem:[%s673 + $0x198] sm:$0xff]
        %v937 = vld [vmem:[%s673 + $0x1a0] sm:$0xf]
        %v938 = vld [vmem:[%s673 + $0x1a4] sm:$0xff]
        %v939 = vld [vmem:[%s673 + $0x1ac] sm:$0xf]
        %v940 = vld [vmem:[%s673 + $0x1b0] sm:$0xff]
        %v941 = vld [vmem:[%s673 + $0x1b8] sm:$0xf]
        %v942 = vld [vmem:[%s673 + $0x1bc] sm:$0xff]
        %v943 = vld [vmem:[%s673 + $0x1c4] sm:$0xf]
        %v944 = vld [vmem:[%s673 + $0x1c8] sm:$0xff]
        %v945 = vld [vmem:[%s673 + $0x1d0] sm:$0xf]
        %v946 = vld [vmem:[%s673 + $0x1d4] sm:$0xff]
        %v947 = vld [vmem:[%s673 + $0x1dc] sm:$0xf]
        %v948 = vld [vmem:[%s673 + $0x1e0] sm:$0xff]
        %v949 = vld [vmem:[%s673 + $0x1e8] sm:$0xf]
        %v950 = vld [vmem:[%s673 + $0x1ec] sm:$0xff]
        %v951 = vld [vmem:[%s673 + $0x1f4] sm:$0xf]
        %v952 = vld [vmem:[%s673 + $0x1f8] sm:$0xff]
        %v953 = vld [vmem:[%s673 + $0x200] sm:$0xf]
        %v954 = vld [vmem:[%s673 + $0x204] sm:$0xff]
        %v955 = vld [vmem:[%s673 + $0x20c] sm:$0xf]
        %v956 = vld [vmem:[%s673 + $0x210] sm:$0xff]
        %v957 = vld [vmem:[%s673 + $0x218] sm:$0xf]
        %v958 = vld [vmem:[%s673 + $0x21c] sm:$0xff]
        %v959 = vld [vmem:[%s673 + $0x224] sm:$0xf]
        %v960 = vld [vmem:[%s673 + $0x228] sm:$0xff]
        %v961 = vld [vmem:[%s673 + $0x230] sm:$0xf]
        %v962 = vld [vmem:[%s673 + $0x234] sm:$0xff]
        %v963 = vld [vmem:[%s673 + $0x23c] sm:$0xf]
        %v964 = vld [vmem:[%s673 + $0x240] sm:$0xff]
        %v965 = vld [vmem:[%s673 + $0x248] sm:$0xf]
        %v966 = vld [vmem:[%s673 + $0x24c] sm:$0xff]
        %v967 = vld [vmem:[%s673 + $0x254] sm:$0xf]
        %v968 = vld [vmem:[%s673 + $0x258] sm:$0xff]
        %v969 = vld [vmem:[%s673 + $0x260] sm:$0xf]
        %v970 = vld [vmem:[%s673 + $0x264] sm:$0xff]
        %v971 = vld [vmem:[%s673 + $0x26c] sm:$0xf]
        %v972 = vld [vmem:[%s673 + $0x270] sm:$0xff]
        %v973 = vld [vmem:[%s673 + $0x278] sm:$0xf]
        %v974 = vld [vmem:[%s673 + $0x27c] sm:$0xff]
        %v975 = vld [vmem:[%s673 + $0x284] sm:$0xf]
        %v976 = vld [vmem:[%s673 + $0x288] sm:$0xff]
        %v977 = vld [vmem:[%s673 + $0x290] sm:$0xf]
        %v978 = vld [vmem:[%s673 + $0x294] sm:$0xff]
        %v979 = vld [vmem:[%s673 + $0x29c] sm:$0xf]
        %v980 = vld [vmem:[%s673 + $0x2a0] sm:$0xff]
        %v981 = vld [vmem:[%s673 + $0x2a8] sm:$0xf]
        %v982 = vld [vmem:[%s673 + $0x2ac] sm:$0xff]
        %v983 = vld [vmem:[%s673 + $0x2b4] sm:$0xf]
        %v984 = vld [vmem:[%s673 + $0x2b8] sm:$0xff]
        %v985 = vld [vmem:[%s673 + $0x2c0] sm:$0xf]
        %v986 = vld [vmem:[%s673 + $0x2c4] sm:$0xff]
        %v987 = vld [vmem:[%s673 + $0x2cc] sm:$0xf]
        %v988 = vld [vmem:[%s673 + $0x2d0] sm:$0xff]
        %v989 = vld [vmem:[%s673 + $0x2d8] sm:$0xf]
        %v990 = vld [vmem:[%s673 + $0x2dc] sm:$0xff]
        %v991 = vld [vmem:[%s673 + $0x2e4] sm:$0xf]
        %v992 = vld [vmem:[%s673 + $0x2e8] sm:$0xff]
        %v993 = vld [vmem:[%s673 + $0x2f0] sm:$0xf]
        %v994 = vld [vmem:[%s673 + $0x2f4] sm:$0xff]
        %v995 = vld [vmem:[%s673 + $0x2fc] sm:$0xf]
        %v1060 = vunpack.c.l.b16 %v868
        %v1061 = vunpack.c.h.b16 %v868
        %v1062 = vunpack.c.l.b16 %v869
        %v1063 = vunpack.c.l.b16 %v870
        %v1064 = vunpack.c.h.b16 %v870
        %v1065 = vunpack.c.l.b16 %v871
        %v1066 = vunpack.c.l.b16 %v872
        %v1067 = vunpack.c.h.b16 %v872
        %v1068 = vunpack.c.l.b16 %v873
        %v1069 = vunpack.c.l.b16 %v874
        %v1070 = vunpack.c.h.b16 %v874
        %v1071 = vunpack.c.l.b16 %v875
        %v1072 = vunpack.c.l.b16 %v876
        %v1073 = vunpack.c.h.b16 %v876
        %v1074 = vunpack.c.l.b16 %v877
        %v1075 = vunpack.c.l.b16 %v878
        %v1076 = vunpack.c.h.b16 %v878
        %v1077 = vunpack.c.l.b16 %v879
        %v1078 = vunpack.c.l.b16 %v880
        %v1079 = vunpack.c.h.b16 %v880
        %v1080 = vunpack.c.l.b16 %v881
        %v1081 = vunpack.c.l.b16 %v882
        %v1082 = vunpack.c.h.b16 %v882
        %v1083 = vunpack.c.l.b16 %v883
        %v1084 = vunpack.c.l.b16 %v884
        %v1085 = vunpack.c.h.b16 %v884
        %v1086 = vunpack.c.l.b16 %v885
        %v1087 = vunpack.c.l.b16 %v886
        %v1088 = vunpack.c.h.b16 %v886
        %v1089 = vunpack.c.l.b16 %v887
        %v1090 = vunpack.c.l.b16 %v888
        %v1091 = vunpack.c.h.b16 %v888
        %v1092 = vunpack.c.l.b16 %v889
        %v1093 = vunpack.c.l.b16 %v890
        %v1094 = vunpack.c.h.b16 %v890
        %v1095 = vunpack.c.l.b16 %v891
        %v1096 = vunpack.c.l.b16 %v892
        %v1097 = vunpack.c.h.b16 %v892
        %v1098 = vunpack.c.l.b16 %v893
        %v1099 = vunpack.c.l.b16 %v894
        %v1100 = vunpack.c.h.b16 %v894
        %v1101 = vunpack.c.l.b16 %v895
        %v1102 = vunpack.c.l.b16 %v896
        %v1103 = vunpack.c.h.b16 %v896
        %v1104 = vunpack.c.l.b16 %v897
        %v1105 = vunpack.c.l.b16 %v898
        %v1106 = vunpack.c.h.b16 %v898
        %v1107 = vunpack.c.l.b16 %v899
        %v1108 = vunpack.c.l.b16 %v900
        %v1109 = vunpack.c.h.b16 %v900
        %v1110 = vunpack.c.l.b16 %v901
        %v1111 = vunpack.c.l.b16 %v902
        %v1112 = vunpack.c.h.b16 %v902
        %v1113 = vunpack.c.l.b16 %v903
        %v1114 = vunpack.c.l.b16 %v904
        %v1115 = vunpack.c.h.b16 %v904
        %v1116 = vunpack.c.l.b16 %v905
        %v1117 = vunpack.c.l.b16 %v906
        %v1118 = vunpack.c.h.b16 %v906
        %v1119 = vunpack.c.l.b16 %v907
        %v1120 = vunpack.c.l.b16 %v908
        %v1121 = vunpack.c.h.b16 %v908
        %v1122 = vunpack.c.l.b16 %v909
        %v1123 = vunpack.c.l.b16 %v910
        %v1124 = vunpack.c.h.b16 %v910
        %v1125 = vunpack.c.l.b16 %v911
        %v1126 = vunpack.c.l.b16 %v912
        %v1127 = vunpack.c.h.b16 %v912
        %v1128 = vunpack.c.l.b16 %v913
        %v1129 = vunpack.c.l.b16 %v914
        %v1130 = vunpack.c.h.b16 %v914
        %v1131 = vunpack.c.l.b16 %v915
        %v1132 = vunpack.c.l.b16 %v916
        %v1133 = vunpack.c.h.b16 %v916
        %v1134 = vunpack.c.l.b16 %v917
        %v1135 = vunpack.c.l.b16 %v918
        %v1136 = vunpack.c.h.b16 %v918
        %v1137 = vunpack.c.l.b16 %v919
        %v1138 = vunpack.c.l.b16 %v920
        %v1139 = vunpack.c.h.b16 %v920
        %v1140 = vunpack.c.l.b16 %v921
        %v1141 = vunpack.c.l.b16 %v922
        %v1142 = vunpack.c.h.b16 %v922
        %v1143 = vunpack.c.l.b16 %v923
        %v1144 = vunpack.c.l.b16 %v924
        %v1145 = vunpack.c.h.b16 %v924
        %v1146 = vunpack.c.l.b16 %v925
        %v1147 = vunpack.c.l.b16 %v926
        %v1148 = vunpack.c.h.b16 %v926
        %v1149 = vunpack.c.l.b16 %v927
        %v1150 = vunpack.c.l.b16 %v928
        %v1151 = vunpack.c.h.b16 %v928
        %v1152 = vunpack.c.l.b16 %v929
        %v1153 = vunpack.c.l.b16 %v930
        %v1154 = vunpack.c.h.b16 %v930
        %v1155 = vunpack.c.l.b16 %v931
        %v1156 = vpack.c.b16 %v1063, %v1060
        %v1157 = vpack.c.b16 %v1064, %v1061
        %v1158 = vpack.c.b16 %v1065, %v1062
        %v1159 = vpack.c.b16 %v1069, %v1066
        %v1160 = vpack.c.b16 %v1070, %v1067
        %v1161 = vpack.c.b16 %v1071, %v1068
        %v1162 = vpack.c.b16 %v1075, %v1072
        %v1163 = vpack.c.b16 %v1076, %v1073
        %v1164 = vpack.c.b16 %v1077, %v1074
        %v1165 = vpack.c.b16 %v1081, %v1078
        %v1166 = vpack.c.b16 %v1082, %v1079
        %v1167 = vpack.c.b16 %v1083, %v1080
        %v1168 = vpack.c.b16 %v1087, %v1084
        %v1169 = vpack.c.b16 %v1088, %v1085
        %v1170 = vpack.c.b16 %v1089, %v1086
        %v1171 = vpack.c.b16 %v1093, %v1090
        %v1172 = vpack.c.b16 %v1094, %v1091
        %v1173 = vpack.c.b16 %v1095, %v1092
        %v1174 = vpack.c.b16 %v1099, %v1096
        %v1175 = vpack.c.b16 %v1100, %v1097
        %v1176 = vpack.c.b16 %v1101, %v1098
        %v1177 = vpack.c.b16 %v1105, %v1102
        %v1178 = vpack.c.b16 %v1106, %v1103
        %v1179 = vpack.c.b16 %v1107, %v1104
        %v1180 = vpack.c.b16 %v1111, %v1108
        %v1181 = vpack.c.b16 %v1112, %v1109
        %v1182 = vpack.c.b16 %v1113, %v1110
        %v1183 = vpack.c.b16 %v1117, %v1114
        %v1184 = vpack.c.b16 %v1118, %v1115
        %v1185 = vpack.c.b16 %v1119, %v1116
        %v1186 = vpack.c.b16 %v1123, %v1120
        %v1187 = vpack.c.b16 %v1124, %v1121
        %v1188 = vpack.c.b16 %v1125, %v1122
        %v1189 = vpack.c.b16 %v1129, %v1126
        %v1190 = vpack.c.b16 %v1130, %v1127
        %v1191 = vpack.c.b16 %v1131, %v1128
        %v1192 = vpack.c.b16 %v1135, %v1132
        %v1193 = vpack.c.b16 %v1136, %v1133
        %v1194 = vpack.c.b16 %v1137, %v1134
        %v1195 = vpack.c.b16 %v1141, %v1138
        %v1196 = vpack.c.b16 %v1142, %v1139
        %v1197 = vpack.c.b16 %v1143, %v1140
        %v1198 = vpack.c.b16 %v1147, %v1144
        %v1199 = vpack.c.b16 %v1148, %v1145
        %v1200 = vpack.c.b16 %v1149, %v1146
        %v1201 = vpack.c.b16 %v1153, %v1150
        %v1202 = vpack.c.b16 %v1154, %v1151
        %v1203 = vpack.c.b16 %v1155, %v1152
        %1252 = vmatprep.subr.bf16.mxu0 %v1178
        %1253 = vmatpush1.bf16.msra.mxu0 %v1177
        %1254 = vmatprep.subr.bf16.mxu0 %v1175
        %1255 = vmatpush1.bf16.msra.mxu0 %v1174
        %1256 = vmatprep.subr.bf16.mxu0 %v1172
        %1257 = vmatpush1.bf16.msra.mxu0 %v1171
        %1258 = vmatprep.subr.bf16.mxu0 %v1169
        %1259 = vmatpush1.bf16.msra.mxu0 %v1168
        %1260 = vmatprep.subr.bf16.mxu0 %v1166
        %1261 = vmatpush1.bf16.msra.mxu0 %v1165
        %1262 = vmatprep.subr.bf16.mxu0 %v1163
        %1263 = vmatpush1.bf16.msra.mxu0 %v1162
        %1264 = vmatprep.subr.bf16.mxu0 %v1160
        %1265 = vmatpush1.bf16.msra.mxu0 %v1159
        %1266 = vmatprep.subr.bf16.mxu0 %v1157
        %1267 = vmatpush1.bf16.msra.mxu0 %v1156
        %1268 = vmatprep.subr.bf16.mxu0 %v1202
        %1269 = vmatpush2.bf16.msra.mxu0 %v1201
        %1270 = vmatprep.subr.bf16.mxu0 %v1199
        %1271 = vmatpush2.bf16.msra.mxu0 %v1198
        %1272 = vmatprep.subr.bf16.mxu0 %v1196
        %1273 = vmatpush2.bf16.msra.mxu0 %v1195
        %1274 = vmatprep.subr.bf16.mxu0 %v1193
        %1275 = vmatpush2.bf16.msra.mxu0 %v1192
        %1276 = vmatprep.subr.bf16.mxu0 %v1190
        %1277 = vmatpush2.bf16.msra.mxu0 %v1189
        %1278 = vmatprep.subr.bf16.mxu0 %v1187
        %1279 = vmatpush2.bf16.msra.mxu0 %v1186
        %1280 = vmatprep.subr.bf16.mxu0 %v1184
        %1281 = vmatpush2.bf16.msra.mxu0 %v1183
        %1282 = vmatprep.subr.bf16.mxu0 %v1181
        %1283 = vmatpush2.bf16.msra.mxu0 %v1180
        %1284 = vmatprep.mubr.bf16.mxu0 %v867
        %1285 = vmatmul.mubr.bf16.gmra.mxu0 %v866
        %v1286 = vpop.f32.mrf.mxu0
        %v1287 = vadd.f32 0.0, %v1286
        %v1288 = vpop.f32.mrf.mxu0
        %v1289 = vadd.f32 0.0, %v1288
        %v1290 = vpop.f32.mrf.mxu0
        %v1291 = vadd.f32 0.0, %v1290
        %v1292 = vpop.f32.mrf.mxu0
        %v1293 = vadd.f32 0.0, %v1292
        %1294 = vdwg.mxu0
        %1295 = vmatprep.subr.bf16.mxu0 0
        %1296 = vmatpush1.bf16.msra.mxu0 %v1179
        %1297 = vmatprep.subr.bf16.mxu0 0
        %1298 = vmatpush1.bf16.msra.mxu0 %v1176
        %1299 = vmatprep.subr.bf16.mxu0 0
        %1300 = vmatpush1.bf16.msra.mxu0 %v1173
        %1301 = vmatprep.subr.bf16.mxu0 0
        %1302 = vmatpush1.bf16.msra.mxu0 %v1170
        %1303 = vmatprep.subr.bf16.mxu0 0
        %1304 = vmatpush1.bf16.msra.mxu0 %v1167
        %1305 = vmatprep.subr.bf16.mxu0 0
        %1306 = vmatpush1.bf16.msra.mxu0 %v1164
        %1307 = vmatprep.subr.bf16.mxu0 0
        %1308 = vmatpush1.bf16.msra.mxu0 %v1161
        %1309 = vmatprep.subr.bf16.mxu0 0
        %1310 = vmatpush1.bf16.msra.mxu0 %v1158
        %1311 = vmatprep.subr.bf16.mxu0 0
        %1312 = vmatpush2.bf16.msra.mxu0 %v1203
        %1313 = vmatprep.subr.bf16.mxu0 0
        %1314 = vmatpush2.bf16.msra.mxu0 %v1200
        %1315 = vmatprep.subr.bf16.mxu0 0
        %1316 = vmatpush2.bf16.msra.mxu0 %v1197
        %1317 = vmatprep.subr.bf16.mxu0 0
        %1318 = vmatpush2.bf16.msra.mxu0 %v1194
        %1319 = vmatprep.subr.bf16.mxu0 0
        %1320 = vmatpush2.bf16.msra.mxu0 %v1191
        %1321 = vmatprep.subr.bf16.mxu0 0
        %1322 = vmatpush2.bf16.msra.mxu0 %v1188
        %1323 = vmatprep.subr.bf16.mxu0 0
        %1324 = vmatpush2.bf16.msra.mxu0 %v1185
        %1325 = vmatprep.subr.bf16.mxu0 0
        %1326 = vmatpush2.bf16.msra.mxu0 %v1182
        %1327 = vmatprep.mubr.bf16.mxu0 %v867
        %1328 = vmatmul.mubr.bf16.gmra.mxu0 %v866
        %v1329 = vpop.f32.mrf.mxu0
        %v1330 = vadd.f32 0.0, %v1329
        %v1331 = vpop.f32.mrf.mxu0
        %v1332 = vpop.f32.mrf.mxu0
        %v1333 = vadd.f32 0.0, %v1332
        %v1334 = vpop.f32.mrf.mxu0
        %1335 = vdwg.mxu0
        %v1400 = vunpack.c.l.b16 %v932
        %v1401 = vunpack.c.h.b16 %v932
        %v1402 = vunpack.c.l.b16 %v933
        %v1403 = vunpack.c.l.b16 %v934
        %v1404 = vunpack.c.h.b16 %v934
        %v1405 = vunpack.c.l.b16 %v935
        %v1406 = vunpack.c.l.b16 %v936
        %v1407 = vunpack.c.h.b16 %v936
        %v1408 = vunpack.c.l.b16 %v937
        %v1409 = vunpack.c.l.b16 %v938
        %v1410 = vunpack.c.h.b16 %v938
        %v1411 = vunpack.c.l.b16 %v939
        %v1412 = vunpack.c.l.b16 %v940
        %v1413 = vunpack.c.h.b16 %v940
        %v1414 = vunpack.c.l.b16 %v941
        %v1415 = vunpack.c.l.b16 %v942
        %v1416 = vunpack.c.h.b16 %v942
        %v1417 = vunpack.c.l.b16 %v943
        %v1418 = vunpack.c.l.b16 %v944
        %v1419 = vunpack.c.h.b16 %v944
        %v1420 = vunpack.c.l.b16 %v945
        %v1421 = vunpack.c.l.b16 %v946
        %v1422 = vunpack.c.h.b16 %v946
        %v1423 = vunpack.c.l.b16 %v947
        %v1424 = vunpack.c.l.b16 %v948
        %v1425 = vunpack.c.h.b16 %v948
        %v1426 = vunpack.c.l.b16 %v949
        %v1427 = vunpack.c.l.b16 %v950
        %v1428 = vunpack.c.h.b16 %v950
        %v1429 = vunpack.c.l.b16 %v951
        %v1430 = vunpack.c.l.b16 %v952
        %v1431 = vunpack.c.h.b16 %v952
        %v1432 = vunpack.c.l.b16 %v953
        %v1433 = vunpack.c.l.b16 %v954
        %v1434 = vunpack.c.h.b16 %v954
        %v1435 = vunpack.c.l.b16 %v955
        %v1436 = vunpack.c.l.b16 %v956
        %v1437 = vunpack.c.h.b16 %v956
        %v1438 = vunpack.c.l.b16 %v957
        %v1439 = vunpack.c.l.b16 %v958
        %v1440 = vunpack.c.h.b16 %v958
        %v1441 = vunpack.c.l.b16 %v959
        %v1442 = vunpack.c.l.b16 %v960
        %v1443 = vunpack.c.h.b16 %v960
        %v1444 = vunpack.c.l.b16 %v961
        %v1445 = vunpack.c.l.b16 %v962
        %v1446 = vunpack.c.h.b16 %v962
        %v1447 = vunpack.c.l.b16 %v963
        %v1448 = vunpack.c.l.b16 %v964
        %v1449 = vunpack.c.h.b16 %v964
        %v1450 = vunpack.c.l.b16 %v965
        %v1451 = vunpack.c.l.b16 %v966
        %v1452 = vunpack.c.h.b16 %v966
        %v1453 = vunpack.c.l.b16 %v967
        %v1454 = vunpack.c.l.b16 %v968
        %v1455 = vunpack.c.h.b16 %v968
        %v1456 = vunpack.c.l.b16 %v969
        %v1457 = vunpack.c.l.b16 %v970
        %v1458 = vunpack.c.h.b16 %v970
        %v1459 = vunpack.c.l.b16 %v971
        %v1460 = vunpack.c.l.b16 %v972
        %v1461 = vunpack.c.h.b16 %v972
        %v1462 = vunpack.c.l.b16 %v973
        %v1463 = vunpack.c.l.b16 %v974
        %v1464 = vunpack.c.h.b16 %v974
        %v1465 = vunpack.c.l.b16 %v975
        %v1466 = vunpack.c.l.b16 %v976
        %v1467 = vunpack.c.h.b16 %v976
        %v1468 = vunpack.c.l.b16 %v977
        %v1469 = vunpack.c.l.b16 %v978
        %v1470 = vunpack.c.h.b16 %v978
        %v1471 = vunpack.c.l.b16 %v979
        %v1472 = vunpack.c.l.b16 %v980
        %v1473 = vunpack.c.h.b16 %v980
        %v1474 = vunpack.c.l.b16 %v981
        %v1475 = vunpack.c.l.b16 %v982
        %v1476 = vunpack.c.h.b16 %v982
        %v1477 = vunpack.c.l.b16 %v983
        %v1478 = vunpack.c.l.b16 %v984
        %v1479 = vunpack.c.h.b16 %v984
        %v1480 = vunpack.c.l.b16 %v985
        %v1481 = vunpack.c.l.b16 %v986
        %v1482 = vunpack.c.h.b16 %v986
        %v1483 = vunpack.c.l.b16 %v987
        %v1484 = vunpack.c.l.b16 %v988
        %v1485 = vunpack.c.h.b16 %v988
        %v1486 = vunpack.c.l.b16 %v989
        %v1487 = vunpack.c.l.b16 %v990
        %v1488 = vunpack.c.h.b16 %v990
        %v1489 = vunpack.c.l.b16 %v991
        %v1490 = vunpack.c.l.b16 %v992
        %v1491 = vunpack.c.h.b16 %v992
        %v1492 = vunpack.c.l.b16 %v993
        %v1493 = vunpack.c.l.b16 %v994
        %v1494 = vunpack.c.h.b16 %v994
        %v1495 = vunpack.c.l.b16 %v995
        %v1496 = vpack.c.b16 %v1403, %v1400
        %v1497 = vpack.c.b16 %v1404, %v1401
        %v1498 = vpack.c.b16 %v1405, %v1402
        %v1499 = vpack.c.b16 %v1409, %v1406
        %v1500 = vpack.c.b16 %v1410, %v1407
        %v1501 = vpack.c.b16 %v1411, %v1408
        %v1502 = vpack.c.b16 %v1415, %v1412
        %v1503 = vpack.c.b16 %v1416, %v1413
        %v1504 = vpack.c.b16 %v1417, %v1414
        %v1505 = vpack.c.b16 %v1421, %v1418
        %v1506 = vpack.c.b16 %v1422, %v1419
        %v1507 = vpack.c.b16 %v1423, %v1420
        %v1508 = vpack.c.b16 %v1427, %v1424
        %v1509 = vpack.c.b16 %v1428, %v1425
        %v1510 = vpack.c.b16 %v1429, %v1426
        %v1511 = vpack.c.b16 %v1433, %v1430
        %v1512 = vpack.c.b16 %v1434, %v1431
        %v1513 = vpack.c.b16 %v1435, %v1432
        %v1514 = vpack.c.b16 %v1439, %v1436
        %v1515 = vpack.c.b16 %v1440, %v1437
        %v1516 = vpack.c.b16 %v1441, %v1438
        %v1517 = vpack.c.b16 %v1445, %v1442
        %v1518 = vpack.c.b16 %v1446, %v1443
        %v1519 = vpack.c.b16 %v1447, %v1444
        %v1520 = vpack.c.b16 %v1451, %v1448
        %v1521 = vpack.c.b16 %v1452, %v1449
        %v1522 = vpack.c.b16 %v1453, %v1450
        %v1523 = vpack.c.b16 %v1457, %v1454
        %v1524 = vpack.c.b16 %v1458, %v1455
        %v1525 = vpack.c.b16 %v1459, %v1456
        %v1526 = vpack.c.b16 %v1463, %v1460
        %v1527 = vpack.c.b16 %v1464, %v1461
        %v1528 = vpack.c.b16 %v1465, %v1462
        %v1529 = vpack.c.b16 %v1469, %v1466
        %v1530 = vpack.c.b16 %v1470, %v1467
        %v1531 = vpack.c.b16 %v1471, %v1468
        %v1532 = vpack.c.b16 %v1475, %v1472
        %v1533 = vpack.c.b16 %v1476, %v1473
        %v1534 = vpack.c.b16 %v1477, %v1474
        %v1535 = vpack.c.b16 %v1481, %v1478
        %v1536 = vpack.c.b16 %v1482, %v1479
        %v1537 = vpack.c.b16 %v1483, %v1480
        %v1538 = vpack.c.b16 %v1487, %v1484
        %v1539 = vpack.c.b16 %v1488, %v1485
        %v1540 = vpack.c.b16 %v1489, %v1486
        %v1541 = vpack.c.b16 %v1493, %v1490
        %v1542 = vpack.c.b16 %v1494, %v1491
        %v1543 = vpack.c.b16 %v1495, %v1492
        %1592 = vmatprep.subr.bf16.mxu0 %v1518
        %1593 = vmatpush1.bf16.msra.mxu0 %v1517
        %1594 = vmatprep.subr.bf16.mxu0 %v1515
        %1595 = vmatpush1.bf16.msra.mxu0 %v1514
        %1596 = vmatprep.subr.bf16.mxu0 %v1512
        %1597 = vmatpush1.bf16.msra.mxu0 %v1511
        %1598 = vmatprep.subr.bf16.mxu0 %v1509
        %1599 = vmatpush1.bf16.msra.mxu0 %v1508
        %1600 = vmatprep.subr.bf16.mxu0 %v1506
        %1601 = vmatpush1.bf16.msra.mxu0 %v1505
        %1602 = vmatprep.subr.bf16.mxu0 %v1503
        %1603 = vmatpush1.bf16.msra.mxu0 %v1502
        %1604 = vmatprep.subr.bf16.mxu0 %v1500
        %1605 = vmatpush1.bf16.msra.mxu0 %v1499
        %1606 = vmatprep.subr.bf16.mxu0 %v1497
        %1607 = vmatpush1.bf16.msra.mxu0 %v1496
        %1608 = vmatprep.subr.bf16.mxu0 %v1542
        %1609 = vmatpush2.bf16.msra.mxu0 %v1541
        %1610 = vmatprep.subr.bf16.mxu0 %v1539
        %1611 = vmatpush2.bf16.msra.mxu0 %v1538
        %1612 = vmatprep.subr.bf16.mxu0 %v1536
        %1613 = vmatpush2.bf16.msra.mxu0 %v1535
        %1614 = vmatprep.subr.bf16.mxu0 %v1533
        %1615 = vmatpush2.bf16.msra.mxu0 %v1532
        %1616 = vmatprep.subr.bf16.mxu0 %v1530
        %1617 = vmatpush2.bf16.msra.mxu0 %v1529
        %1618 = vmatprep.subr.bf16.mxu0 %v1527
        %1619 = vmatpush2.bf16.msra.mxu0 %v1526
        %1620 = vmatprep.subr.bf16.mxu0 %v1524
        %1621 = vmatpush2.bf16.msra.mxu0 %v1523
        %1622 = vmatprep.subr.bf16.mxu0 %v1521
        %1623 = vmatpush2.bf16.msra.mxu0 %v1520
        %1624 = vmatprep.mubr.bf16.mxu0 %v867
        %1625 = vmatmul.mubr.bf16.gmra.mxu0 %v866
        %v1626 = vpop.f32.mrf.mxu0
        %v1627 = vadd.f32 0.0, %v1626
        %v1628 = vpop.f32.mrf.mxu0
        %v1629 = vadd.f32 0.0, %v1628
        %v1630 = vpop.f32.mrf.mxu0
        %v1631 = vadd.f32 0.0, %v1630
        %v1632 = vpop.f32.mrf.mxu0
        %v1633 = vadd.f32 0.0, %v1632
        %1634 = vdwg.mxu0
        %1635 = vmatprep.subr.bf16.mxu0 0
        %1636 = vmatpush1.bf16.msra.mxu0 %v1519
        %1637 = vmatprep.subr.bf16.mxu0 0
        %1638 = vmatpush1.bf16.msra.mxu0 %v1516
        %1639 = vmatprep.subr.bf16.mxu0 0
        %1640 = vmatpush1.bf16.msra.mxu0 %v1513
        %1641 = vmatprep.subr.bf16.mxu0 0
        %1642 = vmatpush1.bf16.msra.mxu0 %v1510
        %1643 = vmatprep.subr.bf16.mxu0 0
        %1644 = vmatpush1.bf16.msra.mxu0 %v1507
        %1645 = vmatprep.subr.bf16.mxu0 0
        %1646 = vmatpush1.bf16.msra.mxu0 %v1504
        %1647 = vmatprep.subr.bf16.mxu0 0
        %1648 = vmatpush1.bf16.msra.mxu0 %v1501
        %1649 = vmatprep.subr.bf16.mxu0 0
        %1650 = vmatpush1.bf16.msra.mxu0 %v1498
        %1651 = vmatprep.subr.bf16.mxu0 0
        %1652 = vmatpush2.bf16.msra.mxu0 %v1543
        %1653 = vmatprep.subr.bf16.mxu0 0
        %1654 = vmatpush2.bf16.msra.mxu0 %v1540
        %1655 = vmatprep.subr.bf16.mxu0 0
        %1656 = vmatpush2.bf16.msra.mxu0 %v1537
        %1657 = vmatprep.subr.bf16.mxu0 0
        %1658 = vmatpush2.bf16.msra.mxu0 %v1534
        %1659 = vmatprep.subr.bf16.mxu0 0
        %1660 = vmatpush2.bf16.msra.mxu0 %v1531
        %1661 = vmatprep.subr.bf16.mxu0 0
        %1662 = vmatpush2.bf16.msra.mxu0 %v1528
        %1663 = vmatprep.subr.bf16.mxu0 0
        %1664 = vmatpush2.bf16.msra.mxu0 %v1525
        %1665 = vmatprep.subr.bf16.mxu0 0
        %1666 = vmatpush2.bf16.msra.mxu0 %v1522
        %1667 = vmatprep.mubr.bf16.mxu0 %v867
        %1668 = vmatmul.mubr.bf16.gmra.mxu0 %v866
        %v1669 = vpop.f32.mrf.mxu0
        %v1670 = vadd.f32 0.0, %v1669
        %v1671 = vpop.f32.mrf.mxu0
        %v1672 = vpop.f32.mrf.mxu0
        %v1673 = vadd.f32 0.0, %v1672
        %v1674 = vpop.f32.mrf.mxu0
        %1675 = vdwg.mxu0
        %v1676 = vmul.f32 %v1287, 0.088388346
        %v1677 = vmul.f32 %v1291, 0.088388346
        %v1678 = vmul.f32 %v1627, 0.088388346
        %v1679 = vmul.f32 %v1631, 0.088388346
        %v1680 = vpack.c.bf16 %v1677, %v1676
        %v1681 = vpack.c.bf16 %v1679, %v1678
        %v1682 = vpack.c.bf16 %v1293, %v1289
        %v1683 = vpack.c.bf16 %v1633, %v1629
        %v1684 = vpack.c.bf16 %v1333, %v1330
        %v1685 = vpack.c.bf16 %v1673, %v1670
        %1686 = vmatprep.subr.bf16.mxu0 0
        %1687 = vmatpush1.bf16.xpose.msra.mxu0 0
        %1688 = vmatprep.subr.bf16.mxu0 0
        %1689 = vmatpush1.bf16.xpose.msra.mxu0 0
        %1690 = vmatprep.subr.bf16.mxu0 0
        %1691 = vmatpush1.bf16.xpose.msra.mxu0 0
        %1692 = vmatprep.subr.bf16.mxu0 0
        %1693 = vmatpush1.bf16.xpose.msra.mxu0 0
        %1694 = vmatprep.subr.bf16.mxu0 0
        %1695 = vmatpush1.bf16.xpose.msra.mxu0 0
        %1696 = vmatprep.subr.bf16.mxu0 0
        %1697 = vmatpush1.bf16.xpose.msra.mxu0 0
        %1698 = vmatprep.subr.bf16.mxu0 0
        %1699 = vmatpush1.bf16.xpose.msra.mxu0 0
        %1700 = vmatprep.subr.bf16.mxu0 0
        %1701 = vmatpush1.bf16.xpose.msra.mxu0 %v1682
        %1702 = vmatprep.subr.bf16.mxu0 0
        %1703 = vmatpush2.bf16.xpose.msra.mxu0 0
        %1704 = vmatprep.subr.bf16.mxu0 0
        %1705 = vmatpush2.bf16.xpose.msra.mxu0 0
        %1706 = vmatprep.subr.bf16.mxu0 0
        %1707 = vmatpush2.bf16.xpose.msra.mxu0 0
        %1708 = vmatprep.subr.bf16.mxu0 0
        %1709 = vmatpush2.bf16.xpose.msra.mxu0 0
        %1710 = vmatprep.subr.bf16.mxu0 0
        %1711 = vmatpush2.bf16.xpose.msra.mxu0 0
        %1712 = vmatprep.subr.bf16.mxu0 0
        %1713 = vmatpush2.bf16.xpose.msra.mxu0 0
        %1714 = vmatprep.subr.bf16.mxu0 0
        %1715 = vmatpush2.bf16.xpose.msra.mxu0 0
        %1716 = vmatprep.subr.bf16.mxu0 0
        %1717 = vmatpush2.bf16.xpose.msra.mxu0 0
        %1718 = vmatprep.mubr.bf16.mxu0 0
        %1719 = vmatmul.mubr.bf16.gmra.mxu0 %v1680
        %v1720 = vpop.f32.mrf.mxu0
        %v1721 = vadd.f32 0.0, %v1720
        %v1722 = vpop.f32.mrf.mxu0
        %v1723 = vpop.f32.mrf.mxu0
        %v1724 = vadd.f32 0.0, %v1723
        %v1725 = vpop.f32.mrf.mxu0
        %1726 = vdwg.mxu0
        %1727 = vmatprep.subr.bf16.mxu0 0
        %1728 = vmatpush1.bf16.xpose.msra.mxu0 0
        %1729 = vmatprep.subr.bf16.mxu0 0
        %1730 = vmatpush1.bf16.xpose.msra.mxu0 0
        %1731 = vmatprep.subr.bf16.mxu0 0
        %1732 = vmatpush1.bf16.xpose.msra.mxu0 0
        %1733 = vmatprep.subr.bf16.mxu0 0
        %1734 = vmatpush1.bf16.xpose.msra.mxu0 0
        %1735 = vmatprep.subr.bf16.mxu0 0
        %1736 = vmatpush1.bf16.xpose.msra.mxu0 0
        %1737 = vmatprep.subr.bf16.mxu0 0
        %1738 = vmatpush1.bf16.xpose.msra.mxu0 0
        %1739 = vmatprep.subr.bf16.mxu0 0
        %1740 = vmatpush1.bf16.xpose.msra.mxu0 0
        %1741 = vmatprep.subr.bf16.mxu0 0
        %1742 = vmatpush1.bf16.xpose.msra.mxu0 %v1683
        %1743 = vmatprep.subr.bf16.mxu0 0
        %1744 = vmatpush2.bf16.xpose.msra.mxu0 0
        %1745 = vmatprep.subr.bf16.mxu0 0
        %1746 = vmatpush2.bf16.xpose.msra.mxu0 0
        %1747 = vmatprep.subr.bf16.mxu0 0
        %1748 = vmatpush2.bf16.xpose.msra.mxu0 0
        %1749 = vmatprep.subr.bf16.mxu0 0
        %1750 = vmatpush2.bf16.xpose.msra.mxu0 0
        %1751 = vmatprep.subr.bf16.mxu0 0
        %1752 = vmatpush2.bf16.xpose.msra.mxu0 0
        %1753 = vmatprep.subr.bf16.mxu0 0
        %1754 = vmatpush2.bf16.xpose.msra.mxu0 0
        %1755 = vmatprep.subr.bf16.mxu0 0
        %1756 = vmatpush2.bf16.xpose.msra.mxu0 0
        %1757 = vmatprep.subr.bf16.mxu0 0
        %1758 = vmatpush2.bf16.xpose.msra.mxu0 0
        %1759 = vmatprep.mubr.bf16.mxu0 0
        %1760 = vmatmul.mubr.bf16.gmra.mxu0 %v1681
        %v1761 = vpop.f32.mrf.mxu0
        %v1762 = vadd.f32 0.0, %v1761
        %v1763 = vpop.f32.mrf.mxu0
        %v1764 = vpop.f32.mrf.mxu0
        %v1765 = vadd.f32 0.0, %v1764
        %v1766 = vpop.f32.mrf.mxu0
        %1767 = vdwg.mxu0
        %vm1768 = vcmask 130048
        %v1769 = vsel %vm1768, %v1721, -inf
        %1770 = vmax.xlane.f32.xlu0 %v1769
        %v1771 = vpop.xlane.xlu0 %1770
        %v1772 = vsel %vm1768, %v1724, -inf
        %1773 = vmax.xlane.f32.xlu0 %v1772
        %v1774 = vpop.xlane.xlu0 %1773
        %v1775 = vsel %vm1768, %v1762, -inf
        %1776 = vmax.xlane.f32.xlu0 %v1775
        %v1777 = vpop.xlane.xlu0 %1776
        %v1778 = vsel %vm1768, %v1765, -inf
        %1779 = vmax.xlane.f32.xlu0 %v1778
        %v1780 = vpop.xlane.xlu0 %1779
        %v1781 = vsub.f32 %v1721, %v1771
        %v1782 = vsub.f32 %v1724, %v1774
        %v1783 = vsub.f32 %v1762, %v1777
        %v1784 = vsub.f32 %v1765, %v1780
        %v1785 = vmul.f32 %v1781, 1.442695
        %v1786 = vpow.pop %v1785
        %v1787 = vmul.f32 %v1782, 1.442695
        %v1788 = vpow.pop %v1787
        %v1789 = vmul.f32 %v1783, 1.442695
        %v1790 = vpow.pop %v1789
        %v1791 = vmul.f32 %v1784, 1.442695
        %v1792 = vpow.pop %v1791
        %v1793 = vsel %vm1768, %v1786, 0.0
        %1794 = vadd.xlane.f32.xlu0 %v1793
        %v1795 = vpop.xlane.xlu0 %1794
        %v1796 = vsel %vm1768, %v1788, 0.0
        %1797 = vadd.xlane.f32.xlu0 %v1796
        %v1798 = vpop.xlane.xlu0 %1797
        %v1799 = vsel %vm1768, %v1790, 0.0
        %1800 = vadd.xlane.f32.xlu0 %v1799
        %v1801 = vpop.xlane.xlu0 %1800
        %v1802 = vsel %vm1768, %v1792, 0.0
        %1803 = vadd.xlane.f32.xlu0 %v1802
        %v1804 = vpop.xlane.xlu0 %1803
        %v1805 = vrcp.pop %v1795
        %v1806 = vrcp.pop %v1798
        %v1807 = vrcp.pop %v1801
        %v1808 = vrcp.pop %v1804
        %v1809 = vmul.f32 %v1786, %v1805
        %v1810 = vmul.f32 %v1788, %v1806
        %v1811 = vmul.f32 %v1790, %v1807
        %v1812 = vmul.f32 %v1792, %v1808
        %v1813 = vpack.c.bf16 %v1810, %v1809
        %v1814 = vpack.c.bf16 %v1812, %v1811
        %v1816 = vsel %vm1768, %v1813, 0
        %1818 = vmatprep.subr.bf16.mxu0 0
        %1819 = vmatpush1.bf16.msra.mxu0 0
        %1820 = vmatprep.subr.bf16.mxu0 0
        %1821 = vmatpush1.bf16.msra.mxu0 0
        %1822 = vmatprep.subr.bf16.mxu0 0
        %1823 = vmatpush1.bf16.msra.mxu0 0
        %1824 = vmatprep.subr.bf16.mxu0 0
        %1825 = vmatpush1.bf16.msra.mxu0 0
        %1826 = vmatprep.subr.bf16.mxu0 0
        %1827 = vmatpush1.bf16.msra.mxu0 0
        %1828 = vmatprep.subr.bf16.mxu0 0
        %1829 = vmatpush1.bf16.msra.mxu0 0
        %1830 = vmatprep.subr.bf16.mxu0 0
        %1831 = vmatpush1.bf16.msra.mxu0 0
        %1832 = vmatprep.subr.bf16.mxu0 0
        %1833 = vmatpush1.bf16.msra.mxu0 %v1684
        %1834 = vmatprep.subr.bf16.mxu0 0
        %1835 = vmatpush2.bf16.msra.mxu0 0
        %1836 = vmatprep.subr.bf16.mxu0 0
        %1837 = vmatpush2.bf16.msra.mxu0 0
        %1838 = vmatprep.subr.bf16.mxu0 0
        %1839 = vmatpush2.bf16.msra.mxu0 0
        %1840 = vmatprep.subr.bf16.mxu0 0
        %1841 = vmatpush2.bf16.msra.mxu0 0
        %1842 = vmatprep.subr.bf16.mxu0 0
        %1843 = vmatpush2.bf16.msra.mxu0 0
        %1844 = vmatprep.subr.bf16.mxu0 0
        %1845 = vmatpush2.bf16.msra.mxu0 0
        %1846 = vmatprep.subr.bf16.mxu0 0
        %1847 = vmatpush2.bf16.msra.mxu0 0
        %1848 = vmatprep.subr.bf16.mxu0 0
        %1849 = vmatpush2.bf16.msra.mxu0 0
        %1850 = vmatprep.mubr.bf16.mxu0 0
        %1851 = vmatmul.mubr.bf16.gmra.mxu0 %v1816
        %v1852 = vpop.f32.mrf.mxu0
        %v1853 = vadd.f32 0.0, %v1852
        %v1854 = vpop.f32.mrf.mxu0
        %v1855 = vpop.f32.mrf.mxu0
        %v1856 = vadd.f32 0.0, %v1855
        %v1857 = vpop.f32.mrf.mxu0
        %1858 = vdwg.mxu0
        %v1860 = vsel %vm1768, %v1814, 0
        %1862 = vmatprep.subr.bf16.mxu0 0
        %1863 = vmatpush1.bf16.msra.mxu0 0
        %1864 = vmatprep.subr.bf16.mxu0 0
        %1865 = vmatpush1.bf16.msra.mxu0 0
        %1866 = vmatprep.subr.bf16.mxu0 0
        %1867 = vmatpush1.bf16.msra.mxu0 0
        %1868 = vmatprep.subr.bf16.mxu0 0
        %1869 = vmatpush1.bf16.msra.mxu0 0
        %1870 = vmatprep.subr.bf16.mxu0 0
        %1871 = vmatpush1.bf16.msra.mxu0 0
        %1872 = vmatprep.subr.bf16.mxu0 0
        %1873 = vmatpush1.bf16.msra.mxu0 0
        %1874 = vmatprep.subr.bf16.mxu0 0
        %1875 = vmatpush1.bf16.msra.mxu0 0
        %1876 = vmatprep.subr.bf16.mxu0 0
        %1877 = vmatpush1.bf16.msra.mxu0 %v1685
        %1878 = vmatprep.subr.bf16.mxu0 0
        %1879 = vmatpush2.bf16.msra.mxu0 0
        %1880 = vmatprep.subr.bf16.mxu0 0
        %1881 = vmatpush2.bf16.msra.mxu0 0
        %1882 = vmatprep.subr.bf16.mxu0 0
        %1883 = vmatpush2.bf16.msra.mxu0 0
        %1884 = vmatprep.subr.bf16.mxu0 0
        %1885 = vmatpush2.bf16.msra.mxu0 0
        %1886 = vmatprep.subr.bf16.mxu0 0
        %1887 = vmatpush2.bf16.msra.mxu0 0
        %1888 = vmatprep.subr.bf16.mxu0 0
        %1889 = vmatpush2.bf16.msra.mxu0 0
        %1890 = vmatprep.subr.bf16.mxu0 0
        %1891 = vmatpush2.bf16.msra.mxu0 0
        %1892 = vmatprep.subr.bf16.mxu0 0
        %1893 = vmatpush2.bf16.msra.mxu0 0
        %1894 = vmatprep.mubr.bf16.mxu0 0
        %1895 = vmatmul.mubr.bf16.gmra.mxu0 %v1860
        %v1896 = vpop.f32.mrf.mxu0
        %v1897 = vadd.f32 0.0, %v1896
        %v1898 = vpop.f32.mrf.mxu0
        %v1899 = vpop.f32.mrf.mxu0
        %v1900 = vadd.f32 0.0, %v1899
        %v1901 = vpop.f32.mrf.mxu0
        %1902 = vdwg.mxu0
        %v1903 = vpack.c.bf16 %v1856, %v1853
        %v1904 = vpack.c.bf16 %v1900, %v1897
        %v1905 = vld [vmem:[%s558] sm:$0xff]
        %v1906 = vld [vmem:[%s558 + $0x8] sm:$0xff]
        %v1907 = vld [vmem:[%s558 + $0x10] sm:$0xff]
        %v1908 = vld [vmem:[%s558 + $0x18] sm:$0xff]
        %v1909 = vld [vmem:[%s558 + $0x20] sm:$0xff]
        %v1910 = vld [vmem:[%s558 + $0x28] sm:$0xff]
        %v1911 = vld [vmem:[%s558 + $0x30] sm:$0xff]
        %v1912 = vld [vmem:[%s558 + $0x38] sm:$0xff]
        %v1913 = vld [vmem:[%s558 + $0x40] sm:$0xff]
        %v1914 = vld [vmem:[%s558 + $0x48] sm:$0xff]
        %v1915 = vld [vmem:[%s558 + $0x50] sm:$0xff]
        %v1916 = vld [vmem:[%s558 + $0x58] sm:$0xff]
        %v1917 = vld [vmem:[%s558 + $0x60] sm:$0xff]
        %v1918 = vld [vmem:[%s558 + $0x68] sm:$0xff]
        %v1919 = vld [vmem:[%s558 + $0x70] sm:$0xff]
        %v1920 = vld [vmem:[%s558 + $0x78] sm:$0xff]
        %v1921 = vld [vmem:[%s558 + $0x80] sm:$0xff]
        %v1922 = vld [vmem:[%s558 + $0x88] sm:$0xff]
        %v1923 = vld [vmem:[%s558 + $0x90] sm:$0xff]
        %v1924 = vld [vmem:[%s558 + $0x98] sm:$0xff]
        %v1925 = vld [vmem:[%s558 + $0xa0] sm:$0xff]
        %v1926 = vld [vmem:[%s558 + $0xa8] sm:$0xff]
        %v1927 = vld [vmem:[%s558 + $0xb0] sm:$0xff]
        %v1928 = vld [vmem:[%s558 + $0xb8] sm:$0xff]
        %v1929 = vld [vmem:[%s558 + $0xc0] sm:$0xff]
        %v1930 = vld [vmem:[%s558 + $0xc8] sm:$0xff]
        %v1931 = vld [vmem:[%s558 + $0xd0] sm:$0xff]
        %v1932 = vld [vmem:[%s558 + $0xd8] sm:$0xff]
        %v1933 = vld [vmem:[%s558 + $0xe0] sm:$0xff]
        %v1934 = vld [vmem:[%s558 + $0xe8] sm:$0xff]
        %v1935 = vld [vmem:[%s558 + $0xf0] sm:$0xff]
        %v1936 = vld [vmem:[%s558 + $0xf8] sm:$0xff]
        %v1953 = vunpack.c.l.b16 %v1905
        %v1954 = vunpack.c.h.b16 %v1905
        %v1955 = vunpack.c.l.b16 %v1906
        %v1956 = vunpack.c.h.b16 %v1906
        %v1957 = vunpack.c.l.b16 %v1907
        %v1958 = vunpack.c.h.b16 %v1907
        %v1959 = vunpack.c.l.b16 %v1908
        %v1960 = vunpack.c.h.b16 %v1908
        %v1961 = vunpack.c.l.b16 %v1909
        %v1962 = vunpack.c.h.b16 %v1909
        %v1963 = vunpack.c.l.b16 %v1910
        %v1964 = vunpack.c.h.b16 %v1910
        %v1965 = vunpack.c.l.b16 %v1911
        %v1966 = vunpack.c.h.b16 %v1911
        %v1967 = vunpack.c.l.b16 %v1912
        %v1968 = vunpack.c.h.b16 %v1912
        %v1969 = vunpack.c.l.b16 %v1913
        %v1970 = vunpack.c.h.b16 %v1913
        %v1971 = vunpack.c.l.b16 %v1914
        %v1972 = vunpack.c.h.b16 %v1914
        %v1973 = vunpack.c.l.b16 %v1915
        %v1974 = vunpack.c.h.b16 %v1915
        %v1975 = vunpack.c.l.b16 %v1916
        %v1976 = vunpack.c.h.b16 %v1916
        %v1977 = vunpack.c.l.b16 %v1917
        %v1978 = vunpack.c.h.b16 %v1917
        %v1979 = vunpack.c.l.b16 %v1918
        %v1980 = vunpack.c.h.b16 %v1918
        %v1981 = vunpack.c.l.b16 %v1919
        %v1982 = vunpack.c.h.b16 %v1919
        %v1983 = vunpack.c.l.b16 %v1920
        %v1984 = vunpack.c.h.b16 %v1920
        %v1985 = vpack.c.b16 %v1955, %v1953
        %v1986 = vpack.c.b16 %v1956, %v1954
        %v1987 = vpack.c.b16 %v1959, %v1957
        %v1988 = vpack.c.b16 %v1960, %v1958
        %v1989 = vpack.c.b16 %v1963, %v1961
        %v1990 = vpack.c.b16 %v1964, %v1962
        %v1991 = vpack.c.b16 %v1967, %v1965
        %v1992 = vpack.c.b16 %v1968, %v1966
        %v1993 = vpack.c.b16 %v1971, %v1969
        %v1994 = vpack.c.b16 %v1972, %v1970
        %v1995 = vpack.c.b16 %v1975, %v1973
        %v1996 = vpack.c.b16 %v1976, %v1974
        %v1997 = vpack.c.b16 %v1979, %v1977
        %v1998 = vpack.c.b16 %v1980, %v1978
        %v1999 = vpack.c.b16 %v1983, %v1981
        %v2000 = vpack.c.b16 %v1984, %v1982
        %2017 = vmatprep.subr.bf16.mxu0 %v2000
        %2018 = vmatpush1.bf16.msra.mxu0 %v1999
        %2019 = vmatprep.subr.bf16.mxu0 %v1998
        %2020 = vmatpush1.bf16.msra.mxu0 %v1997
        %2021 = vmatprep.subr.bf16.mxu0 %v1996
        %2022 = vmatpush1.bf16.msra.mxu0 %v1995
        %2023 = vmatprep.subr.bf16.mxu0 %v1994
        %2024 = vmatpush1.bf16.msra.mxu0 %v1993
        %2025 = vmatprep.subr.bf16.mxu0 %v1992
        %2026 = vmatpush1.bf16.msra.mxu0 %v1991
        %2027 = vmatprep.subr.bf16.mxu0 %v1990
        %2028 = vmatpush1.bf16.msra.mxu0 %v1989
        %2029 = vmatprep.subr.bf16.mxu0 %v1988
        %2030 = vmatpush1.bf16.msra.mxu0 %v1987
        %2031 = vmatprep.subr.bf16.mxu0 %v1986
        %2032 = vmatpush1.bf16.msra.mxu0 %v1985
        %2033 = vmatprep.subr.bf16.mxu0 0
        %2034 = vmatpush2.bf16.msra.mxu0 0
        %2035 = vmatprep.subr.bf16.mxu0 0
        %2036 = vmatpush2.bf16.msra.mxu0 0
        %2037 = vmatprep.subr.bf16.mxu0 0
        %2038 = vmatpush2.bf16.msra.mxu0 0
        %2039 = vmatprep.subr.bf16.mxu0 0
        %2040 = vmatpush2.bf16.msra.mxu0 0
        %2041 = vmatprep.subr.bf16.mxu0 0
        %2042 = vmatpush2.bf16.msra.mxu0 0
        %2043 = vmatprep.subr.bf16.mxu0 0
        %2044 = vmatpush2.bf16.msra.mxu0 0
        %2045 = vmatprep.subr.bf16.mxu0 0
        %2046 = vmatpush2.bf16.msra.mxu0 0
        %2047 = vmatprep.subr.bf16.mxu0 0
        %2048 = vmatpush2.bf16.msra.mxu0 0
        %2049 = vmatprep.mubr.bf16.mxu0 0
        %2050 = vmatmul.mubr.bf16.gmra.mxu0 %v1903
        %v2051 = vpop.f32.mrf.mxu0
        %v2052 = vadd.f32 0.0, %v2051
        %v2053 = vpop.f32.mrf.mxu0
        %v2054 = vadd.f32 0.0, %v2053
        %v2055 = vpop.f32.mrf.mxu0
        %v2056 = vadd.f32 0.0, %v2055
        %v2057 = vpop.f32.mrf.mxu0
        %v2058 = vadd.f32 0.0, %v2057
        %2059 = vdwg.mxu0
        %v2076 = vunpack.c.l.b16 %v1921
        %v2077 = vunpack.c.h.b16 %v1921
        %v2078 = vunpack.c.l.b16 %v1922
        %v2079 = vunpack.c.h.b16 %v1922
        %v2080 = vunpack.c.l.b16 %v1923
        %v2081 = vunpack.c.h.b16 %v1923
        %v2082 = vunpack.c.l.b16 %v1924
        %v2083 = vunpack.c.h.b16 %v1924
        %v2084 = vunpack.c.l.b16 %v1925
        %v2085 = vunpack.c.h.b16 %v1925
        %v2086 = vunpack.c.l.b16 %v1926
        %v2087 = vunpack.c.h.b16 %v1926
        %v2088 = vunpack.c.l.b16 %v1927
        %v2089 = vunpack.c.h.b16 %v1927
        %v2090 = vunpack.c.l.b16 %v1928
        %v2091 = vunpack.c.h.b16 %v1928
        %v2092 = vunpack.c.l.b16 %v1929
        %v2093 = vunpack.c.h.b16 %v1929
        %v2094 = vunpack.c.l.b16 %v1930
        %v2095 = vunpack.c.h.b16 %v1930
        %v2096 = vunpack.c.l.b16 %v1931
        %v2097 = vunpack.c.h.b16 %v1931
        %v2098 = vunpack.c.l.b16 %v1932
        %v2099 = vunpack.c.h.b16 %v1932
        %v2100 = vunpack.c.l.b16 %v1933
        %v2101 = vunpack.c.h.b16 %v1933
        %v2102 = vunpack.c.l.b16 %v1934
        %v2103 = vunpack.c.h.b16 %v1934
        %v2104 = vunpack.c.l.b16 %v1935
        %v2105 = vunpack.c.h.b16 %v1935
        %v2106 = vunpack.c.l.b16 %v1936
        %v2107 = vunpack.c.h.b16 %v1936
        %v2108 = vpack.c.b16 %v2078, %v2076
        %v2109 = vpack.c.b16 %v2079, %v2077
        %v2110 = vpack.c.b16 %v2082, %v2080
        %v2111 = vpack.c.b16 %v2083, %v2081
        %v2112 = vpack.c.b16 %v2086, %v2084
        %v2113 = vpack.c.b16 %v2087, %v2085
        %v2114 = vpack.c.b16 %v2090, %v2088
        %v2115 = vpack.c.b16 %v2091, %v2089
        %v2116 = vpack.c.b16 %v2094, %v2092
        %v2117 = vpack.c.b16 %v2095, %v2093
        %v2118 = vpack.c.b16 %v2098, %v2096
        %v2119 = vpack.c.b16 %v2099, %v2097
        %v2120 = vpack.c.b16 %v2102, %v2100
        %v2121 = vpack.c.b16 %v2103, %v2101
        %v2122 = vpack.c.b16 %v2106, %v2104
        %v2123 = vpack.c.b16 %v2107, %v2105
        %2140 = vmatprep.subr.bf16.mxu0 %v2123
        %2141 = vmatpush1.bf16.msra.mxu0 %v2122
        %2142 = vmatprep.subr.bf16.mxu0 %v2121
        %2143 = vmatpush1.bf16.msra.mxu0 %v2120
        %2144 = vmatprep.subr.bf16.mxu0 %v2119
        %2145 = vmatpush1.bf16.msra.mxu0 %v2118
        %2146 = vmatprep.subr.bf16.mxu0 %v2117
        %2147 = vmatpush1.bf16.msra.mxu0 %v2116
        %2148 = vmatprep.subr.bf16.mxu0 %v2115
        %2149 = vmatpush1.bf16.msra.mxu0 %v2114
        %2150 = vmatprep.subr.bf16.mxu0 %v2113
        %2151 = vmatpush1.bf16.msra.mxu0 %v2112
        %2152 = vmatprep.subr.bf16.mxu0 %v2111
        %2153 = vmatpush1.bf16.msra.mxu0 %v2110
        %2154 = vmatprep.subr.bf16.mxu0 %v2109
        %2155 = vmatpush1.bf16.msra.mxu0 %v2108
        %2156 = vmatprep.subr.bf16.mxu0 0
        %2157 = vmatpush2.bf16.msra.mxu0 0
        %2158 = vmatprep.subr.bf16.mxu0 0
        %2159 = vmatpush2.bf16.msra.mxu0 0
        %2160 = vmatprep.subr.bf16.mxu0 0
        %2161 = vmatpush2.bf16.msra.mxu0 0
        %2162 = vmatprep.subr.bf16.mxu0 0
        %2163 = vmatpush2.bf16.msra.mxu0 0
        %2164 = vmatprep.subr.bf16.mxu0 0
        %2165 = vmatpush2.bf16.msra.mxu0 0
        %2166 = vmatprep.subr.bf16.mxu0 0
        %2167 = vmatpush2.bf16.msra.mxu0 0
        %2168 = vmatprep.subr.bf16.mxu0 0
        %2169 = vmatpush2.bf16.msra.mxu0 0
        %2170 = vmatprep.subr.bf16.mxu0 0
        %2171 = vmatpush2.bf16.msra.mxu0 0
        %2172 = vmatprep.mubr.bf16.mxu0 0
        %2173 = vmatmul.mubr.bf16.gmra.mxu0 %v1904
        %v2174 = vpop.f32.mrf.mxu0
        %v2175 = vadd.f32 0.0, %v2174
        %v2176 = vpop.f32.mrf.mxu0
        %v2177 = vadd.f32 0.0, %v2176
        %v2178 = vpop.f32.mrf.mxu0
        %v2179 = vadd.f32 0.0, %v2178
        %v2180 = vpop.f32.mrf.mxu0
        %v2181 = vadd.f32 0.0, %v2180
        %2182 = vdwg.mxu0
        %v2183 = vadd.f32 %v2052, %v2175
        %v2184 = vadd.f32 %v2054, %v2177
        %v2185 = vadd.f32 %v2056, %v2179
        %v2186 = vadd.f32 %v2058, %v2181
        %v2187 = vadd.f32 %v797, %v2183
        %v2188 = vadd.f32 %v798, %v2184
        %v2189 = vadd.f32 %v799, %v2185
        %v2190 = vadd.f32 %v800, %v2186
        %v2191 = vld [vmem:[%s677] sm:$0x3]
        %v2192 = vld [vmem:[%s681] sm:$0x3]
        %v2193 = vadd.f32 %v2187, %v2188
        %2194 = vadd.xlane.f32.xlu0 %v2193
        %v2195 = vpop.xlane.xlu0 %2194
        %v2196 = vadd.f32 %v2189, %v2190
        %2197 = vadd.xlane.f32.xlu0 %v2196
        %v2198 = vpop.xlane.xlu0 %2197
        %v2199 = vmul.f32 %v2195, %v809
        %v2200 = vmul.f32 %v2198, %v809
        %v2201 = vsub.f32 %v2187, %v2199
        %v2202 = vsub.f32 %v2188, %v2199
        %v2203 = vsub.f32 %v2189, %v2200
        %v2204 = vsub.f32 %v2190, %v2200
        %v2205 = vmul.f32 %v2201, %v2201
        %v2206 = vmul.f32 %v2202, %v2202
        %v2207 = vmul.f32 %v2203, %v2203
        %v2208 = vmul.f32 %v2204, %v2204
        %v2209 = vadd.f32 %v2205, %v2206
        %2210 = vadd.xlane.f32.xlu0 %v2209
        %v2211 = vpop.xlane.xlu0 %2210
        %v2212 = vadd.f32 %v2207, %v2208
        %2213 = vadd.xlane.f32.xlu0 %v2212
        %v2214 = vpop.xlane.xlu0 %2213
        %v2215 = vmul.f32 %v2211, %v809
        %v2216 = vmul.f32 %v2214, %v809
        %v2217 = vadd.f32 %v2215, 1e-05
        %v2218 = vadd.f32 %v2216, 1e-05
        %v2219 = vrsqrt.pop %v2217
        %v2220 = vrsqrt.pop %v2218
        %v2221 = vmul.f32 %v2201, %v2219
        %v2222 = vmul.f32 %v2202, %v2219
        %v2223 = vmul.f32 %v2203, %v2220
        %v2224 = vmul.f32 %v2204, %v2220
        %v2226 = vlaneseq
        %v2227 = vshrl.u32 %v2226, 7
        %v2228 = vsub.s32 0, %v2227
        %v2229 = vrot.slane %v2191, %v2228
        %v2230 = vlaneseq
        %v2231 = vshrl.u32 %v2230, 7
        %v2232 = vsub.s32 1, %v2231
        %v2233 = vrot.slane %v2191, %v2232
        %v2236 = vmul.f32 %v2221, %v2229
        %v2237 = vmul.f32 %v2222, %v2233
        %v2238 = vmul.f32 %v2223, %v2229
        %v2239 = vmul.f32 %v2224, %v2233
        %v2241 = vlaneseq
        %v2242 = vshrl.u32 %v2241, 7
        %v2243 = vsub.s32 0, %v2242
        %v2244 = vrot.slane %v2192, %v2243
        %v2245 = vlaneseq
        %v2246 = vshrl.u32 %v2245, 7
        %v2247 = vsub.s32 1, %v2246
        %v2248 = vrot.slane %v2192, %v2247
        %v2251 = vadd.f32 %v2236, %v2244
        %v2252 = vadd.f32 %v2237, %v2248
        %v2253 = vadd.f32 %v2238, %v2244
        %v2254 = vadd.f32 %v2239, %v2248
        %v2255 = vpack.c.bf16 %v2253, %v2251
        %v2256 = vpack.c.bf16 %v2254, %v2252
        %v2257 = vld [vmem:[%s567] sm:$0xff]
        %v2258 = vld [vmem:[%s567 + $0x8] sm:$0xff]
        %v2259 = vld [vmem:[%s567 + $0x10] sm:$0xff]
        %v2260 = vld [vmem:[%s567 + $0x18] sm:$0xff]
        %v2261 = vld [vmem:[%s567 + $0x20] sm:$0xff]
        %v2262 = vld [vmem:[%s567 + $0x28] sm:$0xff]
        %v2263 = vld [vmem:[%s567 + $0x30] sm:$0xff]
        %v2264 = vld [vmem:[%s567 + $0x38] sm:$0xff]
        %v2265 = vld [vmem:[%s567 + $0x40] sm:$0xff]
        %v2266 = vld [vmem:[%s567 + $0x48] sm:$0xff]
        %v2267 = vld [vmem:[%s567 + $0x50] sm:$0xff]
        %v2268 = vld [vmem:[%s567 + $0x58] sm:$0xff]
        %v2269 = vld [vmem:[%s567 + $0x60] sm:$0xff]
        %v2270 = vld [vmem:[%s567 + $0x68] sm:$0xff]
        %v2271 = vld [vmem:[%s567 + $0x70] sm:$0xff]
        %v2272 = vld [vmem:[%s567 + $0x78] sm:$0xff]
        %v2273 = vld [vmem:[%s567 + $0x80] sm:$0xff]
        %v2274 = vld [vmem:[%s567 + $0x88] sm:$0xff]
        %v2275 = vld [vmem:[%s567 + $0x90] sm:$0xff]
        %v2276 = vld [vmem:[%s567 + $0x98] sm:$0xff]
        %v2277 = vld [vmem:[%s567 + $0xa0] sm:$0xff]
        %v2278 = vld [vmem:[%s567 + $0xa8] sm:$0xff]
        %v2279 = vld [vmem:[%s567 + $0xb0] sm:$0xff]
        %v2280 = vld [vmem:[%s567 + $0xb8] sm:$0xff]
        %v2281 = vld [vmem:[%s567 + $0xc0] sm:$0xff]
        %v2282 = vld [vmem:[%s567 + $0xc8] sm:$0xff]
        %v2283 = vld [vmem:[%s567 + $0xd0] sm:$0xff]
        %v2284 = vld [vmem:[%s567 + $0xd8] sm:$0xff]
        %v2285 = vld [vmem:[%s567 + $0xe0] sm:$0xff]
        %v2286 = vld [vmem:[%s567 + $0xe8] sm:$0xff]
        %v2287 = vld [vmem:[%s567 + $0xf0] sm:$0xff]
        %v2288 = vld [vmem:[%s567 + $0xf8] sm:$0xff]
        %v2289 = vld [vmem:[%s567 + $0x100] sm:$0xff]
        %v2290 = vld [vmem:[%s567 + $0x108] sm:$0xff]
        %v2291 = vld [vmem:[%s567 + $0x110] sm:$0xff]
        %v2292 = vld [vmem:[%s567 + $0x118] sm:$0xff]
        %v2293 = vld [vmem:[%s567 + $0x120] sm:$0xff]
        %v2294 = vld [vmem:[%s567 + $0x128] sm:$0xff]
        %v2295 = vld [vmem:[%s567 + $0x130] sm:$0xff]
        %v2296 = vld [vmem:[%s567 + $0x138] sm:$0xff]
        %v2297 = vld [vmem:[%s567 + $0x140] sm:$0xff]
        %v2298 = vld [vmem:[%s567 + $0x148] sm:$0xff]
        %v2299 = vld [vmem:[%s567 + $0x150] sm:$0xff]
        %v2300 = vld [vmem:[%s567 + $0x158] sm:$0xff]
        %v2301 = vld [vmem:[%s567 + $0x160] sm:$0xff]
        %v2302 = vld [vmem:[%s567 + $0x168] sm:$0xff]
        %v2303 = vld [vmem:[%s567 + $0x170] sm:$0xff]
        %v2304 = vld [vmem:[%s567 + $0x178] sm:$0xff]
        %v2305 = vld [vmem:[%s567 + $0x180] sm:$0xff]
        %v2306 = vld [vmem:[%s567 + $0x188] sm:$0xff]
        %v2307 = vld [vmem:[%s567 + $0x190] sm:$0xff]
        %v2308 = vld [vmem:[%s567 + $0x198] sm:$0xff]
        %v2309 = vld [vmem:[%s567 + $0x1a0] sm:$0xff]
        %v2310 = vld [vmem:[%s567 + $0x1a8] sm:$0xff]
        %v2311 = vld [vmem:[%s567 + $0x1b0] sm:$0xff]
        %v2312 = vld [vmem:[%s567 + $0x1b8] sm:$0xff]
        %v2313 = vld [vmem:[%s567 + $0x1c0] sm:$0xff]
        %v2314 = vld [vmem:[%s567 + $0x1c8] sm:$0xff]
        %v2315 = vld [vmem:[%s567 + $0x1d0] sm:$0xff]
        %v2316 = vld [vmem:[%s567 + $0x1d8] sm:$0xff]
        %v2317 = vld [vmem:[%s567 + $0x1e0] sm:$0xff]
        %v2318 = vld [vmem:[%s567 + $0x1e8] sm:$0xff]
        %v2319 = vld [vmem:[%s567 + $0x1f0] sm:$0xff]
        %v2320 = vld [vmem:[%s567 + $0x1f8] sm:$0xff]
        %v2385 = vunpack.c.l.b16 %v2257
        %v2386 = vunpack.c.h.b16 %v2257
        %v2387 = vunpack.c.l.b16 %v2258
        %v2388 = vunpack.c.h.b16 %v2258
        %v2389 = vunpack.c.l.b16 %v2259
        %v2390 = vunpack.c.h.b16 %v2259
        %v2391 = vunpack.c.l.b16 %v2260
        %v2392 = vunpack.c.h.b16 %v2260
        %v2393 = vunpack.c.l.b16 %v2261
        %v2394 = vunpack.c.h.b16 %v2261
        %v2395 = vunpack.c.l.b16 %v2262
        %v2396 = vunpack.c.h.b16 %v2262
        %v2397 = vunpack.c.l.b16 %v2263
        %v2398 = vunpack.c.h.b16 %v2263
        %v2399 = vunpack.c.l.b16 %v2264
        %v2400 = vunpack.c.h.b16 %v2264
        %v2401 = vunpack.c.l.b16 %v2265
        %v2402 = vunpack.c.h.b16 %v2265
        %v2403 = vunpack.c.l.b16 %v2266
        %v2404 = vunpack.c.h.b16 %v2266
        %v2405 = vunpack.c.l.b16 %v2267
        %v2406 = vunpack.c.h.b16 %v2267
        %v2407 = vunpack.c.l.b16 %v2268
        %v2408 = vunpack.c.h.b16 %v2268
        %v2409 = vunpack.c.l.b16 %v2269
        %v2410 = vunpack.c.h.b16 %v2269
        %v2411 = vunpack.c.l.b16 %v2270
        %v2412 = vunpack.c.h.b16 %v2270
        %v2413 = vunpack.c.l.b16 %v2271
        %v2414 = vunpack.c.h.b16 %v2271
        %v2415 = vunpack.c.l.b16 %v2272
        %v2416 = vunpack.c.h.b16 %v2272
        %v2417 = vunpack.c.l.b16 %v2273
        %v2418 = vunpack.c.h.b16 %v2273
        %v2419 = vunpack.c.l.b16 %v2274
        %v2420 = vunpack.c.h.b16 %v2274
        %v2421 = vunpack.c.l.b16 %v2275
        %v2422 = vunpack.c.h.b16 %v2275
        %v2423 = vunpack.c.l.b16 %v2276
        %v2424 = vunpack.c.h.b16 %v2276
        %v2425 = vunpack.c.l.b16 %v2277
        %v2426 = vunpack.c.h.b16 %v2277
        %v2427 = vunpack.c.l.b16 %v2278
        %v2428 = vunpack.c.h.b16 %v2278
        %v2429 = vunpack.c.l.b16 %v2279
        %v2430 = vunpack.c.h.b16 %v2279
        %v2431 = vunpack.c.l.b16 %v2280
        %v2432 = vunpack.c.h.b16 %v2280
        %v2433 = vunpack.c.l.b16 %v2281
        %v2434 = vunpack.c.h.b16 %v2281
        %v2435 = vunpack.c.l.b16 %v2282
        %v2436 = vunpack.c.h.b16 %v2282
        %v2437 = vunpack.c.l.b16 %v2283
        %v2438 = vunpack.c.h.b16 %v2283
        %v2439 = vunpack.c.l.b16 %v2284
        %v2440 = vunpack.c.h.b16 %v2284
        %v2441 = vunpack.c.l.b16 %v2285
        %v2442 = vunpack.c.h.b16 %v2285
        %v2443 = vunpack.c.l.b16 %v2286
        %v2444 = vunpack.c.h.b16 %v2286
        %v2445 = vunpack.c.l.b16 %v2287
        %v2446 = vunpack.c.h.b16 %v2287
        %v2447 = vunpack.c.l.b16 %v2288
        %v2448 = vunpack.c.h.b16 %v2288
        %v2449 = vunpack.c.l.b16 %v2289
        %v2450 = vunpack.c.h.b16 %v2289
        %v2451 = vunpack.c.l.b16 %v2290
        %v2452 = vunpack.c.h.b16 %v2290
        %v2453 = vunpack.c.l.b16 %v2291
        %v2454 = vunpack.c.h.b16 %v2291
        %v2455 = vunpack.c.l.b16 %v2292
        %v2456 = vunpack.c.h.b16 %v2292
        %v2457 = vunpack.c.l.b16 %v2293
        %v2458 = vunpack.c.h.b16 %v2293
        %v2459 = vunpack.c.l.b16 %v2294
        %v2460 = vunpack.c.h.b16 %v2294
        %v2461 = vunpack.c.l.b16 %v2295
        %v2462 = vunpack.c.h.b16 %v2295
        %v2463 = vunpack.c.l.b16 %v2296
        %v2464 = vunpack.c.h.b16 %v2296
        %v2465 = vunpack.c.l.b16 %v2297
        %v2466 = vunpack.c.h.b16 %v2297
        %v2467 = vunpack.c.l.b16 %v2298
        %v2468 = vunpack.c.h.b16 %v2298
        %v2469 = vunpack.c.l.b16 %v2299
        %v2470 = vunpack.c.h.b16 %v2299
        %v2471 = vunpack.c.l.b16 %v2300
        %v2472 = vunpack.c.h.b16 %v2300
        %v2473 = vunpack.c.l.b16 %v2301
        %v2474 = vunpack.c.h.b16 %v2301
        %v2475 = vunpack.c.l.b16 %v2302
        %v2476 = vunpack.c.h.b16 %v2302
        %v2477 = vunpack.c.l.b16 %v2303
        %v2478 = vunpack.c.h.b16 %v2303
        %v2479 = vunpack.c.l.b16 %v2304
        %v2480 = vunpack.c.h.b16 %v2304
        %v2481 = vunpack.c.l.b16 %v2305
        %v2482 = vunpack.c.h.b16 %v2305
        %v2483 = vunpack.c.l.b16 %v2306
        %v2484 = vunpack.c.h.b16 %v2306
        %v2485 = vunpack.c.l.b16 %v2307
        %v2486 = vunpack.c.h.b16 %v2307
        %v2487 = vunpack.c.l.b16 %v2308
        %v2488 = vunpack.c.h.b16 %v2308
        %v2489 = vunpack.c.l.b16 %v2309
        %v2490 = vunpack.c.h.b16 %v2309
        %v2491 = vunpack.c.l.b16 %v2310
        %v2492 = vunpack.c.h.b16 %v2310
        %v2493 = vunpack.c.l.b16 %v2311
        %v2494 = vunpack.c.h.b16 %v2311
        %v2495 = vunpack.c.l.b16 %v2312
        %v2496 = vunpack.c.h.b16 %v2312
        %v2497 = vunpack.c.l.b16 %v2313
        %v2498 = vunpack.c.h.b16 %v2313
        %v2499 = vunpack.c.l.b16 %v2314
        %v2500 = vunpack.c.h.b16 %v2314
        %v2501 = vunpack.c.l.b16 %v2315
        %v2502 = vunpack.c.h.b16 %v2315
        %v2503 = vunpack.c.l.b16 %v2316
        %v2504 = vunpack.c.h.b16 %v2316
        %v2505 = vunpack.c.l.b16 %v2317
        %v2506 = vunpack.c.h.b16 %v2317
        %v2507 = vunpack.c.l.b16 %v2318
        %v2508 = vunpack.c.h.b16 %v2318
        %v2509 = vunpack.c.l.b16 %v2319
        %v2510 = vunpack.c.h.b16 %v2319
        %v2511 = vunpack.c.l.b16 %v2320
        %v2512 = vunpack.c.h.b16 %v2320
        %v2513 = vpack.c.b16 %v2389, %v2385
        %v2514 = vpack.c.b16 %v2390, %v2386
        %v2515 = vpack.c.b16 %v2391, %v2387
        %v2516 = vpack.c.b16 %v2392, %v2388
        %v2517 = vpack.c.b16 %v2397, %v2393
        %v2518 = vpack.c.b16 %v2398, %v2394
        %v2519 = vpack.c.b16 %v2399, %v2395
        %v2520 = vpack.c.b16 %v2400, %v2396
        %v2521 = vpack.c.b16 %v2405, %v2401
        %v2522 = vpack.c.b16 %v2406, %v2402
        %v2523 = vpack.c.b16 %v2407, %v2403
        %v2524 = vpack.c.b16 %v2408, %v2404
        %v2525 = vpack.c.b16 %v2413, %v2409
        %v2526 = vpack.c.b16 %v2414, %v2410
        %v2527 = vpack.c.b16 %v2415, %v2411
        %v2528 = vpack.c.b16 %v2416, %v2412
        %v2529 = vpack.c.b16 %v2421, %v2417
        %v2530 = vpack.c.b16 %v2422, %v2418
        %v2531 = vpack.c.b16 %v2423, %v2419
        %v2532 = vpack.c.b16 %v2424, %v2420
        %v2533 = vpack.c.b16 %v2429, %v2425
        %v2534 = vpack.c.b16 %v2430, %v2426
        %v2535 = vpack.c.b16 %v2431, %v2427
        %v2536 = vpack.c.b16 %v2432, %v2428
        %v2537 = vpack.c.b16 %v2437, %v2433
        %v2538 = vpack.c.b16 %v2438, %v2434
        %v2539 = vpack.c.b16 %v2439, %v2435
        %v2540 = vpack.c.b16 %v2440, %v2436
        %v2541 = vpack.c.b16 %v2445, %v2441
        %v2542 = vpack.c.b16 %v2446, %v2442
        %v2543 = vpack.c.b16 %v2447, %v2443
        %v2544 = vpack.c.b16 %v2448, %v2444
        %v2545 = vpack.c.b16 %v2453, %v2449
        %v2546 = vpack.c.b16 %v2454, %v2450
        %v2547 = vpack.c.b16 %v2455, %v2451
        %v2548 = vpack.c.b16 %v2456, %v2452
        %v2549 = vpack.c.b16 %v2461, %v2457
        %v2550 = vpack.c.b16 %v2462, %v2458
        %v2551 = vpack.c.b16 %v2463, %v2459
        %v2552 = vpack.c.b16 %v2464, %v2460
        %v2553 = vpack.c.b16 %v2469, %v2465
        %v2554 = vpack.c.b16 %v2470, %v2466
        %v2555 = vpack.c.b16 %v2471, %v2467
        %v2556 = vpack.c.b16 %v2472, %v2468
        %v2557 = vpack.c.b16 %v2477, %v2473
        %v2558 = vpack.c.b16 %v2478, %v2474
        %v2559 = vpack.c.b16 %v2479, %v2475
        %v2560 = vpack.c.b16 %v2480, %v2476
        %v2561 = vpack.c.b16 %v2485, %v2481
        %v2562 = vpack.c.b16 %v2486, %v2482
        %v2563 = vpack.c.b16 %v2487, %v2483
        %v2564 = vpack.c.b16 %v2488, %v2484
        %v2565 = vpack.c.b16 %v2493, %v2489
        %v2566 = vpack.c.b16 %v2494, %v2490
        %v2567 = vpack.c.b16 %v2495, %v2491
        %v2568 = vpack.c.b16 %v2496, %v2492
        %v2569 = vpack.c.b16 %v2501, %v2497
        %v2570 = vpack.c.b16 %v2502, %v2498
        %v2571 = vpack.c.b16 %v2503, %v2499
        %v2572 = vpack.c.b16 %v2504, %v2500
        %v2573 = vpack.c.b16 %v2509, %v2505
        %v2574 = vpack.c.b16 %v2510, %v2506
        %v2575 = vpack.c.b16 %v2511, %v2507
        %v2576 = vpack.c.b16 %v2512, %v2508
        %2641 = vmatprep.subr.bf16.mxu0 %v2542
        %2642 = vmatpush1.bf16.msra.mxu0 %v2541
        %2643 = vmatprep.subr.bf16.mxu0 %v2538
        %2644 = vmatpush1.bf16.msra.mxu0 %v2537
        %2645 = vmatprep.subr.bf16.mxu0 %v2534
        %2646 = vmatpush1.bf16.msra.mxu0 %v2533
        %2647 = vmatprep.subr.bf16.mxu0 %v2530
        %2648 = vmatpush1.bf16.msra.mxu0 %v2529
        %2649 = vmatprep.subr.bf16.mxu0 %v2526
        %2650 = vmatpush1.bf16.msra.mxu0 %v2525
        %2651 = vmatprep.subr.bf16.mxu0 %v2522
        %2652 = vmatpush1.bf16.msra.mxu0 %v2521
        %2653 = vmatprep.subr.bf16.mxu0 %v2518
        %2654 = vmatpush1.bf16.msra.mxu0 %v2517
        %2655 = vmatprep.subr.bf16.mxu0 %v2514
        %2656 = vmatpush1.bf16.msra.mxu0 %v2513
        %2657 = vmatprep.subr.bf16.mxu0 %v2574
        %2658 = vmatpush2.bf16.msra.mxu0 %v2573
        %2659 = vmatprep.subr.bf16.mxu0 %v2570
        %2660 = vmatpush2.bf16.msra.mxu0 %v2569
        %2661 = vmatprep.subr.bf16.mxu0 %v2566
        %2662 = vmatpush2.bf16.msra.mxu0 %v2565
        %2663 = vmatprep.subr.bf16.mxu0 %v2562
        %2664 = vmatpush2.bf16.msra.mxu0 %v2561
        %2665 = vmatprep.subr.bf16.mxu0 %v2558
        %2666 = vmatpush2.bf16.msra.mxu0 %v2557
        %2667 = vmatprep.subr.bf16.mxu0 %v2554
        %2668 = vmatpush2.bf16.msra.mxu0 %v2553
        %2669 = vmatprep.subr.bf16.mxu0 %v2550
        %2670 = vmatpush2.bf16.msra.mxu0 %v2549
        %2671 = vmatprep.subr.bf16.mxu0 %v2546
        %2672 = vmatpush2.bf16.msra.mxu0 %v2545
        %2673 = vmatprep.mubr.bf16.mxu0 %v2256
        %2674 = vmatmul.mubr.bf16.gmra.mxu0 %v2255
        %v2675 = vpop.f32.mrf.mxu0
        %v2676 = vadd.f32 0.0, %v2675
        %v2677 = vpop.f32.mrf.mxu0
        %v2678 = vadd.f32 0.0, %v2677
        %v2679 = vpop.f32.mrf.mxu0
        %v2680 = vadd.f32 0.0, %v2679
        %v2681 = vpop.f32.mrf.mxu0
        %v2682 = vadd.f32 0.0, %v2681
        %2683 = vdwg.mxu0
        %2684 = vmatprep.subr.bf16.mxu0 %v2544
        %2685 = vmatpush1.bf16.msra.mxu0 %v2543
        %2686 = vmatprep.subr.bf16.mxu0 %v2540
        %2687 = vmatpush1.bf16.msra.mxu0 %v2539
        %2688 = vmatprep.subr.bf16.mxu0 %v2536
        %2689 = vmatpush1.bf16.msra.mxu0 %v2535
        %2690 = vmatprep.subr.bf16.mxu0 %v2532
        %2691 = vmatpush1.bf16.msra.mxu0 %v2531
        %2692 = vmatprep.subr.bf16.mxu0 %v2528
        %2693 = vmatpush1.bf16.msra.mxu0 %v2527
        %2694 = vmatprep.subr.bf16.mxu0 %v2524
        %2695 = vmatpush1.bf16.msra.mxu0 %v2523
        %2696 = vmatprep.subr.bf16.mxu0 %v2520
        %2697 = vmatpush1.bf16.msra.mxu0 %v2519
        %2698 = vmatprep.subr.bf16.mxu0 %v2516
        %2699 = vmatpush1.bf16.msra.mxu0 %v2515
        %2700 = vmatprep.subr.bf16.mxu0 %v2576
        %2701 = vmatpush2.bf16.msra.mxu0 %v2575
        %2702 = vmatprep.subr.bf16.mxu0 %v2572
        %2703 = vmatpush2.bf16.msra.mxu0 %v2571
        %2704 = vmatprep.subr.bf16.mxu0 %v2568
        %2705 = vmatpush2.bf16.msra.mxu0 %v2567
        %2706 = vmatprep.subr.bf16.mxu0 %v2564
        %2707 = vmatpush2.bf16.msra.mxu0 %v2563
        %2708 = vmatprep.subr.bf16.mxu0 %v2560
        %2709 = vmatpush2.bf16.msra.mxu0 %v2559
        %2710 = vmatprep.subr.bf16.mxu0 %v2556
        %2711 = vmatpush2.bf16.msra.mxu0 %v2555
        %2712 = vmatprep.subr.bf16.mxu0 %v2552
        %2713 = vmatpush2.bf16.msra.mxu0 %v2551
        %2714 = vmatprep.subr.bf16.mxu0 %v2548
        %2715 = vmatpush2.bf16.msra.mxu0 %v2547
        %2716 = vmatprep.mubr.bf16.mxu0 %v2256
        %2717 = vmatmul.mubr.bf16.gmra.mxu0 %v2255
        %v2718 = vpop.f32.mrf.mxu0
        %v2719 = vadd.f32 0.0, %v2718
        %v2720 = vpop.f32.mrf.mxu0
        %v2721 = vadd.f32 0.0, %v2720
        %v2722 = vpop.f32.mrf.mxu0
        %v2723 = vadd.f32 0.0, %v2722
        %v2724 = vpop.f32.mrf.mxu0
        %v2725 = vadd.f32 0.0, %v2724
        %2726 = vdwg.mxu0
        %v2727 = vpack.c.bf16 %v2680, %v2676
        %v2728 = vpack.c.bf16 %v2682, %v2678
        %v2729 = vpack.c.bf16 %v2723, %v2719
        %v2730 = vpack.c.bf16 %v2725, %v2721
        %v2731 = vld [vmem:[%s576] sm:$0xff]
        %v2732 = vld [vmem:[%s576 + $0x8] sm:$0xff]
        %v2733 = vld [vmem:[%s576 + $0x10] sm:$0xff]
        %v2734 = vld [vmem:[%s576 + $0x18] sm:$0xff]
        %v2735 = vld [vmem:[%s576 + $0x20] sm:$0xff]
        %v2736 = vld [vmem:[%s576 + $0x28] sm:$0xff]
        %v2737 = vld [vmem:[%s576 + $0x30] sm:$0xff]
        %v2738 = vld [vmem:[%s576 + $0x38] sm:$0xff]
        %v2739 = vld [vmem:[%s576 + $0x40] sm:$0xff]
        %v2740 = vld [vmem:[%s576 + $0x48] sm:$0xff]
        %v2741 = vld [vmem:[%s576 + $0x50] sm:$0xff]
        %v2742 = vld [vmem:[%s576 + $0x58] sm:$0xff]
        %v2743 = vld [vmem:[%s576 + $0x60] sm:$0xff]
        %v2744 = vld [vmem:[%s576 + $0x68] sm:$0xff]
        %v2745 = vld [vmem:[%s576 + $0x70] sm:$0xff]
        %v2746 = vld [vmem:[%s576 + $0x78] sm:$0xff]
        %v2747 = vld [vmem:[%s576 + $0x80] sm:$0xff]
        %v2748 = vld [vmem:[%s576 + $0x88] sm:$0xff]
        %v2749 = vld [vmem:[%s576 + $0x90] sm:$0xff]
        %v2750 = vld [vmem:[%s576 + $0x98] sm:$0xff]
        %v2751 = vld [vmem:[%s576 + $0xa0] sm:$0xff]
        %v2752 = vld [vmem:[%s576 + $0xa8] sm:$0xff]
        %v2753 = vld [vmem:[%s576 + $0xb0] sm:$0xff]
        %v2754 = vld [vmem:[%s576 + $0xb8] sm:$0xff]
        %v2755 = vld [vmem:[%s576 + $0xc0] sm:$0xff]
        %v2756 = vld [vmem:[%s576 + $0xc8] sm:$0xff]
        %v2757 = vld [vmem:[%s576 + $0xd0] sm:$0xff]
        %v2758 = vld [vmem:[%s576 + $0xd8] sm:$0xff]
        %v2759 = vld [vmem:[%s576 + $0xe0] sm:$0xff]
        %v2760 = vld [vmem:[%s576 + $0xe8] sm:$0xff]
        %v2761 = vld [vmem:[%s576 + $0xf0] sm:$0xff]
        %v2762 = vld [vmem:[%s576 + $0xf8] sm:$0xff]
        %v2763 = vld [vmem:[%s576 + $0x100] sm:$0xff]
        %v2764 = vld [vmem:[%s576 + $0x108] sm:$0xff]
        %v2765 = vld [vmem:[%s576 + $0x110] sm:$0xff]
        %v2766 = vld [vmem:[%s576 + $0x118] sm:$0xff]
        %v2767 = vld [vmem:[%s576 + $0x120] sm:$0xff]
        %v2768 = vld [vmem:[%s576 + $0x128] sm:$0xff]
        %v2769 = vld [vmem:[%s576 + $0x130] sm:$0xff]
        %v2770 = vld [vmem:[%s576 + $0x138] sm:$0xff]
        %v2771 = vld [vmem:[%s576 + $0x140] sm:$0xff]
        %v2772 = vld [vmem:[%s576 + $0x148] sm:$0xff]
        %v2773 = vld [vmem:[%s576 + $0x150] sm:$0xff]
        %v2774 = vld [vmem:[%s576 + $0x158] sm:$0xff]
        %v2775 = vld [vmem:[%s576 + $0x160] sm:$0xff]
        %v2776 = vld [vmem:[%s576 + $0x168] sm:$0xff]
        %v2777 = vld [vmem:[%s576 + $0x170] sm:$0xff]
        %v2778 = vld [vmem:[%s576 + $0x178] sm:$0xff]
        %v2779 = vld [vmem:[%s576 + $0x180] sm:$0xff]
        %v2780 = vld [vmem:[%s576 + $0x188] sm:$0xff]
        %v2781 = vld [vmem:[%s576 + $0x190] sm:$0xff]
        %v2782 = vld [vmem:[%s576 + $0x198] sm:$0xff]
        %v2783 = vld [vmem:[%s576 + $0x1a0] sm:$0xff]
        %v2784 = vld [vmem:[%s576 + $0x1a8] sm:$0xff]
        %v2785 = vld [vmem:[%s576 + $0x1b0] sm:$0xff]
        %v2786 = vld [vmem:[%s576 + $0x1b8] sm:$0xff]
        %v2787 = vld [vmem:[%s576 + $0x1c0] sm:$0xff]
        %v2788 = vld [vmem:[%s576 + $0x1c8] sm:$0xff]
        %v2789 = vld [vmem:[%s576 + $0x1d0] sm:$0xff]
        %v2790 = vld [vmem:[%s576 + $0x1d8] sm:$0xff]
        %v2791 = vld [vmem:[%s576 + $0x1e0] sm:$0xff]
        %v2792 = vld [vmem:[%s576 + $0x1e8] sm:$0xff]
        %v2793 = vld [vmem:[%s576 + $0x1f0] sm:$0xff]
        %v2794 = vld [vmem:[%s576 + $0x1f8] sm:$0xff]
        %v2859 = vunpack.c.l.b16 %v2731
        %v2860 = vunpack.c.h.b16 %v2731
        %v2861 = vunpack.c.l.b16 %v2732
        %v2862 = vunpack.c.h.b16 %v2732
        %v2863 = vunpack.c.l.b16 %v2733
        %v2864 = vunpack.c.h.b16 %v2733
        %v2865 = vunpack.c.l.b16 %v2734
        %v2866 = vunpack.c.h.b16 %v2734
        %v2867 = vunpack.c.l.b16 %v2735
        %v2868 = vunpack.c.h.b16 %v2735
        %v2869 = vunpack.c.l.b16 %v2736
        %v2870 = vunpack.c.h.b16 %v2736
        %v2871 = vunpack.c.l.b16 %v2737
        %v2872 = vunpack.c.h.b16 %v2737
        %v2873 = vunpack.c.l.b16 %v2738
        %v2874 = vunpack.c.h.b16 %v2738
        %v2875 = vunpack.c.l.b16 %v2739
        %v2876 = vunpack.c.h.b16 %v2739
        %v2877 = vunpack.c.l.b16 %v2740
        %v2878 = vunpack.c.h.b16 %v2740
        %v2879 = vunpack.c.l.b16 %v2741
        %v2880 = vunpack.c.h.b16 %v2741
        %v2881 = vunpack.c.l.b16 %v2742
        %v2882 = vunpack.c.h.b16 %v2742
        %v2883 = vunpack.c.l.b16 %v2743
        %v2884 = vunpack.c.h.b16 %v2743
        %v2885 = vunpack.c.l.b16 %v2744
        %v2886 = vunpack.c.h.b16 %v2744
        %v2887 = vunpack.c.l.b16 %v2745
        %v2888 = vunpack.c.h.b16 %v2745
        %v2889 = vunpack.c.l.b16 %v2746
        %v2890 = vunpack.c.h.b16 %v2746
        %v2891 = vunpack.c.l.b16 %v2747
        %v2892 = vunpack.c.h.b16 %v2747
        %v2893 = vunpack.c.l.b16 %v2748
        %v2894 = vunpack.c.h.b16 %v2748
        %v2895 = vunpack.c.l.b16 %v2749
        %v2896 = vunpack.c.h.b16 %v2749
        %v2897 = vunpack.c.l.b16 %v2750
        %v2898 = vunpack.c.h.b16 %v2750
        %v2899 = vunpack.c.l.b16 %v2751
        %v2900 = vunpack.c.h.b16 %v2751
        %v2901 = vunpack.c.l.b16 %v2752
        %v2902 = vunpack.c.h.b16 %v2752
        %v2903 = vunpack.c.l.b16 %v2753
        %v2904 = vunpack.c.h.b16 %v2753
        %v2905 = vunpack.c.l.b16 %v2754
        %v2906 = vunpack.c.h.b16 %v2754
        %v2907 = vunpack.c.l.b16 %v2755
        %v2908 = vunpack.c.h.b16 %v2755
        %v2909 = vunpack.c.l.b16 %v2756
        %v2910 = vunpack.c.h.b16 %v2756
        %v2911 = vunpack.c.l.b16 %v2757
        %v2912 = vunpack.c.h.b16 %v2757
        %v2913 = vunpack.c.l.b16 %v2758
        %v2914 = vunpack.c.h.b16 %v2758
        %v2915 = vunpack.c.l.b16 %v2759
        %v2916 = vunpack.c.h.b16 %v2759
        %v2917 = vunpack.c.l.b16 %v2760
        %v2918 = vunpack.c.h.b16 %v2760
        %v2919 = vunpack.c.l.b16 %v2761
        %v2920 = vunpack.c.h.b16 %v2761
        %v2921 = vunpack.c.l.b16 %v2762
        %v2922 = vunpack.c.h.b16 %v2762
        %v2923 = vunpack.c.l.b16 %v2763
        %v2924 = vunpack.c.h.b16 %v2763
        %v2925 = vunpack.c.l.b16 %v2764
        %v2926 = vunpack.c.h.b16 %v2764
        %v2927 = vunpack.c.l.b16 %v2765
        %v2928 = vunpack.c.h.b16 %v2765
        %v2929 = vunpack.c.l.b16 %v2766
        %v2930 = vunpack.c.h.b16 %v2766
        %v2931 = vunpack.c.l.b16 %v2767
        %v2932 = vunpack.c.h.b16 %v2767
        %v2933 = vunpack.c.l.b16 %v2768
        %v2934 = vunpack.c.h.b16 %v2768
        %v2935 = vunpack.c.l.b16 %v2769
        %v2936 = vunpack.c.h.b16 %v2769
        %v2937 = vunpack.c.l.b16 %v2770
        %v2938 = vunpack.c.h.b16 %v2770
        %v2939 = vunpack.c.l.b16 %v2771
        %v2940 = vunpack.c.h.b16 %v2771
        %v2941 = vunpack.c.l.b16 %v2772
        %v2942 = vunpack.c.h.b16 %v2772
        %v2943 = vunpack.c.l.b16 %v2773
        %v2944 = vunpack.c.h.b16 %v2773
        %v2945 = vunpack.c.l.b16 %v2774
        %v2946 = vunpack.c.h.b16 %v2774
        %v2947 = vunpack.c.l.b16 %v2775
        %v2948 = vunpack.c.h.b16 %v2775
        %v2949 = vunpack.c.l.b16 %v2776
        %v2950 = vunpack.c.h.b16 %v2776
        %v2951 = vunpack.c.l.b16 %v2777
        %v2952 = vunpack.c.h.b16 %v2777
        %v2953 = vunpack.c.l.b16 %v2778
        %v2954 = vunpack.c.h.b16 %v2778
        %v2955 = vunpack.c.l.b16 %v2779
        %v2956 = vunpack.c.h.b16 %v2779
        %v2957 = vunpack.c.l.b16 %v2780
        %v2958 = vunpack.c.h.b16 %v2780
        %v2959 = vunpack.c.l.b16 %v2781
        %v2960 = vunpack.c.h.b16 %v2781
        %v2961 = vunpack.c.l.b16 %v2782
        %v2962 = vunpack.c.h.b16 %v2782
        %v2963 = vunpack.c.l.b16 %v2783
        %v2964 = vunpack.c.h.b16 %v2783
        %v2965 = vunpack.c.l.b16 %v2784
        %v2966 = vunpack.c.h.b16 %v2784
        %v2967 = vunpack.c.l.b16 %v2785
        %v2968 = vunpack.c.h.b16 %v2785
        %v2969 = vunpack.c.l.b16 %v2786
        %v2970 = vunpack.c.h.b16 %v2786
        %v2971 = vunpack.c.l.b16 %v2787
        %v2972 = vunpack.c.h.b16 %v2787
        %v2973 = vunpack.c.l.b16 %v2788
        %v2974 = vunpack.c.h.b16 %v2788
        %v2975 = vunpack.c.l.b16 %v2789
        %v2976 = vunpack.c.h.b16 %v2789
        %v2977 = vunpack.c.l.b16 %v2790
        %v2978 = vunpack.c.h.b16 %v2790
        %v2979 = vunpack.c.l.b16 %v2791
        %v2980 = vunpack.c.h.b16 %v2791
        %v2981 = vunpack.c.l.b16 %v2792
        %v2982 = vunpack.c.h.b16 %v2792
        %v2983 = vunpack.c.l.b16 %v2793
        %v2984 = vunpack.c.h.b16 %v2793
        %v2985 = vunpack.c.l.b16 %v2794
        %v2986 = vunpack.c.h.b16 %v2794
        %v2987 = vpack.c.b16 %v2861, %v2859
        %v2988 = vpack.c.b16 %v2862, %v2860
        %v2989 = vpack.c.b16 %v2865, %v2863
        %v2990 = vpack.c.b16 %v2866, %v2864
        %v2991 = vpack.c.b16 %v2869, %v2867
        %v2992 = vpack.c.b16 %v2870, %v2868
        %v2993 = vpack.c.b16 %v2873, %v2871
        %v2994 = vpack.c.b16 %v2874, %v2872
        %v2995 = vpack.c.b16 %v2877, %v2875
        %v2996 = vpack.c.b16 %v2878, %v2876
        %v2997 = vpack.c.b16 %v2881, %v2879
        %v2998 = vpack.c.b16 %v2882, %v2880
        %v2999 = vpack.c.b16 %v2885, %v2883
        %v3000 = vpack.c.b16 %v2886, %v2884
        %v3001 = vpack.c.b16 %v2889, %v2887
        %v3002 = vpack.c.b16 %v2890, %v2888
        %v3003 = vpack.c.b16 %v2893, %v2891
        %v3004 = vpack.c.b16 %v2894, %v2892
        %v3005 = vpack.c.b16 %v2897, %v2895
        %v3006 = vpack.c.b16 %v2898, %v2896
        %v3007 = vpack.c.b16 %v2901, %v2899
        %v3008 = vpack.c.b16 %v2902, %v2900
        %v3009 = vpack.c.b16 %v2905, %v2903
        %v3010 = vpack.c.b16 %v2906, %v2904
        %v3011 = vpack.c.b16 %v2909, %v2907
        %v3012 = vpack.c.b16 %v2910, %v2908
        %v3013 = vpack.c.b16 %v2913, %v2911
        %v3014 = vpack.c.b16 %v2914, %v2912
        %v3015 = vpack.c.b16 %v2917, %v2915
        %v3016 = vpack.c.b16 %v2918, %v2916
        %v3017 = vpack.c.b16 %v2921, %v2919
        %v3018 = vpack.c.b16 %v2922, %v2920
        %v3019 = vpack.c.b16 %v2925, %v2923
        %v3020 = vpack.c.b16 %v2926, %v2924
        %v3021 = vpack.c.b16 %v2929, %v2927
        %v3022 = vpack.c.b16 %v2930, %v2928
        %v3023 = vpack.c.b16 %v2933, %v2931
        %v3024 = vpack.c.b16 %v2934, %v2932
        %v3025 = vpack.c.b16 %v2937, %v2935
        %v3026 = vpack.c.b16 %v2938, %v2936
        %v3027 = vpack.c.b16 %v2941, %v2939
        %v3028 = vpack.c.b16 %v2942, %v2940
        %v3029 = vpack.c.b16 %v2945, %v2943
        %v3030 = vpack.c.b16 %v2946, %v2944
        %v3031 = vpack.c.b16 %v2949, %v2947
        %v3032 = vpack.c.b16 %v2950, %v2948
        %v3033 = vpack.c.b16 %v2953, %v2951
        %v3034 = vpack.c.b16 %v2954, %v2952
        %v3035 = vpack.c.b16 %v2957, %v2955
        %v3036 = vpack.c.b16 %v2958, %v2956
        %v3037 = vpack.c.b16 %v2961, %v2959
        %v3038 = vpack.c.b16 %v2962, %v2960
        %v3039 = vpack.c.b16 %v2965, %v2963
        %v3040 = vpack.c.b16 %v2966, %v2964
        %v3041 = vpack.c.b16 %v2969, %v2967
        %v3042 = vpack.c.b16 %v2970, %v2968
        %v3043 = vpack.c.b16 %v2973, %v2971
        %v3044 = vpack.c.b16 %v2974, %v2972
        %v3045 = vpack.c.b16 %v2977, %v2975
        %v3046 = vpack.c.b16 %v2978, %v2976
        %v3047 = vpack.c.b16 %v2981, %v2979
        %v3048 = vpack.c.b16 %v2982, %v2980
        %v3049 = vpack.c.b16 %v2985, %v2983
        %v3050 = vpack.c.b16 %v2986, %v2984
        %3115 = vmatprep.subr.bf16.mxu0 %v3002
        %3116 = vmatpush1.bf16.msra.mxu0 %v3001
        %3117 = vmatprep.subr.bf16.mxu0 %v3000
        %3118 = vmatpush1.bf16.msra.mxu0 %v2999
        %3119 = vmatprep.subr.bf16.mxu0 %v2998
        %3120 = vmatpush1.bf16.msra.mxu0 %v2997
        %3121 = vmatprep.subr.bf16.mxu0 %v2996
        %3122 = vmatpush1.bf16.msra.mxu0 %v2995
        %3123 = vmatprep.subr.bf16.mxu0 %v2994
        %3124 = vmatpush1.bf16.msra.mxu0 %v2993
        %3125 = vmatprep.subr.bf16.mxu0 %v2992
        %3126 = vmatpush1.bf16.msra.mxu0 %v2991
        %3127 = vmatprep.subr.bf16.mxu0 %v2990
        %3128 = vmatpush1.bf16.msra.mxu0 %v2989
        %3129 = vmatprep.subr.bf16.mxu0 %v2988
        %3130 = vmatpush1.bf16.msra.mxu0 %v2987
        %3131 = vmatprep.subr.bf16.mxu0 %v3018
        %3132 = vmatpush2.bf16.msra.mxu0 %v3017
        %3133 = vmatprep.subr.bf16.mxu0 %v3016
        %3134 = vmatpush2.bf16.msra.mxu0 %v3015
        %3135 = vmatprep.subr.bf16.mxu0 %v3014
        %3136 = vmatpush2.bf16.msra.mxu0 %v3013
        %3137 = vmatprep.subr.bf16.mxu0 %v3012
        %3138 = vmatpush2.bf16.msra.mxu0 %v3011
        %3139 = vmatprep.subr.bf16.mxu0 %v3010
        %3140 = vmatpush2.bf16.msra.mxu0 %v3009
        %3141 = vmatprep.subr.bf16.mxu0 %v3008
        %3142 = vmatpush2.bf16.msra.mxu0 %v3007
        %3143 = vmatprep.subr.bf16.mxu0 %v3006
        %3144 = vmatpush2.bf16.msra.mxu0 %v3005
        %3145 = vmatprep.subr.bf16.mxu0 %v3004
        %3146 = vmatpush2.bf16.msra.mxu0 %v3003
        %3147 = vmatprep.mubr.bf16.mxu0 %v2728
        %3148 = vmatmul.mubr.bf16.gmra.mxu0 %v2727
        %v3149 = vpop.f32.mrf.mxu0
        %v3150 = vadd.f32 0.0, %v3149
        %v3151 = vpop.f32.mrf.mxu0
        %v3152 = vadd.f32 0.0, %v3151
        %v3153 = vpop.f32.mrf.mxu0
        %v3154 = vadd.f32 0.0, %v3153
        %v3155 = vpop.f32.mrf.mxu0
        %v3156 = vadd.f32 0.0, %v3155
        %3157 = vdwg.mxu0
        %3158 = vmatprep.subr.bf16.mxu0 %v3034
        %3159 = vmatpush1.bf16.msra.mxu0 %v3033
        %3160 = vmatprep.subr.bf16.mxu0 %v3032
        %3161 = vmatpush1.bf16.msra.mxu0 %v3031
        %3162 = vmatprep.subr.bf16.mxu0 %v3030
        %3163 = vmatpush1.bf16.msra.mxu0 %v3029
        %3164 = vmatprep.subr.bf16.mxu0 %v3028
        %3165 = vmatpush1.bf16.msra.mxu0 %v3027
        %3166 = vmatprep.subr.bf16.mxu0 %v3026
        %3167 = vmatpush1.bf16.msra.mxu0 %v3025
        %3168 = vmatprep.subr.bf16.mxu0 %v3024
        %3169 = vmatpush1.bf16.msra.mxu0 %v3023
        %3170 = vmatprep.subr.bf16.mxu0 %v3022
        %3171 = vmatpush1.bf16.msra.mxu0 %v3021
        %3172 = vmatprep.subr.bf16.mxu0 %v3020
        %3173 = vmatpush1.bf16.msra.mxu0 %v3019
        %3174 = vmatprep.subr.bf16.mxu0 %v3050
        %3175 = vmatpush2.bf16.msra.mxu0 %v3049
        %3176 = vmatprep.subr.bf16.mxu0 %v3048
        %3177 = vmatpush2.bf16.msra.mxu0 %v3047
        %3178 = vmatprep.subr.bf16.mxu0 %v3046
        %3179 = vmatpush2.bf16.msra.mxu0 %v3045
        %3180 = vmatprep.subr.bf16.mxu0 %v3044
        %3181 = vmatpush2.bf16.msra.mxu0 %v3043
        %3182 = vmatprep.subr.bf16.mxu0 %v3042
        %3183 = vmatpush2.bf16.msra.mxu0 %v3041
        %3184 = vmatprep.subr.bf16.mxu0 %v3040
        %3185 = vmatpush2.bf16.msra.mxu0 %v3039
        %3186 = vmatprep.subr.bf16.mxu0 %v3038
        %3187 = vmatpush2.bf16.msra.mxu0 %v3037
        %3188 = vmatprep.subr.bf16.mxu0 %v3036
        %3189 = vmatpush2.bf16.msra.mxu0 %v3035
        %3190 = vmatprep.mubr.bf16.mxu0 %v2730
        %3191 = vmatmul.mubr.bf16.gmra.mxu0 %v2729
        %v3192 = vpop.f32.mrf.mxu0
        %v3193 = vadd.f32 %v3150, %v3192
        %v3194 = vpop.f32.mrf.mxu0
        %v3195 = vadd.f32 %v3152, %v3194
        %v3196 = vpop.f32.mrf.mxu0
        %v3197 = vadd.f32 %v3154, %v3196
        %v3198 = vpop.f32.mrf.mxu0
        %v3199 = vadd.f32 %v3156, %v3198
        %3200 = vdwg.mxu0
        %v3201 = vadd.f32 %v2187, %v3193
        %v3202 = vadd.f32 %v2188, %v3195
        %v3203 = vadd.f32 %v2189, %v3197
        %v3204 = vadd.f32 %v2190, %v3199
        %3205 = vst [vmem:[#allocation2] sm:$0xff] %v3201
        %3206 = vst [vmem:[#allocation2 + $0x8] sm:$0xff] %v3202
        %3207 = vst [vmem:[#allocation2 + $0x10] sm:$0xff] %v3203
        %3208 = vst [vmem:[#allocation2 + $0x18] sm:$0xff] %v3204
        %p3209 = scmp.eq.s32.totalorder %s39, 1
        // Predicated region
        $region93: #{simple_vit_forward.1} parent=75 // pred_check
          %p3210 = pneg %p3209
        $region94: #{simple_vit_forward.1} parent=75 // pred_check_branch
          %3212 = sbr.rel (%p3210) target = $region96
        $region95: #{simple_vit_forward.1} parent=75 // pred_region
          %v3213 = vadd.f32 %v3201, %v3203
          %v3214 = vrot.slane %v3213, 4
          %v3215 = vadd.f32 %v3213, %v3214
          %v3216 = vrot.slane %v3215, 2
          %v3217 = vadd.f32 %v3215, %v3216
          %v3218 = vrot.slane %v3217, 1
          %v3219 = vadd.f32 %v3217, %v3218
          %v3220 = vadd.f32 %v3202, %v3204
          %v3221 = vrot.slane %v3220, 4
          %v3222 = vadd.f32 %v3220, %v3221
          %v3223 = vrot.slane %v3222, 2
          %v3224 = vadd.f32 %v3222, %v3223
          %v3225 = vrot.slane %v3224, 1
          %v3226 = vadd.f32 %v3224, %v3225
          %v3227 = vmul.f32 %v3219, 0.0625
          %v3228 = vmul.f32 %v3226, 0.0625
          %v3229 = vld [vmem:[%s11] sm:$0x3]
          %v3230 = vld [vmem:[%s12] sm:$0x3]
          %v3231 = vadd.f32 %v3227, %v3228
          %3232 = vadd.xlane.f32.xlu0 %v3231
          %v3233 = vpop.xlane.xlu0 %3232
          %v3234 = vmul.f32 %v3233, %v809
          %v3235 = vsub.f32 %v3227, %v3234
          %v3236 = vsub.f32 %v3228, %v3234
          %v3237 = vmul.f32 %v3235, %v3235
          %v3238 = vmul.f32 %v3236, %v3236
          %v3239 = vadd.f32 %v3237, %v3238
          %3240 = vadd.xlane.f32.xlu0 %v3239
          %v3241 = vpop.xlane.xlu0 %3240
          %v3242 = vmul.f32 %v3241, %v809
          %v3243 = vadd.f32 %v3242, 1e-05
          %v3244 = vrsqrt.pop %v3243
          %v3245 = vmul.f32 %v3235, %v3244
          %v3246 = vmul.f32 %v3236, %v3244
          %v3248 = vlaneseq
          %v3249 = vshrl.u32 %v3248, 7
          %v3250 = vsub.s32 0, %v3249
          %v3251 = vrot.slane %v3229, %v3250
          %v3252 = vlaneseq
          %v3253 = vshrl.u32 %v3252, 7
          %v3254 = vsub.s32 1, %v3253
          %v3255 = vrot.slane %v3229, %v3254
          %v3258 = vmul.f32 %v3245, %v3251
          %v3259 = vmul.f32 %v3246, %v3255
          %v3261 = vlaneseq
          %v3262 = vshrl.u32 %v3261, 7
          %v3263 = vsub.s32 0, %v3262
          %v3264 = vrot.slane %v3230, %v3263
          %v3265 = vlaneseq
          %v3266 = vshrl.u32 %v3265, 7
          %v3267 = vsub.s32 1, %v3266
          %v3268 = vrot.slane %v3230, %v3267
          %v3271 = vadd.f32 %v3258, %v3264
          %v3272 = vadd.f32 %v3259, %v3268
          %v3273 = vpack.c.bf16 %v3271, %v3271
          %v3274 = vpack.c.bf16 %v3272, %v3272
          %v3275 = vld [vmem:[%s13] sm:$0xf]
          %v3276 = vld [vmem:[%s13 + $0x4] sm:$0xf]
          %v3277 = vld [vmem:[%s13 + $0x8] sm:$0xf]
          %v3278 = vld [vmem:[%s13 + $0xc] sm:$0xf]
          %v3279 = vld [vmem:[%s13 + $0x10] sm:$0xf]
          %v3280 = vld [vmem:[%s13 + $0x14] sm:$0xf]
          %v3281 = vld [vmem:[%s13 + $0x18] sm:$0xf]
          %v3282 = vld [vmem:[%s13 + $0x1c] sm:$0xf]
          %v3283 = vld [vmem:[%s13 + $0x20] sm:$0xf]
          %v3284 = vld [vmem:[%s13 + $0x24] sm:$0xf]
          %v3285 = vld [vmem:[%s13 + $0x28] sm:$0xf]
          %v3286 = vld [vmem:[%s13 + $0x2c] sm:$0xf]
          %v3287 = vld [vmem:[%s13 + $0x30] sm:$0xf]
          %v3288 = vld [vmem:[%s13 + $0x34] sm:$0xf]
          %v3289 = vld [vmem:[%s13 + $0x38] sm:$0xf]
          %v3290 = vld [vmem:[%s13 + $0x3c] sm:$0xf]
          %v3291 = vld [vmem:[%s13 + $0x40] sm:$0xf]
          %v3292 = vld [vmem:[%s13 + $0x44] sm:$0xf]
          %v3293 = vld [vmem:[%s13 + $0x48] sm:$0xf]
          %v3294 = vld [vmem:[%s13 + $0x4c] sm:$0xf]
          %v3295 = vld [vmem:[%s13 + $0x50] sm:$0xf]
          %v3296 = vld [vmem:[%s13 + $0x54] sm:$0xf]
          %v3297 = vld [vmem:[%s13 + $0x58] sm:$0xf]
          %v3298 = vld [vmem:[%s13 + $0x5c] sm:$0xf]
          %v3299 = vld [vmem:[%s13 + $0x60] sm:$0xf]
          %v3300 = vld [vmem:[%s13 + $0x64] sm:$0xf]
          %v3301 = vld [vmem:[%s13 + $0x68] sm:$0xf]
          %v3302 = vld [vmem:[%s13 + $0x6c] sm:$0xf]
          %v3303 = vld [vmem:[%s13 + $0x70] sm:$0xf]
          %v3304 = vld [vmem:[%s13 + $0x74] sm:$0xf]
          %v3305 = vld [vmem:[%s13 + $0x78] sm:$0xf]
          %v3306 = vld [vmem:[%s13 + $0x7c] sm:$0xf]
          %v3339 = vunpack.c.l.b16 %v3275
          %v3340 = vunpack.c.l.b16 %v3276
          %v3341 = vunpack.c.l.b16 %v3277
          %v3342 = vunpack.c.l.b16 %v3278
          %v3343 = vunpack.c.l.b16 %v3279
          %v3344 = vunpack.c.l.b16 %v3280
          %v3345 = vunpack.c.l.b16 %v3281
          %v3346 = vunpack.c.l.b16 %v3282
          %v3347 = vunpack.c.l.b16 %v3283
          %v3348 = vunpack.c.l.b16 %v3284
          %v3349 = vunpack.c.l.b16 %v3285
          %v3350 = vunpack.c.l.b16 %v3286
          %v3351 = vunpack.c.l.b16 %v3287
          %v3352 = vunpack.c.l.b16 %v3288
          %v3353 = vunpack.c.l.b16 %v3289
          %v3354 = vunpack.c.l.b16 %v3290
          %v3355 = vunpack.c.l.b16 %v3291
          %v3356 = vunpack.c.l.b16 %v3292
          %v3357 = vunpack.c.l.b16 %v3293
          %v3358 = vunpack.c.l.b16 %v3294
          %v3359 = vunpack.c.l.b16 %v3295
          %v3360 = vunpack.c.l.b16 %v3296
          %v3361 = vunpack.c.l.b16 %v3297
          %v3362 = vunpack.c.l.b16 %v3298
          %v3363 = vunpack.c.l.b16 %v3299
          %v3364 = vunpack.c.l.b16 %v3300
          %v3365 = vunpack.c.l.b16 %v3301
          %v3366 = vunpack.c.l.b16 %v3302
          %v3367 = vunpack.c.l.b16 %v3303
          %v3368 = vunpack.c.l.b16 %v3304
          %v3369 = vunpack.c.l.b16 %v3305
          %v3370 = vunpack.c.l.b16 %v3306
          %v3371 = vpack.c.b16 %v3340, %v3339
          %v3372 = vpack.c.b16 %v3342, %v3341
          %v3373 = vpack.c.b16 %v3344, %v3343
          %v3374 = vpack.c.b16 %v3346, %v3345
          %v3375 = vpack.c.b16 %v3348, %v3347
          %v3376 = vpack.c.b16 %v3350, %v3349
          %v3377 = vpack.c.b16 %v3352, %v3351
          %v3378 = vpack.c.b16 %v3354, %v3353
          %v3379 = vpack.c.b16 %v3356, %v3355
          %v3380 = vpack.c.b16 %v3358, %v3357
          %v3381 = vpack.c.b16 %v3360, %v3359
          %v3382 = vpack.c.b16 %v3362, %v3361
          %v3383 = vpack.c.b16 %v3364, %v3363
          %v3384 = vpack.c.b16 %v3366, %v3365
          %v3385 = vpack.c.b16 %v3368, %v3367
          %v3386 = vpack.c.b16 %v3370, %v3369
          %3403 = vmatprep.subr.bf16.mxu0 0
          %3404 = vmatpush1.bf16.msra.mxu0 %v3378
          %3405 = vmatprep.subr.bf16.mxu0 0
          %3406 = vmatpush1.bf16.msra.mxu0 %v3377
          %3407 = vmatprep.subr.bf16.mxu0 0
          %3408 = vmatpush1.bf16.msra.mxu0 %v3376
          %3409 = vmatprep.subr.bf16.mxu0 0
          %3410 = vmatpush1.bf16.msra.mxu0 %v3375
          %3411 = vmatprep.subr.bf16.mxu0 0
          %3412 = vmatpush1.bf16.msra.mxu0 %v3374
          %3413 = vmatprep.subr.bf16.mxu0 0
          %3414 = vmatpush1.bf16.msra.mxu0 %v3373
          %3415 = vmatprep.subr.bf16.mxu0 0
          %3416 = vmatpush1.bf16.msra.mxu0 %v3372
          %3417 = vmatprep.subr.bf16.mxu0 0
          %3418 = vmatpush1.bf16.msra.mxu0 %v3371
          %3419 = vmatprep.subr.bf16.mxu0 0
          %3420 = vmatpush2.bf16.msra.mxu0 %v3386
          %3421 = vmatprep.subr.bf16.mxu0 0
          %3422 = vmatpush2.bf16.msra.mxu0 %v3385
          %3423 = vmatprep.subr.bf16.mxu0 0
          %3424 = vmatpush2.bf16.msra.mxu0 %v3384
          %3425 = vmatprep.subr.bf16.mxu0 0
          %3426 = vmatpush2.bf16.msra.mxu0 %v3383
          %3427 = vmatprep.subr.bf16.mxu0 0
          %3428 = vmatpush2.bf16.msra.mxu0 %v3382
          %3429 = vmatprep.subr.bf16.mxu0 0
          %3430 = vmatpush2.bf16.msra.mxu0 %v3381
          %3431 = vmatprep.subr.bf16.mxu0 0
          %3432 = vmatpush2.bf16.msra.mxu0 %v3380
          %3433 = vmatprep.subr.bf16.mxu0 0
          %3434 = vmatpush2.bf16.msra.mxu0 %v3379
          %3435 = vmatprep.mubr.bf16.mxu0 %v3274
          %3436 = vmatmul.mubr.bf16.gmra.mxu0 %v3273
          %v3437 = vpop.f32.mrf.mxu0
          %v3438 = vadd.f32 -2.1972246, %v3437
          %v3439 = vpop.f32.mrf.mxu0
          %v3440 = vpop.f32.mrf.mxu0
          %v3441 = vpop.f32.mrf.mxu0
          %3442 = vdwg.mxu0
          %3443 = vst [vmem:[%s655] sm:$0x1] %v3438
        $region96: #{simple_vit_forward.1} parent=75 // pred_fallthru
          _
        %s3444 = sand.u32 %s393, 1
        %s3445 = scalar_lea.sflag [#allocation5], %s3444
        %s3446 = sand.u32 %s393, 1
        %s3447 = scalar_lea.vmem [#allocation9], %s3446
        // Predicated region
        $region97: #{simple_vit_forward.1} parent=75 // pred_check
          %p3448 = pneg %p403
        $region98: #{simple_vit_forward.1} parent=75 // pred_check_branch
          %3450 = sbr.rel (%p3448) target = $region100
        $region99: #{simple_vit_forward.1} parent=75 // pred_region
          %s3452 = ssub.s32 16, 16
          %3453 = vsyncadd %s3445, %s3452
          %s3454 = smul.addr %s38, 16
          %s3455 = scalar_lea.hbm %s14, %s3454
          %s3457 = sshll.u32 %s3447, 4
          %s3458 = int_to_ptr.vmem [resolvable:$true] %s3457
          %3460 = dma.vmem_to_hbm [thread:$0]  %s3458, 16, %s3455, %s3445
        $region100: #{simple_vit_forward.1} parent=75 // pred_fallthru
          _
      $region76: #{simple_vit_forward.1} parent=5 // pred_fallthru
        _
      %p3461 = scmp.le.s32.totalorder 2, %s29
      // Predicated region
      $region101: #{simple_vit_forward.1} parent=5 // pred_check
        %p3462 = pneg %p3461
      $region102: #{simple_vit_forward.1} parent=5 // pred_check_branch
        %3464 = sbr.rel (%p3462) target = $region104
      $region103: #{simple_vit_forward.1} parent=5 // pred_region
        %s3465 = ssub.s32 %s29, 2
        // Predicated region
        $region105: #{simple_vit_forward.1} parent=103 // pred_check
          %p3466 = pneg %p409
        $region106: #{simple_vit_forward.1} parent=103 // pred_check_branch
          %3468 = sbr.rel (%p3466) target = $region108
        $region107: #{simple_vit_forward.1} parent=103 // pred_region
          %s3469 = sand.u32 %s394, 1
          %s3470 = scalar_lea.sflag [#allocation5], %s3469
          %s3471 = sand.u32 %s394, 1
          %s3472 = scalar_lea.vmem [#allocation9], %s3471
          %3473 = dma.done %s3470, 16
        $region108: #{simple_vit_forward.1} parent=103 // pred_fallthru
          _
      $region104: #{simple_vit_forward.1} parent=5 // pred_fallthru
        _
    $region6: #{simple_vit_forward.1} parent=1 // loop_footer
      %s33 = sadd.s32 1, %s29
    $region7: #{simple_vit_forward.1} parent=1 // loop_footer_branch
      %28 = sbr.rel target = $region3
    $region8: #{simple_vit_forward.1} parent=1 // loop_exit
      _
    %3474 = vsyncpa [#allocation4], 1
    %s3475 = scalar_lea.sflag [#allocation4], 1
    %3476 = vsyncpa %s3475, 1
    %3477 = vsyncpa [#allocation7], 1
    %s3478 = scalar_lea.sflag [#allocation7], 1
    %3479 = vsyncpa %s3478, 1
    %3480 = vsyncpa [#allocation5], 1
    %s3481 = scalar_lea.sflag [#allocation5], 1
    %3482 = vsyncpa %s3481, 1

</llo_original>
